<compile_context>
chip_gen: v5e
topology: v5e:2x2
jax: 0.10.0
libtpu: 0.0.40
codegen_flags: <defaults>
</compile_context>

<pallas_src>
import functools

import jax
import jax.numpy as jnp
from jax.experimental import pallas as pl
from jax.experimental.pallas import tpu as pltpu


# ----------------------------------------------------------------------------
# kernel
# ----------------------------------------------------------------------------
def _attention_lite_kernel(xm_ref, xh_ref, wq_ref, bq_ref, wkv_ref, kb_ref,
                           bv_ref, eq_ref, s1_ref, sd_ref, ed_ref, sh_ref,
                           ea_ref, s2_ref, o_ref, *,
                           groups, heads, out_w, ksize, rows_per_block, width):
    """One grid step: rows_per_block output rows of one batch image."""
    K = ksize
    G = groups
    GW = G * out_w
    GH = G * heads
    RH = rows_per_block
    W = width
    T = RH * W

    # Stitch the RH-row block and its (K-1)-row bottom halo (both already in
    # VMEM via the auto-pipelined BlockSpecs, so the DMA overlapped compute).
    slab = jnp.concatenate([xm_ref[0], xh_ref[0]], axis=0)       # (RH+K-1, Wp, C)

    wkv = wkv_ref[...]           # (C, 2*GW) compact block-diag [Wk | Wv]
    wq = wq_ref[...]             # (C, G*heads*out_w) compact block-diag Wq
    kk_center = (K // 2) * K + (K // 2)

    # ---- q/k/v projections: one compact matmul per KxK tap ------------------
    # key ordering is kk-major (n = kk*G + g) so every tap writes a contiguous
    # column slice -- no structural-zero columns, no masked accumulation.
    q = None
    k_parts = []
    v_parts = []
    for kk in range(K * K):
        ky, kx = divmod(kk, K)
        piece = slab[ky:ky + RH, kx:kx + W, :].reshape(T, -1)     # (T, C)
        kv = jnp.dot(piece, wkv, preferred_element_type=jnp.float32)  # (T, 2*GW)
        k_parts.append(kv[:, :GW])
        v_parts.append(kv[:, GW:])
        if kk == kk_center:      # q only uses the un-padded centre tap
            q = jnp.dot(piece, wq,
                        preferred_element_type=jnp.float32) + bq_ref[...]
    k = jnp.concatenate(k_parts, axis=1) + kb_ref[...]           # (T, N*out_w)
    v = jnp.concatenate(v_parts, axis=1) + bv_ref[...]           # (T, N*out_w)

    # ---- fused attention for all (group, head) pairs in one matmul chain ----
    # column layouts:  q: (g, h, c)   k/v: (n, c)   with n = kk*G + g'
    q_rep = jnp.dot(q, eq_ref[...],
                    preferred_element_type=jnp.float32)          # (T, GH*N*out_w)
    k_rep = jnp.concatenate([k] * GH, axis=1)                    # lane tile, no MXU
    logits = jnp.dot(q_rep * k_rep, s1_ref[...],
                     preferred_element_type=jnp.float32)         # (T, GH*N)

    # softmax over each N-key segment; subtracting the *global* row max is a
    # valid shift (each segment is normalised separately) and avoids
    # lane-sparse per-segment max reductions.
    m = jnp.max(logits, axis=-1, keepdims=True)
    p = jnp.exp(logits - m)
    denom = jnp.dot(p, sd_ref[...],
                    preferred_element_type=jnp.float32)          # (T, GH)
    inv = pl.reciprocal(denom, approx=True)
    inv = inv * (2.0 - denom * inv)      # one Newton step: EUP-fast, f32-tight
    attn = p * jnp.dot(inv, ed_ref[...],
                       preferred_element_type=jnp.float32)       # normalised
    attn = jnp.dot(attn, sh_ref[...],
                   preferred_element_type=jnp.float32)           # (T, G*N) head-sum

    a_rep = jnp.dot(attn, ea_ref[...],
                    preferred_element_type=jnp.float32)          # (T, G*N*out_w)
    v_rep = jnp.concatenate([v] * G, axis=1)                     # lane tile
    out = jnp.dot(a_rep * v_rep, s2_ref[...],
                  preferred_element_type=jnp.float32)            # (T, G*out_w)

    # Single contiguous store of the whole tile (no per-group column writes).
    # TODO(synk): a fully lane-dense (>=128-lane) output layout would need an
    # in-kernel transpose; not worth it at these store volumes.
    o_ref[0, :, :] = out.astype(o_ref.dtype)


# ----------------------------------------------------------------------------
# parameters
# ----------------------------------------------------------------------------
def init_params(key, *, in_channels, out_channels, groups, heads, ksize):
    in_w = in_channels // groups
    out_w = out_channels // groups
    m = heads * out_w
    ks = jax.random.split(key, 8)
    return dict(
        wq=jax.random.normal(ks[0], (groups, in_w, m), jnp.float32) * 0.2,
        bq=jax.random.normal(ks[1], (groups, m), jnp.float32) * 0.1,
        wk=jax.random.normal(ks[2], (groups, in_w, out_w), jnp.float32) * 0.2,
        bk=jax.random.normal(ks[3], (groups, out_w), jnp.float32) * 0.1,
        wv=jax.random.normal(ks[4], (groups, in_w, out_w), jnp.float32) * 0.2,
        bv=jax.random.normal(ks[5], (groups, out_w), jnp.float32) * 0.1,
        rel_h=jax.random.normal(ks[6], (out_w // 2, 1, 1, groups, ksize, 1), jnp.float32),
        rel_w=jax.random.normal(ks[7], (out_w // 2, 1, 1, groups, 1, ksize), jnp.float32),
    )


# ----------------------------------------------------------------------------
# wrapper
# ----------------------------------------------------------------------------
def _full_spec(arr):
    nd = arr.ndim
    return pl.BlockSpec(arr.shape, lambda b, r, _nd=nd: (0,) * _nd)


def attention_lite_forward(x, params, *, ksize, stride, padding, groups, heads,
                           rows_per_block=None):
    B, C, H, W = x.shape
    G = groups
    assert C % G == 0
    in_w = C // G
    out_w = params['wk'].shape[2]
    m_q = heads * out_w
    assert params['wq'].shape[2] == m_q
    K = ksize
    KK = K * K
    N = G * KK                 # keys per position, ordered n = kk*G + g
    GH = G * heads
    GW = G * out_w

    # The torch module only broadcasts consistently when the attention output
    # keeps the input spatial extent (q is computed on the un-padded input).
    assert stride == 1, "AttentionLite kernel requires stride == 1"
    assert K % 2 == 1 and padding == (K - 1) // 2, \
        "AttentionLite kernel requires 'same' padding"
    assert K >= 3  # TODO(synk): ksize == 1 needs a halo-free code path
    assert out_w % 2 == 0, "out_channels//groups must be even (rel_h/rel_w split)"
    assert W % 8 == 0, "kernel assumes image width is a multiple of 8"

    if rows_per_block is None:
        # Target ~1024 positions/step (review: bigger tiles amortise the
        # ~0.35us/step overhead and reach the HBM roofline).
        rows_per_block = max(1, min(H, 1024 // max(W, 1)))
        while H % rows_per_block:
            rows_per_block -= 1
        # keep >= 2 grid steps so both v7x TensorCores get work
        while B * (H // rows_per_block) < 2 and rows_per_block > 1:
            rows_per_block //= 2
            while H % rows_per_block:
                rows_per_block -= 1
    assert H % rows_per_block == 0
    RH = rows_per_block
    NB = H // RH
    T = RH * W
    Wp = W + 2 * padding

    # ---- input: padded NHWC, split into non-overlapping main row blocks plus
    # the (K-1)-row bottom halos so BlockSpec auto-pipelining (double-buffered
    # DMA) hides all HBM traffic behind compute.
    x_nhwc = jnp.transpose(
        jnp.pad(x, ((0, 0), (0, 0), (padding, padding), (padding, padding))),
        (0, 2, 3, 1)).astype(jnp.float32)                        # (B, Hp, Wp, C)
    x_main = x_nhwc[:, :H].reshape(B * NB, RH, Wp, C)
    halo_rows = jnp.arange(NB)[:, None] * RH + RH + jnp.arange(K - 1)[None, :]
    x_halo = x_nhwc[:, halo_rows].reshape(B * NB, K - 1, Wp, C)

    # ---- compact (zero-free) block-diagonal 1x1-conv weights
    def blockdiag(w):                     # (G, in_w, d) -> (C, G*d)
        d = w.shape[2]
        out = jnp.zeros((C, G * d), jnp.float32)
        for g in range(G):
            out = out.at[g * in_w:(g + 1) * in_w, g * d:(g + 1) * d].set(w[g])
        return out

    wq_bd = blockdiag(params['wq'])                              # (C, G*m_q)
    wkv_bd = jnp.concatenate([blockdiag(params['wk']),
                              blockdiag(params['wv'])], axis=1)  # (C, 2*GW)
    bq_big = params['bq'].reshape(1, G * m_q)

    # key bias = conv bias + relative-position embedding, key order n = kk*G+g
    rel_h = jnp.broadcast_to(params['rel_h'][:, 0, 0], (out_w // 2, G, K, K))
    rel_w = jnp.broadcast_to(params['rel_w'][:, 0, 0], (out_w // 2, G, K, K))
    rel = jnp.concatenate([rel_h, rel_w], axis=0)                # (out_w, G, K, K)
    rel = jnp.transpose(rel.reshape(out_w, G, KK), (2, 1, 0))    # (KK, G, out_w)
    kb_big = (rel + params['bk'][None, :, :]).reshape(1, N * out_w)
    bv_big = jnp.broadcast_to(params['bv'][None, :, :],
                              (KK, G, out_w)).reshape(1, N * out_w)

    # ---- constant 0/1 selector matrices for the fused lane-dense attention
    f32 = jnp.float32
    eye = lambda n: jnp.eye(n, dtype=f32)
    EQ = jnp.kron(eye(GH), jnp.tile(eye(out_w), (1, N)))         # (GH*out_w, GH*N*out_w)
    S1f = jnp.kron(eye(GH * N), jnp.ones((out_w, 1), f32))       # (GH*N*out_w, GH*N)
    SD = jnp.kron(eye(GH), jnp.ones((N, 1), f32))                # (GH*N, GH)
    ED = SD.T                                                    # (GH, GH*N)
    SH = jnp.kron(eye(G), jnp.kron(jnp.ones((heads, 1), f32), eye(N)))  # (GH*N, G*N)
    EA = jnp.kron(eye(G * N), jnp.ones((1, out_w), f32))         # (G*N, G*N*out_w)
    S2f = jnp.kron(eye(G), jnp.kron(jnp.ones((N, 1), f32), eye(out_w)))  # (G*N*out_w, G*out_w)

    kernel = functools.partial(
        _attention_lite_kernel, groups=G, heads=heads, out_w=out_w,
        ksize=K, rows_per_block=RH, width=W)

    out = pl.pallas_call(
        kernel,
        out_shape=jax.ShapeDtypeStruct((B, H * W, GW), jnp.float32),
        grid=(B, NB),
        in_specs=[
            pl.BlockSpec((1, RH, Wp, C),
                         lambda b, r, _nb=NB: (b * _nb + r, 0, 0, 0)),
            pl.BlockSpec((1, K - 1, Wp, C),
                         lambda b, r, _nb=NB: (b * _nb + r, 0, 0, 0)),
            _full_spec(wq_bd), _full_spec(bq_big), _full_spec(wkv_bd),
            _full_spec(kb_big), _full_spec(bv_big),
            _full_spec(EQ), _full_spec(S1f), _full_spec(SD), _full_spec(ED),
            _full_spec(SH), _full_spec(EA), _full_spec(S2f),
        ],
        out_specs=pl.BlockSpec((1, T, GW), lambda b, r: (b, r, 0)),
        compiler_params=pltpu.CompilerParams(
            dimension_semantics=("parallel", "parallel"),
            vmem_limit_bytes=48 * 1024 * 1024),
    )(x_main, x_halo, wq_bd, bq_big, wkv_bd, kb_big, bv_big,
      EQ, S1f, SD, ED, SH, EA, S2f)

    # Same layout plumbing as torch: (B,out_w,H,W,G).transpose(1,-1).reshape
    y = out.reshape(B, H, W, G, out_w)
    y = jnp.transpose(y, (0, 3, 1, 2, 4))                        # (B, G, H, W, out_w)
    return y.reshape(B, -1, H, W)


# ----------------------------------------------------------------------------
# pure-JAX reference (mirror of the PyTorch forward, for validation)
# ----------------------------------------------------------------------------
def reference_forward(x, params, *, ksize, stride, padding, groups, heads):
    B, C, H, W = x.shape
    in_w = C // groups
    out_w = params['wk'].shape[2]
    xp = jnp.pad(x, ((0, 0), (0, 0), (padding, padding), (padding, padding)))

    def sparse(inp, w, b):
        outs = []
        for g in range(groups):
            xg = inp[:, g * in_w:(g + 1) * in_w]
            og = jnp.einsum('bihw,io->bohw', xg, w[g],
                            precision=jax.lax.Precision.HIGHEST)
            outs.append(og + b[g][None, :, None, None])
        return outs

    q = jnp.stack(sparse(x, params['wq'], params['bq']), axis=-1)
    k = jnp.stack(sparse(xp, params['wk'], params['bk']), axis=-1)
    v = jnp.stack(sparse(xp, params['wv'], params['bv']), axis=-1)

    def unfold(t):
        rows = []
        for ky in range(ksize):
            cols = []
            for kx in range(ksize):
                cols.append(t[:, :, ky:ky + (H - 1) * stride + 1:stride,
                                  kx:kx + (W - 1) * stride + 1:stride, :])
            rows.append(jnp.stack(cols, axis=-1))
        return jnp.stack(rows, axis=-2)

    ku, vu = unfold(k), unfold(v)
    k_h, k_w = ku[:, :out_w // 2], ku[:, out_w // 2:]
    ku = jnp.concatenate([k_h + params['rel_h'], k_w + params['rel_w']], axis=1)
    ku = ku.reshape(B, 1, out_w, H, W, 1, -1)
    vu = vu.reshape(B, 1, out_w, H, W, 1, -1)
    qv = q.reshape(B, heads, out_w, H, W, groups, 1)
    out = (qv * ku).sum(axis=2, keepdims=True)
    out = jax.nn.softmax(out, axis=-1)
    out = (out * vu).sum(axis=1)
    out = out.sum(axis=-1)
    out = jnp.swapaxes(out, 1, -1)
    return out.reshape(B, -1, H, W)


if __name__ == "__main__":
    B, Cin, Cout, H, W = 2, 16, 16, 16, 16
    groups, heads, ksize, stride, padding = 2, 2, 3, 1, 1

    key = jax.random.PRNGKey(0)
    key_x, key_p = jax.random.split(key)
    x = jax.random.normal(key_x, (B, Cin, H, W), jnp.float32)
    params = init_params(key_p, in_channels=Cin, out_channels=Cout,
                         groups=groups, heads=heads, ksize=ksize)

    out = attention_lite_forward(x, params, ksize=ksize, stride=stride,
                                 padding=padding, groups=groups, heads=heads,
                                 rows_per_block=8)
    out = jax.block_until_ready(out)

    ref = reference_forward(x, params, ksize=ksize, stride=stride,
                            padding=padding, groups=groups, heads=heads)
    ref = jax.block_until_ready(ref)

    assert out.shape == (B, Cout, H, W), out.shape
    max_err = float(jnp.max(jnp.abs(out - ref)))
    # Tolerance covers accumulated default-precision (bf16-operand) MXU
    # rounding across the selector-matmul chain; the reference uses HIGHEST.
    assert jnp.allclose(out, ref, atol=1e-2, rtol=1e-2), max_err
    print("KERNEL_OK")
</pallas_src>

<mosaic_0001>
module attributes {stable_mosaic.version = 11 : i64} {
  func.func @_attention_lite_kernel(%arg0: i32, %arg1: i32, %arg2: memref<1x8x18x16xf32, #tpu.memory_space<vmem>>, %arg3: memref<1x2x18x16xf32, #tpu.memory_space<vmem>>, %arg4: memref<16x32xf32, #tpu.memory_space<vmem>>, %arg5: memref<1x32xf32, #tpu.memory_space<vmem>>, %arg6: memref<16x32xf32, #tpu.memory_space<vmem>>, %arg7: memref<1x144xf32, #tpu.memory_space<vmem>>, %arg8: memref<1x144xf32, #tpu.memory_space<vmem>>, %arg9: memref<32x576xf32, #tpu.memory_space<vmem>>, %arg10: memref<576x72xf32, #tpu.memory_space<vmem>>, %arg11: memref<72x4xf32, #tpu.memory_space<vmem>>, %arg12: memref<4x72xf32, #tpu.memory_space<vmem>>, %arg13: memref<72x36xf32, #tpu.memory_space<vmem>>, %arg14: memref<36x288xf32, #tpu.memory_space<vmem>>, %arg15: memref<288x16xf32, #tpu.memory_space<vmem>>, %arg16: memref<1x128x16xf32, #tpu.memory_space<vmem>>) attributes {dimension_semantics = [#tpu.dimension_semantics<parallel>, #tpu.dimension_semantics<parallel>], iteration_bounds = array<i64: 2, 2>, scalar_prefetch = 0 : i64, scratch_operands = 0 : i64, tpu.core_type = #tpu.core_type<tc>, window_params = [{transform_indices = @transform_0, window_bounds = array<i64: 1, 8, 18, 16>}, {transform_indices = @transform_1, window_bounds = array<i64: 1, 2, 18, 16>}, {pipeline_mode = #tpu.pipeline_mode<synchronous>, transform_indices = @transform_2, window_bounds = array<i64: 16, 32>}, {pipeline_mode = #tpu.pipeline_mode<synchronous>, transform_indices = @transform_3, window_bounds = array<i64: 1, 32>}, {pipeline_mode = #tpu.pipeline_mode<synchronous>, transform_indices = @transform_4, window_bounds = array<i64: 16, 32>}, {pipeline_mode = #tpu.pipeline_mode<synchronous>, transform_indices = @transform_5, window_bounds = array<i64: 1, 144>}, {pipeline_mode = #tpu.pipeline_mode<synchronous>, transform_indices = @transform_6, window_bounds = array<i64: 1, 144>}, {pipeline_mode = #tpu.pipeline_mode<synchronous>, transform_indices = @transform_7, window_bounds = array<i64: 32, 576>}, {pipeline_mode = #tpu.pipeline_mode<synchronous>, transform_indices = @transform_8, window_bounds = array<i64: 576, 72>}, {pipeline_mode = #tpu.pipeline_mode<synchronous>, transform_indices = @transform_9, window_bounds = array<i64: 72, 4>}, {pipeline_mode = #tpu.pipeline_mode<synchronous>, transform_indices = @transform_10, window_bounds = array<i64: 4, 72>}, {pipeline_mode = #tpu.pipeline_mode<synchronous>, transform_indices = @transform_11, window_bounds = array<i64: 72, 36>}, {pipeline_mode = #tpu.pipeline_mode<synchronous>, transform_indices = @transform_12, window_bounds = array<i64: 36, 288>}, {pipeline_mode = #tpu.pipeline_mode<synchronous>, transform_indices = @transform_13, window_bounds = array<i64: 288, 16>}, {transform_indices = @transform_14, window_bounds = array<i64: 1, 128, 16>}]} {
    %c0 = arith.constant 0 : index
    %c0_0 = arith.constant 0 : index
    %c0_1 = arith.constant 0 : index
    %c0_2 = arith.constant 0 : index
    %0 = vector.load %arg2[%c0, %c0_0, %c0_1, %c0_2] : memref<1x8x18x16xf32, #tpu.memory_space<vmem>>, vector<1x8x18x16xf32>
    %1 = vector.shape_cast %0 : vector<1x8x18x16xf32> to vector<8x18x16xf32>
    %c0_3 = arith.constant 0 : index
    %c0_4 = arith.constant 0 : index
    %c0_5 = arith.constant 0 : index
    %c0_6 = arith.constant 0 : index
    %2 = vector.load %arg3[%c0_3, %c0_4, %c0_5, %c0_6] : memref<1x2x18x16xf32, #tpu.memory_space<vmem>>, vector<1x2x18x16xf32>
    %3 = vector.shape_cast %2 : vector<1x2x18x16xf32> to vector<2x18x16xf32>
    %4 = tpu.concatenate %1, %3 in 0 : vector<8x18x16xf32>, vector<2x18x16xf32> -> vector<10x18x16xf32>
    %c0_7 = arith.constant 0 : index
    %c0_8 = arith.constant 0 : index
    %5 = vector.load %arg6[%c0_7, %c0_8] : memref<16x32xf32, #tpu.memory_space<vmem>>, vector<16x32xf32>
    %c0_9 = arith.constant 0 : index
    %c0_10 = arith.constant 0 : index
    %6 = vector.load %arg4[%c0_9, %c0_10] : memref<16x32xf32, #tpu.memory_space<vmem>>, vector<16x32xf32>
    %7 = vector.extract_strided_slice %4 {offsets = [0, 0, 0], sizes = [8, 16, 16], strides = [1, 1, 1]} : vector<10x18x16xf32> to vector<8x16x16xf32>
    %8 = vector.shape_cast %7 : vector<8x16x16xf32> to vector<128x16xf32>
    %cst = arith.constant dense<0.000000e+00> : vector<128x32xf32>
    %9 = tpu.matmul %8, %5, %cst {dimension_numbers = #tpu.dot_dimension_numbers<[1], [0], [0], [1], [0, 0, 1, 1], [], []>} : vector<128x16xf32>, vector<16x32xf32>, vector<128x32xf32> -> vector<128x32xf32>
    %10 = vector.extract_strided_slice %9 {offsets = [0, 0], sizes = [128, 16], strides = [1, 1]} : vector<128x32xf32> to vector<128x16xf32>
    %11 = vector.extract_strided_slice %9 {offsets = [0, 16], sizes = [128, 16], strides = [1, 1]} : vector<128x32xf32> to vector<128x16xf32>
    %12 = vector.extract_strided_slice %4 {offsets = [0, 1, 0], sizes = [8, 16, 16], strides = [1, 1, 1]} : vector<10x18x16xf32> to vector<8x16x16xf32>
    %13 = vector.shape_cast %12 : vector<8x16x16xf32> to vector<128x16xf32>
    %cst_11 = arith.constant dense<0.000000e+00> : vector<128x32xf32>
    %14 = tpu.matmul %13, %5, %cst_11 {dimension_numbers = #tpu.dot_dimension_numbers<[1], [0], [0], [1], [0, 0, 1, 1], [], []>} : vector<128x16xf32>, vector<16x32xf32>, vector<128x32xf32> -> vector<128x32xf32>
    %15 = vector.extract_strided_slice %14 {offsets = [0, 0], sizes = [128, 16], strides = [1, 1]} : vector<128x32xf32> to vector<128x16xf32>
    %16 = vector.extract_strided_slice %14 {offsets = [0, 16], sizes = [128, 16], strides = [1, 1]} : vector<128x32xf32> to vector<128x16xf32>
    %17 = vector.extract_strided_slice %4 {offsets = [0, 2, 0], sizes = [8, 16, 16], strides = [1, 1, 1]} : vector<10x18x16xf32> to vector<8x16x16xf32>
    %18 = vector.shape_cast %17 : vector<8x16x16xf32> to vector<128x16xf32>
    %cst_12 = arith.constant dense<0.000000e+00> : vector<128x32xf32>
    %19 = tpu.matmul %18, %5, %cst_12 {dimension_numbers = #tpu.dot_dimension_numbers<[1], [0], [0], [1], [0, 0, 1, 1], [], []>} : vector<128x16xf32>, vector<16x32xf32>, vector<128x32xf32> -> vector<128x32xf32>
    %20 = vector.extract_strided_slice %19 {offsets = [0, 0], sizes = [128, 16], strides = [1, 1]} : vector<128x32xf32> to vector<128x16xf32>
    %21 = vector.extract_strided_slice %19 {offsets = [0, 16], sizes = [128, 16], strides = [1, 1]} : vector<128x32xf32> to vector<128x16xf32>
    %22 = vector.extract_strided_slice %4 {offsets = [1, 0, 0], sizes = [8, 16, 16], strides = [1, 1, 1]} : vector<10x18x16xf32> to vector<8x16x16xf32>
    %23 = vector.shape_cast %22 : vector<8x16x16xf32> to vector<128x16xf32>
    %cst_13 = arith.constant dense<0.000000e+00> : vector<128x32xf32>
    %24 = tpu.matmul %23, %5, %cst_13 {dimension_numbers = #tpu.dot_dimension_numbers<[1], [0], [0], [1], [0, 0, 1, 1], [], []>} : vector<128x16xf32>, vector<16x32xf32>, vector<128x32xf32> -> vector<128x32xf32>
    %25 = vector.extract_strided_slice %24 {offsets = [0, 0], sizes = [128, 16], strides = [1, 1]} : vector<128x32xf32> to vector<128x16xf32>
    %26 = vector.extract_strided_slice %24 {offsets = [0, 16], sizes = [128, 16], strides = [1, 1]} : vector<128x32xf32> to vector<128x16xf32>
    %27 = vector.extract_strided_slice %4 {offsets = [1, 1, 0], sizes = [8, 16, 16], strides = [1, 1, 1]} : vector<10x18x16xf32> to vector<8x16x16xf32>
    %28 = vector.shape_cast %27 : vector<8x16x16xf32> to vector<128x16xf32>
    %cst_14 = arith.constant dense<0.000000e+00> : vector<128x32xf32>
    %29 = tpu.matmul %28, %5, %cst_14 {dimension_numbers = #tpu.dot_dimension_numbers<[1], [0], [0], [1], [0, 0, 1, 1], [], []>} : vector<128x16xf32>, vector<16x32xf32>, vector<128x32xf32> -> vector<128x32xf32>
    %30 = vector.extract_strided_slice %29 {offsets = [0, 0], sizes = [128, 16], strides = [1, 1]} : vector<128x32xf32> to vector<128x16xf32>
    %31 = vector.extract_strided_slice %29 {offsets = [0, 16], sizes = [128, 16], strides = [1, 1]} : vector<128x32xf32> to vector<128x16xf32>
    %cst_15 = arith.constant dense<0.000000e+00> : vector<128x32xf32>
    %32 = tpu.matmul %28, %6, %cst_15 {dimension_numbers = #tpu.dot_dimension_numbers<[1], [0], [0], [1], [0, 0, 1, 1], [], []>} : vector<128x16xf32>, vector<16x32xf32>, vector<128x32xf32> -> vector<128x32xf32>
    %c0_16 = arith.constant 0 : index
    %c0_17 = arith.constant 0 : index
    %33 = vector.load %arg5[%c0_16, %c0_17] : memref<1x32xf32, #tpu.memory_space<vmem>>, vector<1x32xf32>
    %34 = vector.broadcast %33 : vector<1x32xf32> to vector<128x32xf32>
    %35 = arith.addf %32, %34 : vector<128x32xf32>
    %36 = vector.extract_strided_slice %4 {offsets = [1, 2, 0], sizes = [8, 16, 16], strides = [1, 1, 1]} : vector<10x18x16xf32> to vector<8x16x16xf32>
    %37 = vector.shape_cast %36 : vector<8x16x16xf32> to vector<128x16xf32>
    %cst_18 = arith.constant dense<0.000000e+00> : vector<128x32xf32>
    %38 = tpu.matmul %37, %5, %cst_18 {dimension_numbers = #tpu.dot_dimension_numbers<[1], [0], [0], [1], [0, 0, 1, 1], [], []>} : vector<128x16xf32>, vector<16x32xf32>, vector<128x32xf32> -> vector<128x32xf32>
    %39 = vector.extract_strided_slice %38 {offsets = [0, 0], sizes = [128, 16], strides = [1, 1]} : vector<128x32xf32> to vector<128x16xf32>
    %40 = vector.extract_strided_slice %38 {offsets = [0, 16], sizes = [128, 16], strides = [1, 1]} : vector<128x32xf32> to vector<128x16xf32>
    %41 = vector.extract_strided_slice %4 {offsets = [2, 0, 0], sizes = [8, 16, 16], strides = [1, 1, 1]} : vector<10x18x16xf32> to vector<8x16x16xf32>
    %42 = vector.shape_cast %41 : vector<8x16x16xf32> to vector<128x16xf32>
    %cst_19 = arith.constant dense<0.000000e+00> : vector<128x32xf32>
    %43 = tpu.matmul %42, %5, %cst_19 {dimension_numbers = #tpu.dot_dimension_numbers<[1], [0], [0], [1], [0, 0, 1, 1], [], []>} : vector<128x16xf32>, vector<16x32xf32>, vector<128x32xf32> -> vector<128x32xf32>
    %44 = vector.extract_strided_slice %43 {offsets = [0, 0], sizes = [128, 16], strides = [1, 1]} : vector<128x32xf32> to vector<128x16xf32>
    %45 = vector.extract_strided_slice %43 {offsets = [0, 16], sizes = [128, 16], strides = [1, 1]} : vector<128x32xf32> to vector<128x16xf32>
    %46 = vector.extract_strided_slice %4 {offsets = [2, 1, 0], sizes = [8, 16, 16], strides = [1, 1, 1]} : vector<10x18x16xf32> to vector<8x16x16xf32>
    %47 = vector.shape_cast %46 : vector<8x16x16xf32> to vector<128x16xf32>
    %cst_20 = arith.constant dense<0.000000e+00> : vector<128x32xf32>
    %48 = tpu.matmul %47, %5, %cst_20 {dimension_numbers = #tpu.dot_dimension_numbers<[1], [0], [0], [1], [0, 0, 1, 1], [], []>} : vector<128x16xf32>, vector<16x32xf32>, vector<128x32xf32> -> vector<128x32xf32>
    %49 = vector.extract_strided_slice %48 {offsets = [0, 0], sizes = [128, 16], strides = [1, 1]} : vector<128x32xf32> to vector<128x16xf32>
    %50 = vector.extract_strided_slice %48 {offsets = [0, 16], sizes = [128, 16], strides = [1, 1]} : vector<128x32xf32> to vector<128x16xf32>
    %51 = vector.extract_strided_slice %4 {offsets = [2, 2, 0], sizes = [8, 16, 16], strides = [1, 1, 1]} : vector<10x18x16xf32> to vector<8x16x16xf32>
    %52 = vector.shape_cast %51 : vector<8x16x16xf32> to vector<128x16xf32>
    %cst_21 = arith.constant dense<0.000000e+00> : vector<128x32xf32>
    %53 = tpu.matmul %52, %5, %cst_21 {dimension_numbers = #tpu.dot_dimension_numbers<[1], [0], [0], [1], [0, 0, 1, 1], [], []>} : vector<128x16xf32>, vector<16x32xf32>, vector<128x32xf32> -> vector<128x32xf32>
    %54 = vector.extract_strided_slice %53 {offsets = [0, 0], sizes = [128, 16], strides = [1, 1]} : vector<128x32xf32> to vector<128x16xf32>
    %55 = vector.extract_strided_slice %53 {offsets = [0, 16], sizes = [128, 16], strides = [1, 1]} : vector<128x32xf32> to vector<128x16xf32>
    %56 = tpu.concatenate %10, %15, %20, %25, %30, %39, %44, %49, %54 in 1 : vector<128x16xf32>, vector<128x16xf32>, vector<128x16xf32>, vector<128x16xf32>, vector<128x16xf32>, vector<128x16xf32>, vector<128x16xf32>, vector<128x16xf32>, vector<128x16xf32> -> vector<128x144xf32>
    %c0_22 = arith.constant 0 : index
    %c0_23 = arith.constant 0 : index
    %57 = vector.load %arg7[%c0_22, %c0_23] : memref<1x144xf32, #tpu.memory_space<vmem>>, vector<1x144xf32>
    %58 = vector.broadcast %57 : vector<1x144xf32> to vector<128x144xf32>
    %59 = arith.addf %56, %58 : vector<128x144xf32>
    %60 = tpu.concatenate %11, %16, %21, %26, %31, %40, %45, %50, %55 in 1 : vector<128x16xf32>, vector<128x16xf32>, vector<128x16xf32>, vector<128x16xf32>, vector<128x16xf32>, vector<128x16xf32>, vector<128x16xf32>, vector<128x16xf32>, vector<128x16xf32> -> vector<128x144xf32>
    %c0_24 = arith.constant 0 : index
    %c0_25 = arith.constant 0 : index
    %61 = vector.load %arg8[%c0_24, %c0_25] : memref<1x144xf32, #tpu.memory_space<vmem>>, vector<1x144xf32>
    %62 = vector.broadcast %61 : vector<1x144xf32> to vector<128x144xf32>
    %63 = arith.addf %60, %62 : vector<128x144xf32>
    %c0_26 = arith.constant 0 : index
    %c0_27 = arith.constant 0 : index
    %64 = vector.load %arg9[%c0_26, %c0_27] : memref<32x576xf32, #tpu.memory_space<vmem>>, vector<32x576xf32>
    %cst_28 = arith.constant dense<0.000000e+00> : vector<128x576xf32>
    %65 = tpu.matmul %35, %64, %cst_28 {dimension_numbers = #tpu.dot_dimension_numbers<[1], [0], [0], [1], [0, 0, 1, 1], [], []>} : vector<128x32xf32>, vector<32x576xf32>, vector<128x576xf32> -> vector<128x576xf32>
    %66 = tpu.concatenate %59, %59, %59, %59 in 1 : vector<128x144xf32>, vector<128x144xf32>, vector<128x144xf32>, vector<128x144xf32> -> vector<128x576xf32>
    %67 = arith.mulf %65, %66 : vector<128x576xf32>
    %c0_29 = arith.constant 0 : index
    %c0_30 = arith.constant 0 : index
    %68 = vector.load %arg10[%c0_29, %c0_30] : memref<576x72xf32, #tpu.memory_space<vmem>>, vector<576x72xf32>
    %cst_31 = arith.constant dense<0.000000e+00> : vector<128x72xf32>
    %69 = tpu.matmul %67, %68, %cst_31 {dimension_numbers = #tpu.dot_dimension_numbers<[1], [0], [0], [1], [0, 0, 1, 1], [], []>} : vector<128x576xf32>, vector<576x72xf32>, vector<128x72xf32> -> vector<128x72xf32>
    %cst_32 = arith.constant dense<0xFF800000> : vector<128xf32>
    %70 = vector.multi_reduction <maximumf>, %69, %cst_32 [1] : vector<128x72xf32> to vector<128xf32>
    %71 = vector.shape_cast %70 : vector<128xf32> to vector<128x1xf32>
    %72 = vector.broadcast %71 : vector<128x1xf32> to vector<128x72xf32>
    %73 = arith.subf %69, %72 : vector<128x72xf32>
    %74 = math.exp %73 : vector<128x72xf32>
    %c0_33 = arith.constant 0 : index
    %c0_34 = arith.constant 0 : index
    %75 = vector.load %arg11[%c0_33, %c0_34] : memref<72x4xf32, #tpu.memory_space<vmem>>, vector<72x4xf32>
    %cst_35 = arith.constant dense<0.000000e+00> : vector<128x4xf32>
    %76 = tpu.matmul %74, %75, %cst_35 {dimension_numbers = #tpu.dot_dimension_numbers<[1], [0], [0], [1], [0, 0, 1, 1], [], []>} : vector<128x72xf32>, vector<72x4xf32>, vector<128x4xf32> -> vector<128x4xf32>
    %77 = tpu.reciprocal %76 {approx = true} : vector<128x4xf32> -> vector<128x4xf32>
    %78 = arith.mulf %76, %77 : vector<128x4xf32>
    %cst_36 = arith.constant 2.000000e+00 : f32
    %79 = vector.broadcast %cst_36 : f32 to vector<128x4xf32>
    %80 = arith.subf %79, %78 : vector<128x4xf32>
    %81 = arith.mulf %77, %80 : vector<128x4xf32>
    %c0_37 = arith.constant 0 : index
    %c0_38 = arith.constant 0 : index
    %82 = vector.load %arg12[%c0_37, %c0_38] : memref<4x72xf32, #tpu.memory_space<vmem>>, vector<4x72xf32>
    %cst_39 = arith.constant dense<0.000000e+00> : vector<128x72xf32>
    %83 = tpu.matmul %81, %82, %cst_39 {dimension_numbers = #tpu.dot_dimension_numbers<[1], [0], [0], [1], [0, 0, 1, 1], [], []>} : vector<128x4xf32>, vector<4x72xf32>, vector<128x72xf32> -> vector<128x72xf32>
    %84 = arith.mulf %74, %83 : vector<128x72xf32>
    %c0_40 = arith.constant 0 : index
    %c0_41 = arith.constant 0 : index
    %85 = vector.load %arg13[%c0_40, %c0_41] : memref<72x36xf32, #tpu.memory_space<vmem>>, vector<72x36xf32>
    %cst_42 = arith.constant dense<0.000000e+00> : vector<128x36xf32>
    %86 = tpu.matmul %84, %85, %cst_42 {dimension_numbers = #tpu.dot_dimension_numbers<[1], [0], [0], [1], [0, 0, 1, 1], [], []>} : vector<128x72xf32>, vector<72x36xf32>, vector<128x36xf32> -> vector<128x36xf32>
    %c0_43 = arith.constant 0 : index
    %c0_44 = arith.constant 0 : index
    %87 = vector.load %arg14[%c0_43, %c0_44] : memref<36x288xf32, #tpu.memory_space<vmem>>, vector<36x288xf32>
    %cst_45 = arith.constant dense<0.000000e+00> : vector<128x288xf32>
    %88 = tpu.matmul %86, %87, %cst_45 {dimension_numbers = #tpu.dot_dimension_numbers<[1], [0], [0], [1], [0, 0, 1, 1], [], []>} : vector<128x36xf32>, vector<36x288xf32>, vector<128x288xf32> -> vector<128x288xf32>
    %89 = tpu.concatenate %63, %63 in 1 : vector<128x144xf32>, vector<128x144xf32> -> vector<128x288xf32>
    %90 = arith.mulf %88, %89 : vector<128x288xf32>
    %c0_46 = arith.constant 0 : index
    %c0_47 = arith.constant 0 : index
    %91 = vector.load %arg15[%c0_46, %c0_47] : memref<288x16xf32, #tpu.memory_space<vmem>>, vector<288x16xf32>
    %cst_48 = arith.constant dense<0.000000e+00> : vector<128x16xf32>
    %92 = tpu.matmul %90, %91, %cst_48 {dimension_numbers = #tpu.dot_dimension_numbers<[1], [0], [0], [1], [0, 0, 1, 1], [], []>} : vector<128x288xf32>, vector<288x16xf32>, vector<128x16xf32> -> vector<128x16xf32>
    %c0_49 = arith.constant 0 : index
    %c0_50 = arith.constant 0 : index
    %c0_51 = arith.constant 0 : index
    %93 = vector.load %arg16[%c0_49, %c0_50, %c0_51] : memref<1x128x16xf32, #tpu.memory_space<vmem>>, vector<1x128x16xf32>
    %94 = vector.shape_cast %93 : vector<1x128x16xf32> to vector<128x16xf32>
    %95 = vector.shape_cast %92 : vector<128x16xf32> to vector<1x128x16xf32>
    tpu.vector_store %arg16[%c0_49, %c0_50, %c0_51], %95 {strides = array<i32>} : memref<1x128x16xf32, #tpu.memory_space<vmem>>, vector<1x128x16xf32>,
    return
  }
  func.func @transform_0(%arg0: i32, %arg1: i32) -> (i32, i32, i32, i32) {
    %c2_i32 = arith.constant 2 : i32
    %0 = arith.muli %arg0, %c2_i32 : i32
    %1 = arith.addi %0, %arg1 : i32
    %c0_i32 = arith.constant 0 : i32
    %c0_i32_0 = arith.constant 0 : i32
    %c0_i32_1 = arith.constant 0 : i32
    %c0_i32_2 = arith.constant 0 : i32
    return %1, %c0_i32, %c0_i32_0, %c0_i32_1 : i32, i32, i32, i32
  }
  func.func @transform_1(%arg0: i32, %arg1: i32) -> (i32, i32, i32, i32) {
    %c2_i32 = arith.constant 2 : i32
    %0 = arith.muli %arg0, %c2_i32 : i32
    %1 = arith.addi %0, %arg1 : i32
    %c0_i32 = arith.constant 0 : i32
    %c0_i32_0 = arith.constant 0 : i32
    %c0_i32_1 = arith.constant 0 : i32
    %c0_i32_2 = arith.constant 0 : i32
    return %1, %c0_i32, %c0_i32_0, %c0_i32_1 : i32, i32, i32, i32
  }
  func.func @transform_2(%arg0: i32, %arg1: i32) -> (i32, i32) {
    %c0_i32 = arith.constant 0 : i32
    %c0_i32_0 = arith.constant 0 : i32
    %c0_i32_1 = arith.constant 0 : i32
    return %c0_i32, %c0_i32_0 : i32, i32
  }
  func.func @transform_3(%arg0: i32, %arg1: i32) -> (i32, i32) {
    %c0_i32 = arith.constant 0 : i32
    %c0_i32_0 = arith.constant 0 : i32
    %c0_i32_1 = arith.constant 0 : i32
    return %c0_i32, %c0_i32_0 : i32, i32
  }
  func.func @transform_4(%arg0: i32, %arg1: i32) -> (i32, i32) {
    %c0_i32 = arith.constant 0 : i32
    %c0_i32_0 = arith.constant 0 : i32
    %c0_i32_1 = arith.constant 0 : i32
    return %c0_i32, %c0_i32_0 : i32, i32
  }
  func.func @transform_5(%arg0: i32, %arg1: i32) -> (i32, i32) {
    %c0_i32 = arith.constant 0 : i32
    %c0_i32_0 = arith.constant 0 : i32
    %c0_i32_1 = arith.constant 0 : i32
    return %c0_i32, %c0_i32_0 : i32, i32
  }
  func.func @transform_6(%arg0: i32, %arg1: i32) -> (i32, i32) {
    %c0_i32 = arith.constant 0 : i32
    %c0_i32_0 = arith.constant 0 : i32
    %c0_i32_1 = arith.constant 0 : i32
    return %c0_i32, %c0_i32_0 : i32, i32
  }
  func.func @transform_7(%arg0: i32, %arg1: i32) -> (i32, i32) {
    %c0_i32 = arith.constant 0 : i32
    %c0_i32_0 = arith.constant 0 : i32
    %c0_i32_1 = arith.constant 0 : i32
    return %c0_i32, %c0_i32_0 : i32, i32
  }
  func.func @transform_8(%arg0: i32, %arg1: i32) -> (i32, i32) {
    %c0_i32 = arith.constant 0 : i32
    %c0_i32_0 = arith.constant 0 : i32
    %c0_i32_1 = arith.constant 0 : i32
    return %c0_i32, %c0_i32_0 : i32, i32
  }
  func.func @transform_9(%arg0: i32, %arg1: i32) -> (i32, i32) {
    %c0_i32 = arith.constant 0 : i32
    %c0_i32_0 = arith.constant 0 : i32
    %c0_i32_1 = arith.constant 0 : i32
    return %c0_i32, %c0_i32_0 : i32, i32
  }
  func.func @transform_10(%arg0: i32, %arg1: i32) -> (i32, i32) {
    %c0_i32 = arith.constant 0 : i32
    %c0_i32_0 = arith.constant 0 : i32
    %c0_i32_1 = arith.constant 0 : i32
    return %c0_i32, %c0_i32_0 : i32, i32
  }
  func.func @transform_11(%arg0: i32, %arg1: i32) -> (i32, i32) {
    %c0_i32 = arith.constant 0 : i32
    %c0_i32_0 = arith.constant 0 : i32
    %c0_i32_1 = arith.constant 0 : i32
    return %c0_i32, %c0_i32_0 : i32, i32
  }
  func.func @transform_12(%arg0: i32, %arg1: i32) -> (i32, i32) {
    %c0_i32 = arith.constant 0 : i32
    %c0_i32_0 = arith.constant 0 : i32
    %c0_i32_1 = arith.constant 0 : i32
    return %c0_i32, %c0_i32_0 : i32, i32
  }
  func.func @transform_13(%arg0: i32, %arg1: i32) -> (i32, i32) {
    %c0_i32 = arith.constant 0 : i32
    %c0_i32_0 = arith.constant 0 : i32
    %c0_i32_1 = arith.constant 0 : i32
    return %c0_i32, %c0_i32_0 : i32, i32
  }
  func.func @transform_14(%arg0: i32, %arg1: i32) -> (i32, i32, i32) {
    %c0_i32 = arith.constant 0 : i32
    %c0_i32_0 = arith.constant 0 : i32
    return %arg0, %arg1, %c0_i32 : i32, i32, i32
  }
}

</mosaic_0001>

<llo_original>
// kernel: tpu_custom_call.1
$region0: #{tpu_custom_call.1}
  #allocation0 [shape = 'u32[]', space=smem, size = 0x4, offset = 0x4, fixed_abs, tag = 'smem constant byte address 0x4 - core index']
  #allocation1 [shape = 'u32[72,128]{1,0:T(1,128)}', space=vmem, size = 0x9000, scoped, tag = 'internal scratch']
  %s0 = inlined_call_operand.vmem [shape: f32[4,8,18,16], index: 0, kind: input, shape index: {}]
  %s1 = inlined_call_operand.vmem [shape: f32[4,2,18,16], index: 1, kind: input, shape index: {}]
  %s2 = inlined_call_operand.vmem [shape: f32[16,32], index: 2, kind: input, shape index: {}]
  %s3 = inlined_call_operand.vmem [shape: f32[1,32], index: 3, kind: input, shape index: {}]
  %s4 = inlined_call_operand.vmem [shape: f32[16,32], index: 4, kind: input, shape index: {}]
  %s5 = inlined_call_operand.vmem [shape: f32[1,144], index: 5, kind: input, shape index: {}]
  %s6 = inlined_call_operand.vmem [shape: f32[1,144], index: 6, kind: input, shape index: {}]
  %s7 = inlined_call_operand.vmem [shape: f32[32,576], index: 7, kind: input, shape index: {}]
  %s8 = inlined_call_operand.vmem [shape: f32[576,72], index: 8, kind: input, shape index: {}]
  %s9 = inlined_call_operand.vmem [shape: f32[72,4], index: 9, kind: input, shape index: {}]
  %s10 = inlined_call_operand.vmem [shape: f32[4,72], index: 10, kind: input, shape index: {}]
  %s11 = inlined_call_operand.vmem [shape: f32[72,36], index: 11, kind: input, shape index: {}]
  %s12 = inlined_call_operand.vmem [shape: f32[36,288], index: 12, kind: input, shape index: {}]
  %s13 = inlined_call_operand.vmem [shape: f32[288,16], index: 13, kind: input, shape index: {}]
  %s14 = inlined_call_operand.vmem [shape: f32[2,256,16], index: 14, kind: output, shape index: {}]
  %s15 = sld [smem:[#allocation0]]
  $region89: #{tpu_custom_call.1} parent=0
    _
  %s17 = ssub.s32 1, %s15
  %s18 = scalar_select 0, %s17, %s15
  loop: start=0, step=1, limit=6
  $region2: #{tpu_custom_call.1} parent=0 // loop_pre_header
    _
  $region3: #{tpu_custom_call.1} parent=0 // loop_header
    %s20 = sphi 0, %s24
    %p21 = scmp.ge.s32.totalorder %s20, 6
    %s27 = sphi 0, %s39
    %s28 = sphi 0, %s35
    %s29 = sphi 0, %s27
    %s30 = sphi 0, %s28
    %s31 = sphi 0, %s29
    %s32 = sphi 0, %s30
    %s46 = sphi 0, %s48
    %s49 = sphi 0, %s46
    %s50 = sphi 0, %s49
    %s66 = sphi 0, %s50
    %s76 = sphi 0, %s78
    %s79 = sphi 0, %s76
    %s80 = sphi 0, %s79
    %s96 = sphi 0, %s80
    %s100 = sphi 0, %s100
    %s102 = sphi 0, %s100
    %s103 = sphi 0, %s102
    %s117 = sphi 0, %s103
    %s121 = sphi 0, %s121
    %s123 = sphi 0, %s121
    %s124 = sphi 0, %s123
    %s138 = sphi 0, %s124
    %s142 = sphi 0, %s142
    %s144 = sphi 0, %s142
    %s145 = sphi 0, %s144
    %s159 = sphi 0, %s145
    %s163 = sphi 0, %s163
    %s165 = sphi 0, %s163
    %s166 = sphi 0, %s165
    %s180 = sphi 0, %s166
    %s184 = sphi 0, %s184
    %s186 = sphi 0, %s184
    %s187 = sphi 0, %s186
    %s201 = sphi 0, %s187
    %s205 = sphi 0, %s205
    %s207 = sphi 0, %s205
    %s208 = sphi 0, %s207
    %s222 = sphi 0, %s208
    %s226 = sphi 0, %s226
    %s228 = sphi 0, %s226
    %s229 = sphi 0, %s228
    %s243 = sphi 0, %s229
    %s247 = sphi 0, %s247
    %s249 = sphi 0, %s247
    %s250 = sphi 0, %s249
    %s264 = sphi 0, %s250
    %s268 = sphi 0, %s268
    %s270 = sphi 0, %s268
    %s271 = sphi 0, %s270
    %s285 = sphi 0, %s271
    %s289 = sphi 0, %s289
    %s291 = sphi 0, %s289
    %s292 = sphi 0, %s291
    %s306 = sphi 0, %s292
    %s310 = sphi 0, %s310
    %s312 = sphi 0, %s310
    %s313 = sphi 0, %s312
    %s327 = sphi 0, %s313
    %s331 = sphi 0, %s331
    %s333 = sphi 0, %s331
    %s334 = sphi 0, %s333
    %s348 = sphi 0, %s334
    %s356 = sphi 0, %s358
    %s359 = sphi 0, %s356
    %s360 = sphi 0, %s359
    %s376 = sphi 0, %s360
  $region4: #{tpu_custom_call.1} parent=0 // loop_header_branch
    %23 = sbr.rel (%p21) target = $region8
  $region5: #{tpu_custom_call.1} parent=0 // loop_body
    %s25 = ssub.s32 %s20, 1
    %s26 = ssub.s32 %s20, 2
    %s33 = sadd.s32 1, %s28
    %p34 = scmp.ge.s32.totalorder %s33, 2
    %s35 = scalar_select %p34, 0, %s33
    %s36 = sadd.s32 1, %s27
    %s37 = scalar_select %p34, %s36, %s27
    %p38 = scmp.ge.s32.totalorder %s37, 2
    %s39 = scalar_select %p38, 0, %s37
    %s40 = smul.u32 %s27, 2
    %s41 = sadd.s32 %s40, %s28
    %s42 = smul.u32 %s39, 2
    %s43 = sadd.s32 %s42, %s35
    %s44 = ssub.s32 %s41, %s43
    %p45 = scmp.eq.s32.totalorder %s44, 0
    %s47 = sadd.s32 %s46, 1
    %s48 = scalar_select %p45, %s46, %s47
    %p51 = pneg %p45
    %p52 = scmp.eq.s32.totalorder %s20, 3
    %p53 = por %p51, %p52
    %p54 = scmp.ne.s32.totalorder %s46, %s49
    %p55 = scmp.eq.s32.totalorder %s20, 0
    %p56 = por %p54, %p55
    %p57 = scmp.ne.s32.totalorder %s46, %s49
    %p58 = scmp.eq.s32.totalorder %s25, 3
    %p59 = por %p57, %p58
    %p60 = scmp.ne.s32.totalorder %s49, %s50
    %p61 = scmp.eq.s32.totalorder %s25, 0
    %p62 = por %p60, %p61
    %p63 = scmp.ne.s32.totalorder %s49, %s50
    %p64 = scmp.eq.s32.totalorder %s26, 3
    %p65 = por %p63, %p64
    %p67 = scmp.ne.s32.totalorder %s50, %s66
    %p68 = scmp.eq.s32.totalorder %s26, 0
    %p69 = por %p67, %p68
    %s70 = smul.u32 %s27, 2
    %s71 = sadd.s32 %s70, %s28
    %s72 = smul.u32 %s39, 2
    %s73 = sadd.s32 %s72, %s35
    %s74 = ssub.s32 %s71, %s73
    %p75 = scmp.eq.s32.totalorder %s74, 0
    %s77 = sadd.s32 %s76, 1
    %s78 = scalar_select %p75, %s76, %s77
    %p81 = pneg %p75
    %p82 = scmp.eq.s32.totalorder %s20, 3
    %p83 = por %p81, %p82
    %p84 = scmp.ne.s32.totalorder %s76, %s79
    %p85 = scmp.eq.s32.totalorder %s20, 0
    %p86 = por %p84, %p85
    %p87 = scmp.ne.s32.totalorder %s76, %s79
    %p88 = scmp.eq.s32.totalorder %s25, 3
    %p89 = por %p87, %p88
    %p90 = scmp.ne.s32.totalorder %s79, %s80
    %p91 = scmp.eq.s32.totalorder %s25, 0
    %p92 = por %p90, %p91
    %p93 = scmp.ne.s32.totalorder %s79, %s80
    %p94 = scmp.eq.s32.totalorder %s26, 3
    %p95 = por %p93, %p94
    %p97 = scmp.ne.s32.totalorder %s80, %s96
    %p98 = scmp.eq.s32.totalorder %s26, 0
    %p99 = por %p97, %p98
    %s101 = sadd.s32 %s100, 1
    %p104 = scmp.eq.s32.totalorder %s20, 3
    %p105 = scmp.ne.s32.totalorder %s100, %s102
    %p106 = scmp.eq.s32.totalorder %s20, 0
    %p107 = por %p105, %p106
    %p108 = scmp.ne.s32.totalorder %s100, %s102
    %p109 = scmp.eq.s32.totalorder %s25, 3
    %p110 = por %p108, %p109
    %p111 = scmp.ne.s32.totalorder %s102, %s103
    %p112 = scmp.eq.s32.totalorder %s25, 0
    %p113 = por %p111, %p112
    %p114 = scmp.ne.s32.totalorder %s102, %s103
    %p115 = scmp.eq.s32.totalorder %s26, 3
    %p116 = por %p114, %p115
    %p118 = scmp.ne.s32.totalorder %s103, %s117
    %p119 = scmp.eq.s32.totalorder %s26, 0
    %p120 = por %p118, %p119
    %s122 = sadd.s32 %s121, 1
    %p125 = scmp.eq.s32.totalorder %s20, 3
    %p126 = scmp.ne.s32.totalorder %s121, %s123
    %p127 = scmp.eq.s32.totalorder %s20, 0
    %p128 = por %p126, %p127
    %p129 = scmp.ne.s32.totalorder %s121, %s123
    %p130 = scmp.eq.s32.totalorder %s25, 3
    %p131 = por %p129, %p130
    %p132 = scmp.ne.s32.totalorder %s123, %s124
    %p133 = scmp.eq.s32.totalorder %s25, 0
    %p134 = por %p132, %p133
    %p135 = scmp.ne.s32.totalorder %s123, %s124
    %p136 = scmp.eq.s32.totalorder %s26, 3
    %p137 = por %p135, %p136
    %p139 = scmp.ne.s32.totalorder %s124, %s138
    %p140 = scmp.eq.s32.totalorder %s26, 0
    %p141 = por %p139, %p140
    %s143 = sadd.s32 %s142, 1
    %p146 = scmp.eq.s32.totalorder %s20, 3
    %p147 = scmp.ne.s32.totalorder %s142, %s144
    %p148 = scmp.eq.s32.totalorder %s20, 0
    %p149 = por %p147, %p148
    %p150 = scmp.ne.s32.totalorder %s142, %s144
    %p151 = scmp.eq.s32.totalorder %s25, 3
    %p152 = por %p150, %p151
    %p153 = scmp.ne.s32.totalorder %s144, %s145
    %p154 = scmp.eq.s32.totalorder %s25, 0
    %p155 = por %p153, %p154
    %p156 = scmp.ne.s32.totalorder %s144, %s145
    %p157 = scmp.eq.s32.totalorder %s26, 3
    %p158 = por %p156, %p157
    %p160 = scmp.ne.s32.totalorder %s145, %s159
    %p161 = scmp.eq.s32.totalorder %s26, 0
    %p162 = por %p160, %p161
    %s164 = sadd.s32 %s163, 1
    %p167 = scmp.eq.s32.totalorder %s20, 3
    %p168 = scmp.ne.s32.totalorder %s163, %s165
    %p169 = scmp.eq.s32.totalorder %s20, 0
    %p170 = por %p168, %p169
    %p171 = scmp.ne.s32.totalorder %s163, %s165
    %p172 = scmp.eq.s32.totalorder %s25, 3
    %p173 = por %p171, %p172
    %p174 = scmp.ne.s32.totalorder %s165, %s166
    %p175 = scmp.eq.s32.totalorder %s25, 0
    %p176 = por %p174, %p175
    %p177 = scmp.ne.s32.totalorder %s165, %s166
    %p178 = scmp.eq.s32.totalorder %s26, 3
    %p179 = por %p177, %p178
    %p181 = scmp.ne.s32.totalorder %s166, %s180
    %p182 = scmp.eq.s32.totalorder %s26, 0
    %p183 = por %p181, %p182
    %s185 = sadd.s32 %s184, 1
    %p188 = scmp.eq.s32.totalorder %s20, 3
    %p189 = scmp.ne.s32.totalorder %s184, %s186
    %p190 = scmp.eq.s32.totalorder %s20, 0
    %p191 = por %p189, %p190
    %p192 = scmp.ne.s32.totalorder %s184, %s186
    %p193 = scmp.eq.s32.totalorder %s25, 3
    %p194 = por %p192, %p193
    %p195 = scmp.ne.s32.totalorder %s186, %s187
    %p196 = scmp.eq.s32.totalorder %s25, 0
    %p197 = por %p195, %p196
    %p198 = scmp.ne.s32.totalorder %s186, %s187
    %p199 = scmp.eq.s32.totalorder %s26, 3
    %p200 = por %p198, %p199
    %p202 = scmp.ne.s32.totalorder %s187, %s201
    %p203 = scmp.eq.s32.totalorder %s26, 0
    %p204 = por %p202, %p203
    %s206 = sadd.s32 %s205, 1
    %p209 = scmp.eq.s32.totalorder %s20, 3
    %p210 = scmp.ne.s32.totalorder %s205, %s207
    %p211 = scmp.eq.s32.totalorder %s20, 0
    %p212 = por %p210, %p211
    %p213 = scmp.ne.s32.totalorder %s205, %s207
    %p214 = scmp.eq.s32.totalorder %s25, 3
    %p215 = por %p213, %p214
    %p216 = scmp.ne.s32.totalorder %s207, %s208
    %p217 = scmp.eq.s32.totalorder %s25, 0
    %p218 = por %p216, %p217
    %p219 = scmp.ne.s32.totalorder %s207, %s208
    %p220 = scmp.eq.s32.totalorder %s26, 3
    %p221 = por %p219, %p220
    %p223 = scmp.ne.s32.totalorder %s208, %s222
    %p224 = scmp.eq.s32.totalorder %s26, 0
    %p225 = por %p223, %p224
    %s227 = sadd.s32 %s226, 1
    %p230 = scmp.eq.s32.totalorder %s20, 3
    %p231 = scmp.ne.s32.totalorder %s226, %s228
    %p232 = scmp.eq.s32.totalorder %s20, 0
    %p233 = por %p231, %p232
    %p234 = scmp.ne.s32.totalorder %s226, %s228
    %p235 = scmp.eq.s32.totalorder %s25, 3
    %p236 = por %p234, %p235
    %p237 = scmp.ne.s32.totalorder %s228, %s229
    %p238 = scmp.eq.s32.totalorder %s25, 0
    %p239 = por %p237, %p238
    %p240 = scmp.ne.s32.totalorder %s228, %s229
    %p241 = scmp.eq.s32.totalorder %s26, 3
    %p242 = por %p240, %p241
    %p244 = scmp.ne.s32.totalorder %s229, %s243
    %p245 = scmp.eq.s32.totalorder %s26, 0
    %p246 = por %p244, %p245
    %s248 = sadd.s32 %s247, 1
    %p251 = scmp.eq.s32.totalorder %s20, 3
    %p252 = scmp.ne.s32.totalorder %s247, %s249
    %p253 = scmp.eq.s32.totalorder %s20, 0
    %p254 = por %p252, %p253
    %p255 = scmp.ne.s32.totalorder %s247, %s249
    %p256 = scmp.eq.s32.totalorder %s25, 3
    %p257 = por %p255, %p256
    %p258 = scmp.ne.s32.totalorder %s249, %s250
    %p259 = scmp.eq.s32.totalorder %s25, 0
    %p260 = por %p258, %p259
    %p261 = scmp.ne.s32.totalorder %s249, %s250
    %p262 = scmp.eq.s32.totalorder %s26, 3
    %p263 = por %p261, %p262
    %p265 = scmp.ne.s32.totalorder %s250, %s264
    %p266 = scmp.eq.s32.totalorder %s26, 0
    %p267 = por %p265, %p266
    %s269 = sadd.s32 %s268, 1
    %p272 = scmp.eq.s32.totalorder %s20, 3
    %p273 = scmp.ne.s32.totalorder %s268, %s270
    %p274 = scmp.eq.s32.totalorder %s20, 0
    %p275 = por %p273, %p274
    %p276 = scmp.ne.s32.totalorder %s268, %s270
    %p277 = scmp.eq.s32.totalorder %s25, 3
    %p278 = por %p276, %p277
    %p279 = scmp.ne.s32.totalorder %s270, %s271
    %p280 = scmp.eq.s32.totalorder %s25, 0
    %p281 = por %p279, %p280
    %p282 = scmp.ne.s32.totalorder %s270, %s271
    %p283 = scmp.eq.s32.totalorder %s26, 3
    %p284 = por %p282, %p283
    %p286 = scmp.ne.s32.totalorder %s271, %s285
    %p287 = scmp.eq.s32.totalorder %s26, 0
    %p288 = por %p286, %p287
    %s290 = sadd.s32 %s289, 1
    %p293 = scmp.eq.s32.totalorder %s20, 3
    %p294 = scmp.ne.s32.totalorder %s289, %s291
    %p295 = scmp.eq.s32.totalorder %s20, 0
    %p296 = por %p294, %p295
    %p297 = scmp.ne.s32.totalorder %s289, %s291
    %p298 = scmp.eq.s32.totalorder %s25, 3
    %p299 = por %p297, %p298
    %p300 = scmp.ne.s32.totalorder %s291, %s292
    %p301 = scmp.eq.s32.totalorder %s25, 0
    %p302 = por %p300, %p301
    %p303 = scmp.ne.s32.totalorder %s291, %s292
    %p304 = scmp.eq.s32.totalorder %s26, 3
    %p305 = por %p303, %p304
    %p307 = scmp.ne.s32.totalorder %s292, %s306
    %p308 = scmp.eq.s32.totalorder %s26, 0
    %p309 = por %p307, %p308
    %s311 = sadd.s32 %s310, 1
    %p314 = scmp.eq.s32.totalorder %s20, 3
    %p315 = scmp.ne.s32.totalorder %s310, %s312
    %p316 = scmp.eq.s32.totalorder %s20, 0
    %p317 = por %p315, %p316
    %p318 = scmp.ne.s32.totalorder %s310, %s312
    %p319 = scmp.eq.s32.totalorder %s25, 3
    %p320 = por %p318, %p319
    %p321 = scmp.ne.s32.totalorder %s312, %s313
    %p322 = scmp.eq.s32.totalorder %s25, 0
    %p323 = por %p321, %p322
    %p324 = scmp.ne.s32.totalorder %s312, %s313
    %p325 = scmp.eq.s32.totalorder %s26, 3
    %p326 = por %p324, %p325
    %p328 = scmp.ne.s32.totalorder %s313, %s327
    %p329 = scmp.eq.s32.totalorder %s26, 0
    %p330 = por %p328, %p329
    %s332 = sadd.s32 %s331, 1
    %p335 = scmp.eq.s32.totalorder %s20, 3
    %p336 = scmp.ne.s32.totalorder %s331, %s333
    %p337 = scmp.eq.s32.totalorder %s20, 0
    %p338 = por %p336, %p337
    %p339 = scmp.ne.s32.totalorder %s331, %s333
    %p340 = scmp.eq.s32.totalorder %s25, 3
    %p341 = por %p339, %p340
    %p342 = scmp.ne.s32.totalorder %s333, %s334
    %p343 = scmp.eq.s32.totalorder %s25, 0
    %p344 = por %p342, %p343
    %p345 = scmp.ne.s32.totalorder %s333, %s334
    %p346 = scmp.eq.s32.totalorder %s26, 3
    %p347 = por %p345, %p346
    %p349 = scmp.ne.s32.totalorder %s334, %s348
    %p350 = scmp.eq.s32.totalorder %s26, 0
    %p351 = por %p349, %p350
    %s352 = ssub.s32 %s27, %s39
    %s353 = ssub.s32 %s28, %s35
    %s354 = sor.u32 %s352, %s353
    %p355 = scmp.eq.s32.totalorder %s354, 0
    %s357 = sadd.s32 %s356, 1
    %s358 = scalar_select %p355, %s356, %s357
    %p361 = pneg %p355
    %p362 = scmp.eq.s32.totalorder %s20, 3
    %p363 = por %p361, %p362
    %p364 = scmp.ne.s32.totalorder %s356, %s359
    %p365 = scmp.eq.s32.totalorder %s20, 0
    %p366 = por %p364, %p365
    %p367 = scmp.ne.s32.totalorder %s356, %s359
    %p368 = scmp.eq.s32.totalorder %s25, 3
    %p369 = por %p367, %p368
    %p370 = scmp.ne.s32.totalorder %s359, %s360
    %p371 = scmp.eq.s32.totalorder %s25, 0
    %p372 = por %p370, %p371
    %p373 = scmp.ne.s32.totalorder %s359, %s360
    %p374 = scmp.eq.s32.totalorder %s26, 3
    %p375 = por %p373, %p374
    %p377 = scmp.ne.s32.totalorder %s360, %s376
    %p378 = scmp.eq.s32.totalorder %s26, 0
    %p379 = por %p377, %p378
    %p380 = scmp.le.s32.totalorder 1, %s20
    %p381 = scmp.lt.s32.totalorder %s20, 5
    %p382 = pnand %p380, %p381
    %p383 = pneg %p382
    // Predicated region
    $region9: #{tpu_custom_call.1} parent=5 // pred_check
      _
    $region10: #{tpu_custom_call.1} parent=5 // pred_check_branch
      %385 = sbr.rel (%p382) target = $region12
    $region11: #{tpu_custom_call.1} parent=5 // pred_region
      %s386 = ssub.s32 %s20, 1
      // Predicated region
      $region13: #{tpu_custom_call.1} parent=11 // pred_check
        %p387 = pneg %p113
      $region14: #{tpu_custom_call.1} parent=11 // pred_check_branch
        %389 = sbr.rel (%p387) target = $region16
      $region15: #{tpu_custom_call.1} parent=11 // pred_region
        _
      $region16: #{tpu_custom_call.1} parent=11 // pred_fallthru
        _
      // Predicated region
      $region17: #{tpu_custom_call.1} parent=11 // pred_check
        %p390 = pneg %p134
      $region18: #{tpu_custom_call.1} parent=11 // pred_check_branch
        %392 = sbr.rel (%p390) target = $region20
      $region19: #{tpu_custom_call.1} parent=11 // pred_region
        _
      $region20: #{tpu_custom_call.1} parent=11 // pred_fallthru
        _
      // Predicated region
      $region21: #{tpu_custom_call.1} parent=11 // pred_check
        %p393 = pneg %p155
      $region22: #{tpu_custom_call.1} parent=11 // pred_check_branch
        %395 = sbr.rel (%p393) target = $region24
      $region23: #{tpu_custom_call.1} parent=11 // pred_region
        _
      $region24: #{tpu_custom_call.1} parent=11 // pred_fallthru
        _
      // Predicated region
      $region25: #{tpu_custom_call.1} parent=11 // pred_check
        %p396 = pneg %p176
      $region26: #{tpu_custom_call.1} parent=11 // pred_check_branch
        %398 = sbr.rel (%p396) target = $region28
      $region27: #{tpu_custom_call.1} parent=11 // pred_region
        _
      $region28: #{tpu_custom_call.1} parent=11 // pred_fallthru
        _
      // Predicated region
      $region29: #{tpu_custom_call.1} parent=11 // pred_check
        %p399 = pneg %p197
      $region30: #{tpu_custom_call.1} parent=11 // pred_check_branch
        %401 = sbr.rel (%p399) target = $region32
      $region31: #{tpu_custom_call.1} parent=11 // pred_region
        _
      $region32: #{tpu_custom_call.1} parent=11 // pred_fallthru
        _
      // Predicated region
      $region33: #{tpu_custom_call.1} parent=11 // pred_check
        %p402 = pneg %p218
      $region34: #{tpu_custom_call.1} parent=11 // pred_check_branch
        %404 = sbr.rel (%p402) target = $region36
      $region35: #{tpu_custom_call.1} parent=11 // pred_region
        _
      $region36: #{tpu_custom_call.1} parent=11 // pred_fallthru
        _
      // Predicated region
      $region37: #{tpu_custom_call.1} parent=11 // pred_check
        %p405 = pneg %p239
      $region38: #{tpu_custom_call.1} parent=11 // pred_check_branch
        %407 = sbr.rel (%p405) target = $region40
      $region39: #{tpu_custom_call.1} parent=11 // pred_region
        _
      $region40: #{tpu_custom_call.1} parent=11 // pred_fallthru
        _
      // Predicated region
      $region41: #{tpu_custom_call.1} parent=11 // pred_check
        %p408 = pneg %p260
      $region42: #{tpu_custom_call.1} parent=11 // pred_check_branch
        %410 = sbr.rel (%p408) target = $region44
      $region43: #{tpu_custom_call.1} parent=11 // pred_region
        _
      $region44: #{tpu_custom_call.1} parent=11 // pred_fallthru
        _
      // Predicated region
      $region45: #{tpu_custom_call.1} parent=11 // pred_check
        %p411 = pneg %p281
      $region46: #{tpu_custom_call.1} parent=11 // pred_check_branch
        %413 = sbr.rel (%p411) target = $region48
      $region47: #{tpu_custom_call.1} parent=11 // pred_region
        _
      $region48: #{tpu_custom_call.1} parent=11 // pred_fallthru
        _
      // Predicated region
      $region49: #{tpu_custom_call.1} parent=11 // pred_check
        %p414 = pneg %p302
      $region50: #{tpu_custom_call.1} parent=11 // pred_check_branch
        %416 = sbr.rel (%p414) target = $region52
      $region51: #{tpu_custom_call.1} parent=11 // pred_region
        _
      $region52: #{tpu_custom_call.1} parent=11 // pred_fallthru
        _
      // Predicated region
      $region53: #{tpu_custom_call.1} parent=11 // pred_check
        %p417 = pneg %p323
      $region54: #{tpu_custom_call.1} parent=11 // pred_check_branch
        %419 = sbr.rel (%p417) target = $region56
      $region55: #{tpu_custom_call.1} parent=11 // pred_region
        _
      $region56: #{tpu_custom_call.1} parent=11 // pred_fallthru
        _
      // Predicated region
      $region57: #{tpu_custom_call.1} parent=11 // pred_check
        %p420 = pneg %p344
      $region58: #{tpu_custom_call.1} parent=11 // pred_check_branch
        %422 = sbr.rel (%p420) target = $region60
      $region59: #{tpu_custom_call.1} parent=11 // pred_region
        _
      $region60: #{tpu_custom_call.1} parent=11 // pred_fallthru
        _
    $region12: #{tpu_custom_call.1} parent=5 // pred_fallthru
      _
    %p423 = scmp.lt.s32.totalorder %s20, 4
    // Predicated region
    $region61: #{tpu_custom_call.1} parent=5 // pred_check
      %p424 = pneg %p423
    $region62: #{tpu_custom_call.1} parent=5 // pred_check_branch
      %426 = sbr.rel (%p424) target = $region64
    $region63: #{tpu_custom_call.1} parent=5 // pred_region
      // Predicated region
      $region65: #{tpu_custom_call.1} parent=63 // pred_check
        %p427 = pneg %p56
      $region66: #{tpu_custom_call.1} parent=63 // pred_check_branch
        %429 = sbr.rel (%p427) target = $region68
      $region67: #{tpu_custom_call.1} parent=63 // pred_region
        %s430 = smul.u32 %s27, 2
        %s431 = sadd.s32 %s430, %s28
        %p432 = scmp.lt.s32.totalorder %s431, 3
        %s433 = scalar_select %p432, %s431, 3
        %s434 = smul.addr %s433, 24
        %s435 = smul.addr %s434, 8
        %s436 = scalar_lea.vmem %s0, %s435
        %s437 = smul.u32 %s27, 2
        %s438 = sadd.s32 %s437, %s28
      $region68: #{tpu_custom_call.1} parent=63 // pred_fallthru
        _
      // Predicated region
      $region69: #{tpu_custom_call.1} parent=63 // pred_check
        %p439 = pneg %p86
      $region70: #{tpu_custom_call.1} parent=63 // pred_check_branch
        %441 = sbr.rel (%p439) target = $region72
      $region71: #{tpu_custom_call.1} parent=63 // pred_region
        %s442 = smul.u32 %s27, 2
        %s443 = sadd.s32 %s442, %s28
        %p444 = scmp.lt.s32.totalorder %s443, 3
        %s445 = scalar_select %p444, %s443, 3
        %s446 = smul.addr %s445, 6
        %s447 = smul.addr %s446, 8
        %s448 = scalar_lea.vmem %s1, %s447
        %s449 = smul.u32 %s27, 2
        %s450 = sadd.s32 %s449, %s28
      $region72: #{tpu_custom_call.1} parent=63 // pred_fallthru
        _
    $region64: #{tpu_custom_call.1} parent=5 // pred_fallthru
      _
    %p451 = scmp.le.s32.totalorder 1, %s20
    %p452 = scmp.lt.s32.totalorder %s20, 5
    %p453 = pnand %p451, %p452
    %p454 = pneg %p453
    // Predicated region
    $region73: #{tpu_custom_call.1} parent=5 // pred_check
      _
    $region74: #{tpu_custom_call.1} parent=5 // pred_check_branch
      %456 = sbr.rel (%p453) target = $region76
    $region75: #{tpu_custom_call.1} parent=5 // pred_region
      %s457 = ssub.s32 %s20, 1
      %s458 = smul.u32 %s29, 2
      %s459 = sadd.s32 %s458, %s30
      %p460 = scmp.lt.s32.totalorder %s459, 3
      %s461 = scalar_select %p460, %s459, 3
      %s462 = smul.addr %s461, 24
      %s463 = smul.addr %s462, 8
      %s464 = scalar_lea.vmem %s0, %s463
      %p465 = pneg %p62
      %p466 = pneg %p59
      %s467 = smul.u32 %s29, 2
      %s468 = sadd.s32 %s467, %s30
      %p469 = scmp.lt.s32.totalorder %s468, 3
      %s470 = scalar_select %p469, %s468, 3
      %s471 = smul.addr %s470, 6
      %s472 = smul.addr %s471, 8
      %s473 = scalar_lea.vmem %s1, %s472
      %p474 = pneg %p92
      %p475 = pneg %p89
      %p476 = pneg %p113
      %p477 = pneg %p110
      %p478 = pneg %p134
      %p479 = pneg %p131
      %p480 = pneg %p155
      %p481 = pneg %p152
      %p482 = pneg %p176
      %p483 = pneg %p173
      %p484 = pneg %p197
      %p485 = pneg %p194
      %p486 = pneg %p218
      %p487 = pneg %p215
      %p488 = pneg %p239
      %p489 = pneg %p236
      %p490 = pneg %p260
      %p491 = pneg %p257
      %p492 = pneg %p281
      %p493 = pneg %p278
      %p494 = pneg %p302
      %p495 = pneg %p299
      %p496 = pneg %p323
      %p497 = pneg %p320
      %p498 = pneg %p344
      %p499 = pneg %p341
      %p500 = pneg %p372
      %p501 = pneg %p369
      %s502 = smul.u32 16, %s30
      %p503 = scmp.lt.s32.totalorder %s29, 1
      %s504 = scalar_select %p503, %s29, 1
      %p505 = scmp.lt.s32.totalorder %s502, 31
      %s506 = scalar_select %p505, %s502, 31
      %s507 = smul.addr %s504, 32
      %s508 = sadd.s32 %s506, %s507
      %s509 = smul.addr %s508, 8
      %s510 = scalar_lea.vmem %s14, %s509
      %s511 = smul.u32 %s29, 2
      %s512 = sadd.s32 %s511, %s30
      %p513 = scmp.lt.s32.totalorder %s512, 3
      %s514 = scalar_select %p513, %s512, 3
      %s515 = smul.addr %s514, 24
      %s516 = smul.addr %s515, 8
      %s517 = scalar_lea.vmem %s0, %s516
      %s518 = smul.u32 %s29, 2
      %s519 = sadd.s32 %s518, %s30
      %s520 = smul.u32 %s29, 2
      %s521 = sadd.s32 %s520, %s30
      %p522 = scmp.lt.s32.totalorder %s521, 3
      %s523 = scalar_select %p522, %s521, 3
      %s524 = smul.addr %s523, 6
      %s525 = smul.addr %s524, 8
      %s526 = scalar_lea.vmem %s1, %s525
      %s527 = smul.u32 %s29, 2
      %s528 = sadd.s32 %s527, %s30
      %s529 = smul.u32 16, %s30
      %p530 = scmp.lt.s32.totalorder %s29, 1
      %s531 = scalar_select %p530, %s29, 1
      %p532 = scmp.lt.s32.totalorder %s529, 31
      %s533 = scalar_select %p532, %s529, 31
      %s534 = smul.addr %s531, 32
      %s535 = sadd.s32 %s533, %s534
      %s536 = smul.addr %s535, 8
      %s537 = scalar_lea.vmem %s14, %s536
      %s538 = smul.u32 16, %s30
      %v539 = vld [vmem:[%s517] sm:$0xff]
      %v540 = vld [vmem:[%s517 + $0x8] sm:$0xff]
      %v541 = vld [vmem:[%s517 + $0x10] sm:$0x3]
      %v542 = vld [vmem:[%s517 + $0x18] sm:$0xff]
      %v543 = vld [vmem:[%s517 + $0x20] sm:$0xff]
      %v544 = vld [vmem:[%s517 + $0x28] sm:$0x3]
      %v545 = vld [vmem:[%s517 + $0x30] sm:$0xff]
      %v546 = vld [vmem:[%s517 + $0x38] sm:$0xff]
      %v547 = vld [vmem:[%s517 + $0x40] sm:$0x3]
      %v548 = vld [vmem:[%s517 + $0x48] sm:$0xff]
      %v549 = vld [vmem:[%s517 + $0x50] sm:$0xff]
      %v550 = vld [vmem:[%s517 + $0x58] sm:$0x3]
      %v551 = vld [vmem:[%s517 + $0x60] sm:$0xff]
      %v552 = vld [vmem:[%s517 + $0x68] sm:$0xff]
      %v553 = vld [vmem:[%s517 + $0x70] sm:$0x3]
      %v554 = vld [vmem:[%s517 + $0x78] sm:$0xff]
      %v555 = vld [vmem:[%s517 + $0x80] sm:$0xff]
      %v556 = vld [vmem:[%s517 + $0x88] sm:$0x3]
      %v557 = vld [vmem:[%s517 + $0x90] sm:$0xff]
      %v558 = vld [vmem:[%s517 + $0x98] sm:$0xff]
      %v559 = vld [vmem:[%s517 + $0xa0] sm:$0x3]
      %v560 = vld [vmem:[%s517 + $0xa8] sm:$0xff]
      %v561 = vld [vmem:[%s517 + $0xb0] sm:$0xff]
      %v562 = vld [vmem:[%s517 + $0xb8] sm:$0x3]
      %v563 = vld [vmem:[%s526] sm:$0xff]
      %v564 = vld [vmem:[%s526 + $0x8] sm:$0xff]
      %v565 = vld [vmem:[%s526 + $0x10] sm:$0x3]
      %v566 = vld [vmem:[%s526 + $0x18] sm:$0xff]
      %v567 = vld [vmem:[%s526 + $0x20] sm:$0xff]
      %v568 = vld [vmem:[%s526 + $0x28] sm:$0x3]
      %v569 = vld [vmem:[%s4] sm:$0xff]
      %v570 = vld [vmem:[%s4 + $0x8] sm:$0xff]
      %v571 = vld [vmem:[%s2] sm:$0xff]
      %v572 = vld [vmem:[%s2 + $0x8] sm:$0xff]
      %vm573 = vcmask 130048
      %v575 = vsel %vm573, %v539, 0
      %v578 = vsel %vm573, %v540, 0
      %v581 = vsel %vm573, %v542, 0
      %v584 = vsel %vm573, %v543, 0
      %v587 = vsel %vm573, %v545, 0
      %v590 = vsel %vm573, %v546, 0
      %v593 = vsel %vm573, %v548, 0
      %v596 = vsel %vm573, %v549, 0
      %v599 = vsel %vm573, %v551, 0
      %v602 = vsel %vm573, %v552, 0
      %v605 = vsel %vm573, %v554, 0
      %v608 = vsel %vm573, %v555, 0
      %v611 = vsel %vm573, %v557, 0
      %v614 = vsel %vm573, %v558, 0
      %v617 = vsel %vm573, %v560, 0
      %v620 = vsel %vm573, %v561, 0
      %622 = vmatpush.msra.mxu0 0.0
      %623 = vmatpush.msra.mxu0 0.0
      %624 = vmatpush.msra.mxu0 0.0
      %625 = vmatpush.msra.mxu0 0.0
      %626 = vmatpush.msra.mxu0 0.0
      %627 = vmatpush.msra.mxu0 0.0
      %628 = vmatpush.msra.mxu0 0.0
      %629 = vmatpush.msra.mxu0 0.0
      %630 = vmatpush.msra.mxu0 0.0
      %631 = vmatpush.msra.mxu0 0.0
      %632 = vmatpush.msra.mxu0 0.0
      %633 = vmatpush.msra.mxu0 0.0
      %634 = vmatpush.msra.mxu0 0.0
      %635 = vmatpush.msra.mxu0 0.0
      %636 = vmatpush.msra.mxu0 %v570
      %637 = vmatpush.msra.mxu0 %v569
      %638 = vmatmul.f32.gmra.mxu0 %v575
      %v639 = vpop.f32.mrf.mxu0
      %v640 = vadd.f32 0.0, %v639
      %641 = vmatmul.f32.gmra.mxu0 %v578
      %v642 = vpop.f32.mrf.mxu0
      %v643 = vadd.f32 0.0, %v642
      %644 = vmatmul.f32.gmra.mxu0 %v581
      %v645 = vpop.f32.mrf.mxu0
      %v646 = vadd.f32 0.0, %v645
      %647 = vmatmul.f32.gmra.mxu0 %v584
      %v648 = vpop.f32.mrf.mxu0
      %v649 = vadd.f32 0.0, %v648
      %650 = vmatmul.f32.gmra.mxu0 %v587
      %v651 = vpop.f32.mrf.mxu0
      %v652 = vadd.f32 0.0, %v651
      %653 = vmatmul.f32.gmra.mxu0 %v590
      %v654 = vpop.f32.mrf.mxu0
      %v655 = vadd.f32 0.0, %v654
      %656 = vmatmul.f32.gmra.mxu0 %v593
      %v657 = vpop.f32.mrf.mxu0
      %v658 = vadd.f32 0.0, %v657
      %659 = vmatmul.f32.gmra.mxu0 %v596
      %v660 = vpop.f32.mrf.mxu0
      %v661 = vadd.f32 0.0, %v660
      %662 = vmatmul.f32.gmra.mxu0 %v599
      %v663 = vpop.f32.mrf.mxu0
      %v664 = vadd.f32 0.0, %v663
      %665 = vmatmul.f32.gmra.mxu0 %v602
      %v666 = vpop.f32.mrf.mxu0
      %v667 = vadd.f32 0.0, %v666
      %668 = vmatmul.f32.gmra.mxu0 %v605
      %v669 = vpop.f32.mrf.mxu0
      %v670 = vadd.f32 0.0, %v669
      %671 = vmatmul.f32.gmra.mxu0 %v608
      %v672 = vpop.f32.mrf.mxu0
      %v673 = vadd.f32 0.0, %v672
      %674 = vmatmul.f32.gmra.mxu0 %v611
      %v675 = vpop.f32.mrf.mxu0
      %v676 = vadd.f32 0.0, %v675
      %677 = vmatmul.f32.gmra.mxu0 %v614
      %v678 = vpop.f32.mrf.mxu0
      %v679 = vadd.f32 0.0, %v678
      %680 = vmatmul.f32.gmra.mxu0 %v617
      %v681 = vpop.f32.mrf.mxu0
      %v682 = vadd.f32 0.0, %v681
      %683 = vmatmul.f32.gmra.mxu0 %v620
      %v684 = vpop.f32.mrf.mxu0
      %v685 = vadd.f32 0.0, %v684
      %686 = vdwg.mxu0
      %vm695 = vcmask 1046528
      %v696 = vrot.slane %v539, 1
      %v697 = vrot.slane %v540, 1
      %v698 = vsel %vm695, %v696, %v697
      %v699 = vrot.slane %v541, 1
      %v700 = vsel %vm695, %v697, %v699
      %v701 = vrot.slane %v542, 1
      %v702 = vrot.slane %v543, 1
      %v703 = vsel %vm695, %v701, %v702
      %v704 = vrot.slane %v544, 1
      %v705 = vsel %vm695, %v702, %v704
      %v706 = vrot.slane %v545, 1
      %v707 = vrot.slane %v546, 1
      %v708 = vsel %vm695, %v706, %v707
      %v709 = vrot.slane %v547, 1
      %v710 = vsel %vm695, %v707, %v709
      %v711 = vrot.slane %v548, 1
      %v712 = vrot.slane %v549, 1
      %v713 = vsel %vm695, %v711, %v712
      %v714 = vrot.slane %v550, 1
      %v715 = vsel %vm695, %v712, %v714
      %v716 = vrot.slane %v551, 1
      %v717 = vrot.slane %v552, 1
      %v718 = vsel %vm695, %v716, %v717
      %v719 = vrot.slane %v553, 1
      %v720 = vsel %vm695, %v717, %v719
      %v721 = vrot.slane %v554, 1
      %v722 = vrot.slane %v555, 1
      %v723 = vsel %vm695, %v721, %v722
      %v724 = vrot.slane %v556, 1
      %v725 = vsel %vm695, %v722, %v724
      %v726 = vrot.slane %v557, 1
      %v727 = vrot.slane %v558, 1
      %v728 = vsel %vm695, %v726, %v727
      %v729 = vrot.slane %v559, 1
      %v730 = vsel %vm695, %v727, %v729
      %v731 = vrot.slane %v560, 1
      %v732 = vrot.slane %v561, 1
      %v733 = vsel %vm695, %v731, %v732
      %v734 = vrot.slane %v562, 1
      %v735 = vsel %vm695, %v732, %v734
      %v736 = vsel %vm573, %v698, 0
      %v738 = vsel %vm573, %v700, 0
      %v740 = vsel %vm573, %v703, 0
      %v742 = vsel %vm573, %v705, 0
      %v744 = vsel %vm573, %v708, 0
      %v746 = vsel %vm573, %v710, 0
      %v748 = vsel %vm573, %v713, 0
      %v750 = vsel %vm573, %v715, 0
      %v752 = vsel %vm573, %v718, 0
      %v754 = vsel %vm573, %v720, 0
      %v756 = vsel %vm573, %v723, 0
      %v758 = vsel %vm573, %v725, 0
      %v760 = vsel %vm573, %v728, 0
      %v762 = vsel %vm573, %v730, 0
      %v764 = vsel %vm573, %v733, 0
      %v766 = vsel %vm573, %v735, 0
      %768 = vmatpush.msra.mxu0 0.0
      %769 = vmatpush.msra.mxu0 0.0
      %770 = vmatpush.msra.mxu0 0.0
      %771 = vmatpush.msra.mxu0 0.0
      %772 = vmatpush.msra.mxu0 0.0
      %773 = vmatpush.msra.mxu0 0.0
      %774 = vmatpush.msra.mxu0 0.0
      %775 = vmatpush.msra.mxu0 0.0
      %776 = vmatpush.msra.mxu0 0.0
      %777 = vmatpush.msra.mxu0 0.0
      %778 = vmatpush.msra.mxu0 0.0
      %779 = vmatpush.msra.mxu0 0.0
      %780 = vmatpush.msra.mxu0 0.0
      %781 = vmatpush.msra.mxu0 0.0
      %782 = vmatpush.msra.mxu0 %v570
      %783 = vmatpush.msra.mxu0 %v569
      %784 = vmatmul.f32.gmra.mxu0 %v736
      %v785 = vpop.f32.mrf.mxu0
      %v786 = vadd.f32 0.0, %v785
      %787 = vmatmul.f32.gmra.mxu0 %v738
      %v788 = vpop.f32.mrf.mxu0
      %v789 = vadd.f32 0.0, %v788
      %790 = vmatmul.f32.gmra.mxu0 %v740
      %v791 = vpop.f32.mrf.mxu0
      %v792 = vadd.f32 0.0, %v791
      %793 = vmatmul.f32.gmra.mxu0 %v742
      %v794 = vpop.f32.mrf.mxu0
      %v795 = vadd.f32 0.0, %v794
      %796 = vmatmul.f32.gmra.mxu0 %v744
      %v797 = vpop.f32.mrf.mxu0
      %v798 = vadd.f32 0.0, %v797
      %799 = vmatmul.f32.gmra.mxu0 %v746
      %v800 = vpop.f32.mrf.mxu0
      %v801 = vadd.f32 0.0, %v800
      %802 = vmatmul.f32.gmra.mxu0 %v748
      %v803 = vpop.f32.mrf.mxu0
      %v804 = vadd.f32 0.0, %v803
      %805 = vmatmul.f32.gmra.mxu0 %v750
      %v806 = vpop.f32.mrf.mxu0
      %v807 = vadd.f32 0.0, %v806
      %808 = vmatmul.f32.gmra.mxu0 %v752
      %v809 = vpop.f32.mrf.mxu0
      %v810 = vadd.f32 0.0, %v809
      %811 = vmatmul.f32.gmra.mxu0 %v754
      %v812 = vpop.f32.mrf.mxu0
      %v813 = vadd.f32 0.0, %v812
      %814 = vmatmul.f32.gmra.mxu0 %v756
      %v815 = vpop.f32.mrf.mxu0
      %v816 = vadd.f32 0.0, %v815
      %817 = vmatmul.f32.gmra.mxu0 %v758
      %v818 = vpop.f32.mrf.mxu0
      %v819 = vadd.f32 0.0, %v818
      %820 = vmatmul.f32.gmra.mxu0 %v760
      %v821 = vpop.f32.mrf.mxu0
      %v822 = vadd.f32 0.0, %v821
      %823 = vmatmul.f32.gmra.mxu0 %v762
      %v824 = vpop.f32.mrf.mxu0
      %v825 = vadd.f32 0.0, %v824
      %826 = vmatmul.f32.gmra.mxu0 %v764
      %v827 = vpop.f32.mrf.mxu0
      %v828 = vadd.f32 0.0, %v827
      %829 = vmatmul.f32.gmra.mxu0 %v766
      %v830 = vpop.f32.mrf.mxu0
      %v831 = vadd.f32 0.0, %v830
      %832 = vdwg.mxu0
      %vm833 = vcmask 1045504
      %v834 = vrot.slane %v539, 2
      %v835 = vrot.slane %v540, 2
      %v836 = vsel %vm833, %v834, %v835
      %v837 = vrot.slane %v541, 2
      %v838 = vsel %vm833, %v835, %v837
      %v839 = vrot.slane %v542, 2
      %v840 = vrot.slane %v543, 2
      %v841 = vsel %vm833, %v839, %v840
      %v842 = vrot.slane %v544, 2
      %v843 = vsel %vm833, %v840, %v842
      %v844 = vrot.slane %v545, 2
      %v845 = vrot.slane %v546, 2
      %v846 = vsel %vm833, %v844, %v845
      %v847 = vrot.slane %v547, 2
      %v848 = vsel %vm833, %v845, %v847
      %v849 = vrot.slane %v548, 2
      %v850 = vrot.slane %v549, 2
      %v851 = vsel %vm833, %v849, %v850
      %v852 = vrot.slane %v550, 2
      %v853 = vsel %vm833, %v850, %v852
      %v854 = vrot.slane %v551, 2
      %v855 = vrot.slane %v552, 2
      %v856 = vsel %vm833, %v854, %v855
      %v857 = vrot.slane %v553, 2
      %v858 = vsel %vm833, %v855, %v857
      %v859 = vrot.slane %v554, 2
      %v860 = vrot.slane %v555, 2
      %v861 = vsel %vm833, %v859, %v860
      %v862 = vrot.slane %v556, 2
      %v863 = vsel %vm833, %v860, %v862
      %v864 = vrot.slane %v557, 2
      %v865 = vrot.slane %v558, 2
      %v866 = vsel %vm833, %v864, %v865
      %v867 = vrot.slane %v559, 2
      %v868 = vsel %vm833, %v865, %v867
      %v869 = vrot.slane %v560, 2
      %v870 = vrot.slane %v561, 2
      %v871 = vsel %vm833, %v869, %v870
      %v872 = vrot.slane %v562, 2
      %v873 = vsel %vm833, %v870, %v872
      %v874 = vsel %vm573, %v836, 0
      %v876 = vsel %vm573, %v838, 0
      %v878 = vsel %vm573, %v841, 0
      %v880 = vsel %vm573, %v843, 0
      %v882 = vsel %vm573, %v846, 0
      %v884 = vsel %vm573, %v848, 0
      %v886 = vsel %vm573, %v851, 0
      %v888 = vsel %vm573, %v853, 0
      %v890 = vsel %vm573, %v856, 0
      %v892 = vsel %vm573, %v858, 0
      %v894 = vsel %vm573, %v861, 0
      %v896 = vsel %vm573, %v863, 0
      %v898 = vsel %vm573, %v866, 0
      %v900 = vsel %vm573, %v868, 0
      %v902 = vsel %vm573, %v871, 0
      %v904 = vsel %vm573, %v873, 0
      %906 = vmatpush.msra.mxu0 0.0
      %907 = vmatpush.msra.mxu0 0.0
      %908 = vmatpush.msra.mxu0 0.0
      %909 = vmatpush.msra.mxu0 0.0
      %910 = vmatpush.msra.mxu0 0.0
      %911 = vmatpush.msra.mxu0 0.0
      %912 = vmatpush.msra.mxu0 0.0
      %913 = vmatpush.msra.mxu0 0.0
      %914 = vmatpush.msra.mxu0 0.0
      %915 = vmatpush.msra.mxu0 0.0
      %916 = vmatpush.msra.mxu0 0.0
      %917 = vmatpush.msra.mxu0 0.0
      %918 = vmatpush.msra.mxu0 0.0
      %919 = vmatpush.msra.mxu0 0.0
      %920 = vmatpush.msra.mxu0 %v570
      %921 = vmatpush.msra.mxu0 %v569
      %922 = vmatmul.f32.gmra.mxu0 %v874
      %v923 = vpop.f32.mrf.mxu0
      %v924 = vadd.f32 0.0, %v923
      %925 = vmatmul.f32.gmra.mxu0 %v876
      %v926 = vpop.f32.mrf.mxu0
      %v927 = vadd.f32 0.0, %v926
      %928 = vmatmul.f32.gmra.mxu0 %v878
      %v929 = vpop.f32.mrf.mxu0
      %v930 = vadd.f32 0.0, %v929
      %931 = vmatmul.f32.gmra.mxu0 %v880
      %v932 = vpop.f32.mrf.mxu0
      %v933 = vadd.f32 0.0, %v932
      %934 = vmatmul.f32.gmra.mxu0 %v882
      %v935 = vpop.f32.mrf.mxu0
      %v936 = vadd.f32 0.0, %v935
      %937 = vmatmul.f32.gmra.mxu0 %v884
      %v938 = vpop.f32.mrf.mxu0
      %v939 = vadd.f32 0.0, %v938
      %940 = vmatmul.f32.gmra.mxu0 %v886
      %v941 = vpop.f32.mrf.mxu0
      %v942 = vadd.f32 0.0, %v941
      %943 = vmatmul.f32.gmra.mxu0 %v888
      %v944 = vpop.f32.mrf.mxu0
      %v945 = vadd.f32 0.0, %v944
      %946 = vmatmul.f32.gmra.mxu0 %v890
      %v947 = vpop.f32.mrf.mxu0
      %v948 = vadd.f32 0.0, %v947
      %949 = vmatmul.f32.gmra.mxu0 %v892
      %v950 = vpop.f32.mrf.mxu0
      %v951 = vadd.f32 0.0, %v950
      %952 = vmatmul.f32.gmra.mxu0 %v894
      %v953 = vpop.f32.mrf.mxu0
      %v954 = vadd.f32 0.0, %v953
      %955 = vmatmul.f32.gmra.mxu0 %v896
      %v956 = vpop.f32.mrf.mxu0
      %v957 = vadd.f32 0.0, %v956
      %958 = vmatmul.f32.gmra.mxu0 %v898
      %v959 = vpop.f32.mrf.mxu0
      %v960 = vadd.f32 0.0, %v959
      %961 = vmatmul.f32.gmra.mxu0 %v900
      %v962 = vpop.f32.mrf.mxu0
      %v963 = vadd.f32 0.0, %v962
      %964 = vmatmul.f32.gmra.mxu0 %v902
      %v965 = vpop.f32.mrf.mxu0
      %v966 = vadd.f32 0.0, %v965
      %967 = vmatmul.f32.gmra.mxu0 %v904
      %v968 = vpop.f32.mrf.mxu0
      %v969 = vadd.f32 0.0, %v968
      %970 = vdwg.mxu0
      %v972 = vsel %vm573, %v563, 0
      %v975 = vsel %vm573, %v564, 0
      %977 = vmatpush.msra.mxu0 0.0
      %978 = vmatpush.msra.mxu0 0.0
      %979 = vmatpush.msra.mxu0 0.0
      %980 = vmatpush.msra.mxu0 0.0
      %981 = vmatpush.msra.mxu0 0.0
      %982 = vmatpush.msra.mxu0 0.0
      %983 = vmatpush.msra.mxu0 0.0
      %984 = vmatpush.msra.mxu0 0.0
      %985 = vmatpush.msra.mxu0 0.0
      %986 = vmatpush.msra.mxu0 0.0
      %987 = vmatpush.msra.mxu0 0.0
      %988 = vmatpush.msra.mxu0 0.0
      %989 = vmatpush.msra.mxu0 0.0
      %990 = vmatpush.msra.mxu0 0.0
      %991 = vmatpush.msra.mxu0 %v570
      %992 = vmatpush.msra.mxu0 %v569
      %993 = vmatmul.f32.gmra.mxu0 %v581
      %v994 = vpop.f32.mrf.mxu0
      %v995 = vadd.f32 0.0, %v994
      %996 = vmatmul.f32.gmra.mxu0 %v584
      %v997 = vpop.f32.mrf.mxu0
      %v998 = vadd.f32 0.0, %v997
      %999 = vmatmul.f32.gmra.mxu0 %v587
      %v1000 = vpop.f32.mrf.mxu0
      %v1001 = vadd.f32 0.0, %v1000
      %1002 = vmatmul.f32.gmra.mxu0 %v590
      %v1003 = vpop.f32.mrf.mxu0
      %v1004 = vadd.f32 0.0, %v1003
      %1005 = vmatmul.f32.gmra.mxu0 %v593
      %v1006 = vpop.f32.mrf.mxu0
      %v1007 = vadd.f32 0.0, %v1006
      %1008 = vmatmul.f32.gmra.mxu0 %v596
      %v1009 = vpop.f32.mrf.mxu0
      %v1010 = vadd.f32 0.0, %v1009
      %1011 = vmatmul.f32.gmra.mxu0 %v599
      %v1012 = vpop.f32.mrf.mxu0
      %v1013 = vadd.f32 0.0, %v1012
      %1014 = vmatmul.f32.gmra.mxu0 %v602
      %v1015 = vpop.f32.mrf.mxu0
      %v1016 = vadd.f32 0.0, %v1015
      %1017 = vmatmul.f32.gmra.mxu0 %v605
      %v1018 = vpop.f32.mrf.mxu0
      %v1019 = vadd.f32 0.0, %v1018
      %1020 = vmatmul.f32.gmra.mxu0 %v608
      %v1021 = vpop.f32.mrf.mxu0
      %v1022 = vadd.f32 0.0, %v1021
      %1023 = vmatmul.f32.gmra.mxu0 %v611
      %v1024 = vpop.f32.mrf.mxu0
      %v1025 = vadd.f32 0.0, %v1024
      %1026 = vmatmul.f32.gmra.mxu0 %v614
      %v1027 = vpop.f32.mrf.mxu0
      %v1028 = vadd.f32 0.0, %v1027
      %1029 = vmatmul.f32.gmra.mxu0 %v617
      %v1030 = vpop.f32.mrf.mxu0
      %v1031 = vadd.f32 0.0, %v1030
      %1032 = vmatmul.f32.gmra.mxu0 %v620
      %v1033 = vpop.f32.mrf.mxu0
      %v1034 = vadd.f32 0.0, %v1033
      %1035 = vmatmul.f32.gmra.mxu0 %v972
      %v1036 = vpop.f32.mrf.mxu0
      %v1037 = vadd.f32 0.0, %v1036
      %1038 = vmatmul.f32.gmra.mxu0 %v975
      %v1039 = vpop.f32.mrf.mxu0
      %v1040 = vadd.f32 0.0, %v1039
      %1041 = vdwg.mxu0
      %v1043 = vrot.slane %v563, 1
      %v1044 = vrot.slane %v564, 1
      %v1045 = vsel %vm695, %v1043, %v1044
      %v1046 = vrot.slane %v565, 1
      %v1047 = vsel %vm695, %v1044, %v1046
      %v1048 = vsel %vm573, %v1045, 0
      %v1050 = vsel %vm573, %v1047, 0
      %1052 = vmatpush.msra.mxu0 0.0
      %1053 = vmatpush.msra.mxu0 0.0
      %1054 = vmatpush.msra.mxu0 0.0
      %1055 = vmatpush.msra.mxu0 0.0
      %1056 = vmatpush.msra.mxu0 0.0
      %1057 = vmatpush.msra.mxu0 0.0
      %1058 = vmatpush.msra.mxu0 0.0
      %1059 = vmatpush.msra.mxu0 0.0
      %1060 = vmatpush.msra.mxu0 0.0
      %1061 = vmatpush.msra.mxu0 0.0
      %1062 = vmatpush.msra.mxu0 0.0
      %1063 = vmatpush.msra.mxu0 0.0
      %1064 = vmatpush.msra.mxu0 0.0
      %1065 = vmatpush.msra.mxu0 0.0
      %1066 = vmatpush.msra.mxu0 %v570
      %1067 = vmatpush.msra.mxu0 %v569
      %1068 = vmatmul.f32.gmra.mxu0 %v740
      %v1069 = vpop.f32.mrf.mxu0
      %v1070 = vadd.f32 0.0, %v1069
      %1071 = vmatmul.f32.gmra.mxu0 %v742
      %v1072 = vpop.f32.mrf.mxu0
      %v1073 = vadd.f32 0.0, %v1072
      %1074 = vmatmul.f32.gmra.mxu0 %v744
      %v1075 = vpop.f32.mrf.mxu0
      %v1076 = vadd.f32 0.0, %v1075
      %1077 = vmatmul.f32.gmra.mxu0 %v746
      %v1078 = vpop.f32.mrf.mxu0
      %v1079 = vadd.f32 0.0, %v1078
      %1080 = vmatmul.f32.gmra.mxu0 %v748
      %v1081 = vpop.f32.mrf.mxu0
      %v1082 = vadd.f32 0.0, %v1081
      %1083 = vmatmul.f32.gmra.mxu0 %v750
      %v1084 = vpop.f32.mrf.mxu0
      %v1085 = vadd.f32 0.0, %v1084
      %1086 = vmatmul.f32.gmra.mxu0 %v752
      %v1087 = vpop.f32.mrf.mxu0
      %v1088 = vadd.f32 0.0, %v1087
      %1089 = vmatmul.f32.gmra.mxu0 %v754
      %v1090 = vpop.f32.mrf.mxu0
      %v1091 = vadd.f32 0.0, %v1090
      %1092 = vmatmul.f32.gmra.mxu0 %v756
      %v1093 = vpop.f32.mrf.mxu0
      %v1094 = vadd.f32 0.0, %v1093
      %1095 = vmatmul.f32.gmra.mxu0 %v758
      %v1096 = vpop.f32.mrf.mxu0
      %v1097 = vadd.f32 0.0, %v1096
      %1098 = vmatmul.f32.gmra.mxu0 %v760
      %v1099 = vpop.f32.mrf.mxu0
      %v1100 = vadd.f32 0.0, %v1099
      %1101 = vmatmul.f32.gmra.mxu0 %v762
      %v1102 = vpop.f32.mrf.mxu0
      %v1103 = vadd.f32 0.0, %v1102
      %1104 = vmatmul.f32.gmra.mxu0 %v764
      %v1105 = vpop.f32.mrf.mxu0
      %v1106 = vadd.f32 0.0, %v1105
      %1107 = vmatmul.f32.gmra.mxu0 %v766
      %v1108 = vpop.f32.mrf.mxu0
      %v1109 = vadd.f32 0.0, %v1108
      %1110 = vmatmul.f32.gmra.mxu0 %v1048
      %v1111 = vpop.f32.mrf.mxu0
      %v1112 = vadd.f32 0.0, %v1111
      %1113 = vmatmul.f32.gmra.mxu0 %v1050
      %v1114 = vpop.f32.mrf.mxu0
      %v1115 = vadd.f32 0.0, %v1114
      %1116 = vdwg.mxu0
      %v1117 = vld [vmem:[%s3] sm:$0x1]
      %v1119 = vperm.slane %v1117, 0
      %1121 = vmatpush.msra.mxu0 0.0
      %1122 = vmatpush.msra.mxu0 0.0
      %1123 = vmatpush.msra.mxu0 0.0
      %1124 = vmatpush.msra.mxu0 0.0
      %1125 = vmatpush.msra.mxu0 0.0
      %1126 = vmatpush.msra.mxu0 0.0
      %1127 = vmatpush.msra.mxu0 0.0
      %1128 = vmatpush.msra.mxu0 0.0
      %1129 = vmatpush.msra.mxu0 0.0
      %1130 = vmatpush.msra.mxu0 0.0
      %1131 = vmatpush.msra.mxu0 0.0
      %1132 = vmatpush.msra.mxu0 0.0
      %1133 = vmatpush.msra.mxu0 0.0
      %1134 = vmatpush.msra.mxu0 0.0
      %1135 = vmatpush.msra.mxu0 %v572
      %1136 = vmatpush.msra.mxu0 %v571
      %1137 = vmatmul.f32.gmra.mxu0 %v740
      %v1138 = vpop.f32.mrf.mxu0
      %v1139 = vadd.f32 %v1119, %v1138
      %1140 = vmatmul.f32.gmra.mxu0 %v742
      %v1141 = vpop.f32.mrf.mxu0
      %v1142 = vadd.f32 %v1119, %v1141
      %1143 = vmatmul.f32.gmra.mxu0 %v744
      %v1144 = vpop.f32.mrf.mxu0
      %v1145 = vadd.f32 %v1119, %v1144
      %1146 = vmatmul.f32.gmra.mxu0 %v746
      %v1147 = vpop.f32.mrf.mxu0
      %v1148 = vadd.f32 %v1119, %v1147
      %1149 = vmatmul.f32.gmra.mxu0 %v748
      %v1150 = vpop.f32.mrf.mxu0
      %v1151 = vadd.f32 %v1119, %v1150
      %1152 = vmatmul.f32.gmra.mxu0 %v750
      %v1153 = vpop.f32.mrf.mxu0
      %v1154 = vadd.f32 %v1119, %v1153
      %1155 = vmatmul.f32.gmra.mxu0 %v752
      %v1156 = vpop.f32.mrf.mxu0
      %v1157 = vadd.f32 %v1119, %v1156
      %1158 = vmatmul.f32.gmra.mxu0 %v754
      %v1159 = vpop.f32.mrf.mxu0
      %v1160 = vadd.f32 %v1119, %v1159
      %1161 = vmatmul.f32.gmra.mxu0 %v756
      %v1162 = vpop.f32.mrf.mxu0
      %v1163 = vadd.f32 %v1119, %v1162
      %1164 = vmatmul.f32.gmra.mxu0 %v758
      %v1165 = vpop.f32.mrf.mxu0
      %v1166 = vadd.f32 %v1119, %v1165
      %1167 = vmatmul.f32.gmra.mxu0 %v760
      %v1168 = vpop.f32.mrf.mxu0
      %v1169 = vadd.f32 %v1119, %v1168
      %1170 = vmatmul.f32.gmra.mxu0 %v762
      %v1171 = vpop.f32.mrf.mxu0
      %v1172 = vadd.f32 %v1119, %v1171
      %1173 = vmatmul.f32.gmra.mxu0 %v764
      %v1174 = vpop.f32.mrf.mxu0
      %v1175 = vadd.f32 %v1119, %v1174
      %1176 = vmatmul.f32.gmra.mxu0 %v766
      %v1177 = vpop.f32.mrf.mxu0
      %v1178 = vadd.f32 %v1119, %v1177
      %1179 = vmatmul.f32.gmra.mxu0 %v1048
      %v1180 = vpop.f32.mrf.mxu0
      %v1181 = vadd.f32 %v1119, %v1180
      %1182 = vmatmul.f32.gmra.mxu0 %v1050
      %v1183 = vpop.f32.mrf.mxu0
      %v1184 = vadd.f32 %v1119, %v1183
      %1185 = vdwg.mxu0
      %v1186 = vrot.slane %v563, 2
      %v1187 = vrot.slane %v564, 2
      %v1188 = vsel %vm833, %v1186, %v1187
      %v1189 = vrot.slane %v565, 2
      %v1190 = vsel %vm833, %v1187, %v1189
      %v1191 = vsel %vm573, %v1188, 0
      %v1193 = vsel %vm573, %v1190, 0
      %1195 = vmatpush.msra.mxu0 0.0
      %1196 = vmatpush.msra.mxu0 0.0
      %1197 = vmatpush.msra.mxu0 0.0
      %1198 = vmatpush.msra.mxu0 0.0
      %1199 = vmatpush.msra.mxu0 0.0
      %1200 = vmatpush.msra.mxu0 0.0
      %1201 = vmatpush.msra.mxu0 0.0
      %1202 = vmatpush.msra.mxu0 0.0
      %1203 = vmatpush.msra.mxu0 0.0
      %1204 = vmatpush.msra.mxu0 0.0
      %1205 = vmatpush.msra.mxu0 0.0
      %1206 = vmatpush.msra.mxu0 0.0
      %1207 = vmatpush.msra.mxu0 0.0
      %1208 = vmatpush.msra.mxu0 0.0
      %1209 = vmatpush.msra.mxu0 %v570
      %1210 = vmatpush.msra.mxu0 %v569
      %1211 = vmatmul.f32.gmra.mxu0 %v878
      %v1212 = vpop.f32.mrf.mxu0
      %v1213 = vadd.f32 0.0, %v1212
      %1214 = vmatmul.f32.gmra.mxu0 %v880
      %v1215 = vpop.f32.mrf.mxu0
      %v1216 = vadd.f32 0.0, %v1215
      %1217 = vmatmul.f32.gmra.mxu0 %v882
      %v1218 = vpop.f32.mrf.mxu0
      %v1219 = vadd.f32 0.0, %v1218
      %1220 = vmatmul.f32.gmra.mxu0 %v884
      %v1221 = vpop.f32.mrf.mxu0
      %v1222 = vadd.f32 0.0, %v1221
      %1223 = vmatmul.f32.gmra.mxu0 %v886
      %v1224 = vpop.f32.mrf.mxu0
      %v1225 = vadd.f32 0.0, %v1224
      %1226 = vmatmul.f32.gmra.mxu0 %v888
      %v1227 = vpop.f32.mrf.mxu0
      %v1228 = vadd.f32 0.0, %v1227
      %1229 = vmatmul.f32.gmra.mxu0 %v890
      %v1230 = vpop.f32.mrf.mxu0
      %v1231 = vadd.f32 0.0, %v1230
      %1232 = vmatmul.f32.gmra.mxu0 %v892
      %v1233 = vpop.f32.mrf.mxu0
      %v1234 = vadd.f32 0.0, %v1233
      %1235 = vmatmul.f32.gmra.mxu0 %v894
      %v1236 = vpop.f32.mrf.mxu0
      %v1237 = vadd.f32 0.0, %v1236
      %1238 = vmatmul.f32.gmra.mxu0 %v896
      %v1239 = vpop.f32.mrf.mxu0
      %v1240 = vadd.f32 0.0, %v1239
      %1241 = vmatmul.f32.gmra.mxu0 %v898
      %v1242 = vpop.f32.mrf.mxu0
      %v1243 = vadd.f32 0.0, %v1242
      %1244 = vmatmul.f32.gmra.mxu0 %v900
      %v1245 = vpop.f32.mrf.mxu0
      %v1246 = vadd.f32 0.0, %v1245
      %1247 = vmatmul.f32.gmra.mxu0 %v902
      %v1248 = vpop.f32.mrf.mxu0
      %v1249 = vadd.f32 0.0, %v1248
      %1250 = vmatmul.f32.gmra.mxu0 %v904
      %v1251 = vpop.f32.mrf.mxu0
      %v1252 = vadd.f32 0.0, %v1251
      %1253 = vmatmul.f32.gmra.mxu0 %v1191
      %v1254 = vpop.f32.mrf.mxu0
      %v1255 = vadd.f32 0.0, %v1254
      %1256 = vmatmul.f32.gmra.mxu0 %v1193
      %v1257 = vpop.f32.mrf.mxu0
      %v1258 = vadd.f32 0.0, %v1257
      %1259 = vdwg.mxu0
      %v1261 = vsel %vm573, %v566, 0
      %v1264 = vsel %vm573, %v567, 0
      %1266 = vmatpush.msra.mxu0 0.0
      %1267 = vmatpush.msra.mxu0 0.0
      %1268 = vmatpush.msra.mxu0 0.0
      %1269 = vmatpush.msra.mxu0 0.0
      %1270 = vmatpush.msra.mxu0 0.0
      %1271 = vmatpush.msra.mxu0 0.0
      %1272 = vmatpush.msra.mxu0 0.0
      %1273 = vmatpush.msra.mxu0 0.0
      %1274 = vmatpush.msra.mxu0 0.0
      %1275 = vmatpush.msra.mxu0 0.0
      %1276 = vmatpush.msra.mxu0 0.0
      %1277 = vmatpush.msra.mxu0 0.0
      %1278 = vmatpush.msra.mxu0 0.0
      %1279 = vmatpush.msra.mxu0 0.0
      %1280 = vmatpush.msra.mxu0 %v570
      %1281 = vmatpush.msra.mxu0 %v569
      %1282 = vmatmul.f32.gmra.mxu0 %v587
      %v1283 = vpop.f32.mrf.mxu0
      %v1284 = vadd.f32 0.0, %v1283
      %1285 = vmatmul.f32.gmra.mxu0 %v590
      %v1286 = vpop.f32.mrf.mxu0
      %v1287 = vadd.f32 0.0, %v1286
      %1288 = vmatmul.f32.gmra.mxu0 %v593
      %v1289 = vpop.f32.mrf.mxu0
      %v1290 = vadd.f32 0.0, %v1289
      %1291 = vmatmul.f32.gmra.mxu0 %v596
      %v1292 = vpop.f32.mrf.mxu0
      %v1293 = vadd.f32 0.0, %v1292
      %1294 = vmatmul.f32.gmra.mxu0 %v599
      %v1295 = vpop.f32.mrf.mxu0
      %v1296 = vadd.f32 0.0, %v1295
      %1297 = vmatmul.f32.gmra.mxu0 %v602
      %v1298 = vpop.f32.mrf.mxu0
      %v1299 = vadd.f32 0.0, %v1298
      %1300 = vmatmul.f32.gmra.mxu0 %v605
      %v1301 = vpop.f32.mrf.mxu0
      %v1302 = vadd.f32 0.0, %v1301
      %1303 = vmatmul.f32.gmra.mxu0 %v608
      %v1304 = vpop.f32.mrf.mxu0
      %v1305 = vadd.f32 0.0, %v1304
      %1306 = vmatmul.f32.gmra.mxu0 %v611
      %v1307 = vpop.f32.mrf.mxu0
      %v1308 = vadd.f32 0.0, %v1307
      %1309 = vmatmul.f32.gmra.mxu0 %v614
      %v1310 = vpop.f32.mrf.mxu0
      %v1311 = vadd.f32 0.0, %v1310
      %1312 = vmatmul.f32.gmra.mxu0 %v617
      %v1313 = vpop.f32.mrf.mxu0
      %v1314 = vadd.f32 0.0, %v1313
      %1315 = vmatmul.f32.gmra.mxu0 %v620
      %v1316 = vpop.f32.mrf.mxu0
      %v1317 = vadd.f32 0.0, %v1316
      %1318 = vmatmul.f32.gmra.mxu0 %v972
      %v1319 = vpop.f32.mrf.mxu0
      %v1320 = vadd.f32 0.0, %v1319
      %1321 = vmatmul.f32.gmra.mxu0 %v975
      %v1322 = vpop.f32.mrf.mxu0
      %v1323 = vadd.f32 0.0, %v1322
      %1324 = vmatmul.f32.gmra.mxu0 %v1261
      %v1325 = vpop.f32.mrf.mxu0
      %v1326 = vadd.f32 0.0, %v1325
      %1327 = vmatmul.f32.gmra.mxu0 %v1264
      %v1328 = vpop.f32.mrf.mxu0
      %v1329 = vadd.f32 0.0, %v1328
      %1330 = vdwg.mxu0
      %v1332 = vrot.slane %v566, 1
      %v1333 = vrot.slane %v567, 1
      %v1334 = vsel %vm695, %v1332, %v1333
      %v1335 = vrot.slane %v568, 1
      %v1336 = vsel %vm695, %v1333, %v1335
      %v1337 = vsel %vm573, %v1334, 0
      %v1339 = vsel %vm573, %v1336, 0
      %1341 = vmatpush.msra.mxu0 0.0
      %1342 = vmatpush.msra.mxu0 0.0
      %1343 = vmatpush.msra.mxu0 0.0
      %1344 = vmatpush.msra.mxu0 0.0
      %1345 = vmatpush.msra.mxu0 0.0
      %1346 = vmatpush.msra.mxu0 0.0
      %1347 = vmatpush.msra.mxu0 0.0
      %1348 = vmatpush.msra.mxu0 0.0
      %1349 = vmatpush.msra.mxu0 0.0
      %1350 = vmatpush.msra.mxu0 0.0
      %1351 = vmatpush.msra.mxu0 0.0
      %1352 = vmatpush.msra.mxu0 0.0
      %1353 = vmatpush.msra.mxu0 0.0
      %1354 = vmatpush.msra.mxu0 0.0
      %1355 = vmatpush.msra.mxu0 %v570
      %1356 = vmatpush.msra.mxu0 %v569
      %1357 = vmatmul.f32.gmra.mxu0 %v744
      %v1358 = vpop.f32.mrf.mxu0
      %v1359 = vadd.f32 0.0, %v1358
      %1360 = vmatmul.f32.gmra.mxu0 %v746
      %v1361 = vpop.f32.mrf.mxu0
      %v1362 = vadd.f32 0.0, %v1361
      %1363 = vmatmul.f32.gmra.mxu0 %v748
      %v1364 = vpop.f32.mrf.mxu0
      %v1365 = vadd.f32 0.0, %v1364
      %1366 = vmatmul.f32.gmra.mxu0 %v750
      %v1367 = vpop.f32.mrf.mxu0
      %v1368 = vadd.f32 0.0, %v1367
      %1369 = vmatmul.f32.gmra.mxu0 %v752
      %v1370 = vpop.f32.mrf.mxu0
      %v1371 = vadd.f32 0.0, %v1370
      %1372 = vmatmul.f32.gmra.mxu0 %v754
      %v1373 = vpop.f32.mrf.mxu0
      %v1374 = vadd.f32 0.0, %v1373
      %1375 = vmatmul.f32.gmra.mxu0 %v756
      %v1376 = vpop.f32.mrf.mxu0
      %v1377 = vadd.f32 0.0, %v1376
      %1378 = vmatmul.f32.gmra.mxu0 %v758
      %v1379 = vpop.f32.mrf.mxu0
      %v1380 = vadd.f32 0.0, %v1379
      %1381 = vmatmul.f32.gmra.mxu0 %v760
      %v1382 = vpop.f32.mrf.mxu0
      %v1383 = vadd.f32 0.0, %v1382
      %1384 = vmatmul.f32.gmra.mxu0 %v762
      %v1385 = vpop.f32.mrf.mxu0
      %v1386 = vadd.f32 0.0, %v1385
      %1387 = vmatmul.f32.gmra.mxu0 %v764
      %v1388 = vpop.f32.mrf.mxu0
      %v1389 = vadd.f32 0.0, %v1388
      %1390 = vmatmul.f32.gmra.mxu0 %v766
      %v1391 = vpop.f32.mrf.mxu0
      %v1392 = vadd.f32 0.0, %v1391
      %1393 = vmatmul.f32.gmra.mxu0 %v1048
      %v1394 = vpop.f32.mrf.mxu0
      %v1395 = vadd.f32 0.0, %v1394
      %1396 = vmatmul.f32.gmra.mxu0 %v1050
      %v1397 = vpop.f32.mrf.mxu0
      %v1398 = vadd.f32 0.0, %v1397
      %1399 = vmatmul.f32.gmra.mxu0 %v1337
      %v1400 = vpop.f32.mrf.mxu0
      %v1401 = vadd.f32 0.0, %v1400
      %1402 = vmatmul.f32.gmra.mxu0 %v1339
      %v1403 = vpop.f32.mrf.mxu0
      %v1404 = vadd.f32 0.0, %v1403
      %1405 = vdwg.mxu0
      %v1406 = vrot.slane %v566, 2
      %v1407 = vrot.slane %v567, 2
      %v1408 = vsel %vm833, %v1406, %v1407
      %v1409 = vrot.slane %v568, 2
      %v1410 = vsel %vm833, %v1407, %v1409
      %v1411 = vsel %vm573, %v1408, 0
      %v1413 = vsel %vm573, %v1410, 0
      %1415 = vmatpush.msra.mxu0 0.0
      %1416 = vmatpush.msra.mxu0 0.0
      %1417 = vmatpush.msra.mxu0 0.0
      %1418 = vmatpush.msra.mxu0 0.0
      %1419 = vmatpush.msra.mxu0 0.0
      %1420 = vmatpush.msra.mxu0 0.0
      %1421 = vmatpush.msra.mxu0 0.0
      %1422 = vmatpush.msra.mxu0 0.0
      %1423 = vmatpush.msra.mxu0 0.0
      %1424 = vmatpush.msra.mxu0 0.0
      %1425 = vmatpush.msra.mxu0 0.0
      %1426 = vmatpush.msra.mxu0 0.0
      %1427 = vmatpush.msra.mxu0 0.0
      %1428 = vmatpush.msra.mxu0 0.0
      %1429 = vmatpush.msra.mxu0 %v570
      %1430 = vmatpush.msra.mxu0 %v569
      %1431 = vmatmul.f32.gmra.mxu0 %v882
      %v1432 = vpop.f32.mrf.mxu0
      %v1433 = vadd.f32 0.0, %v1432
      %1434 = vmatmul.f32.gmra.mxu0 %v884
      %v1435 = vpop.f32.mrf.mxu0
      %v1436 = vadd.f32 0.0, %v1435
      %1437 = vmatmul.f32.gmra.mxu0 %v886
      %v1438 = vpop.f32.mrf.mxu0
      %v1439 = vadd.f32 0.0, %v1438
      %1440 = vmatmul.f32.gmra.mxu0 %v888
      %v1441 = vpop.f32.mrf.mxu0
      %v1442 = vadd.f32 0.0, %v1441
      %1443 = vmatmul.f32.gmra.mxu0 %v890
      %v1444 = vpop.f32.mrf.mxu0
      %v1445 = vadd.f32 0.0, %v1444
      %1446 = vmatmul.f32.gmra.mxu0 %v892
      %v1447 = vpop.f32.mrf.mxu0
      %v1448 = vadd.f32 0.0, %v1447
      %1449 = vmatmul.f32.gmra.mxu0 %v894
      %v1450 = vpop.f32.mrf.mxu0
      %v1451 = vadd.f32 0.0, %v1450
      %1452 = vmatmul.f32.gmra.mxu0 %v896
      %v1453 = vpop.f32.mrf.mxu0
      %v1454 = vadd.f32 0.0, %v1453
      %1455 = vmatmul.f32.gmra.mxu0 %v898
      %v1456 = vpop.f32.mrf.mxu0
      %v1457 = vadd.f32 0.0, %v1456
      %1458 = vmatmul.f32.gmra.mxu0 %v900
      %v1459 = vpop.f32.mrf.mxu0
      %v1460 = vadd.f32 0.0, %v1459
      %1461 = vmatmul.f32.gmra.mxu0 %v902
      %v1462 = vpop.f32.mrf.mxu0
      %v1463 = vadd.f32 0.0, %v1462
      %1464 = vmatmul.f32.gmra.mxu0 %v904
      %v1465 = vpop.f32.mrf.mxu0
      %v1466 = vadd.f32 0.0, %v1465
      %1467 = vmatmul.f32.gmra.mxu0 %v1191
      %v1468 = vpop.f32.mrf.mxu0
      %v1469 = vadd.f32 0.0, %v1468
      %1470 = vmatmul.f32.gmra.mxu0 %v1193
      %v1471 = vpop.f32.mrf.mxu0
      %v1472 = vadd.f32 0.0, %v1471
      %1473 = vmatmul.f32.gmra.mxu0 %v1411
      %v1474 = vpop.f32.mrf.mxu0
      %v1475 = vadd.f32 0.0, %v1474
      %1476 = vmatmul.f32.gmra.mxu0 %v1413
      %v1477 = vpop.f32.mrf.mxu0
      %v1478 = vadd.f32 0.0, %v1477
      %1479 = vdwg.mxu0
      %1496 = vrot.lane.b32.xlu0 %v786, 16
      %v1497 = vpop.permute.xlu0 %1496
      %1498 = vrot.lane.b32.xlu0 %v789, 16
      %v1499 = vpop.permute.xlu0 %1498
      %1500 = vrot.lane.b32.xlu0 %v792, 16
      %v1501 = vpop.permute.xlu0 %1500
      %1502 = vrot.lane.b32.xlu0 %v795, 16
      %v1503 = vpop.permute.xlu0 %1502
      %1504 = vrot.lane.b32.xlu0 %v798, 16
      %v1505 = vpop.permute.xlu0 %1504
      %1506 = vrot.lane.b32.xlu0 %v801, 16
      %v1507 = vpop.permute.xlu0 %1506
      %1508 = vrot.lane.b32.xlu0 %v804, 16
      %v1509 = vpop.permute.xlu0 %1508
      %1510 = vrot.lane.b32.xlu0 %v807, 16
      %v1511 = vpop.permute.xlu0 %1510
      %1512 = vrot.lane.b32.xlu0 %v810, 16
      %v1513 = vpop.permute.xlu0 %1512
      %1514 = vrot.lane.b32.xlu0 %v813, 16
      %v1515 = vpop.permute.xlu0 %1514
      %1516 = vrot.lane.b32.xlu0 %v816, 16
      %v1517 = vpop.permute.xlu0 %1516
      %1518 = vrot.lane.b32.xlu0 %v819, 16
      %v1519 = vpop.permute.xlu0 %1518
      %1520 = vrot.lane.b32.xlu0 %v822, 16
      %v1521 = vpop.permute.xlu0 %1520
      %1522 = vrot.lane.b32.xlu0 %v825, 16
      %v1523 = vpop.permute.xlu0 %1522
      %1524 = vrot.lane.b32.xlu0 %v828, 16
      %v1525 = vpop.permute.xlu0 %1524
      %1526 = vrot.lane.b32.xlu0 %v831, 16
      %v1527 = vpop.permute.xlu0 %1526
      %1560 = vrot.lane.b32.xlu0 %v924, 32
      %v1561 = vpop.permute.xlu0 %1560
      %1562 = vrot.lane.b32.xlu0 %v927, 32
      %v1563 = vpop.permute.xlu0 %1562
      %1564 = vrot.lane.b32.xlu0 %v930, 32
      %v1565 = vpop.permute.xlu0 %1564
      %1566 = vrot.lane.b32.xlu0 %v933, 32
      %v1567 = vpop.permute.xlu0 %1566
      %1568 = vrot.lane.b32.xlu0 %v936, 32
      %v1569 = vpop.permute.xlu0 %1568
      %1570 = vrot.lane.b32.xlu0 %v939, 32
      %v1571 = vpop.permute.xlu0 %1570
      %1572 = vrot.lane.b32.xlu0 %v942, 32
      %v1573 = vpop.permute.xlu0 %1572
      %1574 = vrot.lane.b32.xlu0 %v945, 32
      %v1575 = vpop.permute.xlu0 %1574
      %1576 = vrot.lane.b32.xlu0 %v948, 32
      %v1577 = vpop.permute.xlu0 %1576
      %1578 = vrot.lane.b32.xlu0 %v951, 32
      %v1579 = vpop.permute.xlu0 %1578
      %1580 = vrot.lane.b32.xlu0 %v954, 32
      %v1581 = vpop.permute.xlu0 %1580
      %1582 = vrot.lane.b32.xlu0 %v957, 32
      %v1583 = vpop.permute.xlu0 %1582
      %1584 = vrot.lane.b32.xlu0 %v960, 32
      %v1585 = vpop.permute.xlu0 %1584
      %1586 = vrot.lane.b32.xlu0 %v963, 32
      %v1587 = vpop.permute.xlu0 %1586
      %1588 = vrot.lane.b32.xlu0 %v966, 32
      %v1589 = vpop.permute.xlu0 %1588
      %1590 = vrot.lane.b32.xlu0 %v969, 32
      %v1591 = vpop.permute.xlu0 %1590
      %1624 = vrot.lane.b32.xlu0 %v995, 48
      %v1625 = vpop.permute.xlu0 %1624
      %1626 = vrot.lane.b32.xlu0 %v998, 48
      %v1627 = vpop.permute.xlu0 %1626
      %1628 = vrot.lane.b32.xlu0 %v1001, 48
      %v1629 = vpop.permute.xlu0 %1628
      %1630 = vrot.lane.b32.xlu0 %v1004, 48
      %v1631 = vpop.permute.xlu0 %1630
      %1632 = vrot.lane.b32.xlu0 %v1007, 48
      %v1633 = vpop.permute.xlu0 %1632
      %1634 = vrot.lane.b32.xlu0 %v1010, 48
      %v1635 = vpop.permute.xlu0 %1634
      %1636 = vrot.lane.b32.xlu0 %v1013, 48
      %v1637 = vpop.permute.xlu0 %1636
      %1638 = vrot.lane.b32.xlu0 %v1016, 48
      %v1639 = vpop.permute.xlu0 %1638
      %1640 = vrot.lane.b32.xlu0 %v1019, 48
      %v1641 = vpop.permute.xlu0 %1640
      %1642 = vrot.lane.b32.xlu0 %v1022, 48
      %v1643 = vpop.permute.xlu0 %1642
      %1644 = vrot.lane.b32.xlu0 %v1025, 48
      %v1645 = vpop.permute.xlu0 %1644
      %1646 = vrot.lane.b32.xlu0 %v1028, 48
      %v1647 = vpop.permute.xlu0 %1646
      %1648 = vrot.lane.b32.xlu0 %v1031, 48
      %v1649 = vpop.permute.xlu0 %1648
      %1650 = vrot.lane.b32.xlu0 %v1034, 48
      %v1651 = vpop.permute.xlu0 %1650
      %1652 = vrot.lane.b32.xlu0 %v1037, 48
      %v1653 = vpop.permute.xlu0 %1652
      %1654 = vrot.lane.b32.xlu0 %v1040, 48
      %v1655 = vpop.permute.xlu0 %1654
      %1688 = vrot.lane.b32.xlu0 %v1070, 64
      %v1689 = vpop.permute.xlu0 %1688
      %1690 = vrot.lane.b32.xlu0 %v1073, 64
      %v1691 = vpop.permute.xlu0 %1690
      %1692 = vrot.lane.b32.xlu0 %v1076, 64
      %v1693 = vpop.permute.xlu0 %1692
      %1694 = vrot.lane.b32.xlu0 %v1079, 64
      %v1695 = vpop.permute.xlu0 %1694
      %1696 = vrot.lane.b32.xlu0 %v1082, 64
      %v1697 = vpop.permute.xlu0 %1696
      %1698 = vrot.lane.b32.xlu0 %v1085, 64
      %v1699 = vpop.permute.xlu0 %1698
      %1700 = vrot.lane.b32.xlu0 %v1088, 64
      %v1701 = vpop.permute.xlu0 %1700
      %1702 = vrot.lane.b32.xlu0 %v1091, 64
      %v1703 = vpop.permute.xlu0 %1702
      %1704 = vrot.lane.b32.xlu0 %v1094, 64
      %v1705 = vpop.permute.xlu0 %1704
      %1706 = vrot.lane.b32.xlu0 %v1097, 64
      %v1707 = vpop.permute.xlu0 %1706
      %1708 = vrot.lane.b32.xlu0 %v1100, 64
      %v1709 = vpop.permute.xlu0 %1708
      %1710 = vrot.lane.b32.xlu0 %v1103, 64
      %v1711 = vpop.permute.xlu0 %1710
      %1712 = vrot.lane.b32.xlu0 %v1106, 64
      %v1713 = vpop.permute.xlu0 %1712
      %1714 = vrot.lane.b32.xlu0 %v1109, 64
      %v1715 = vpop.permute.xlu0 %1714
      %1716 = vrot.lane.b32.xlu0 %v1112, 64
      %v1717 = vpop.permute.xlu0 %1716
      %1718 = vrot.lane.b32.xlu0 %v1115, 64
      %v1719 = vpop.permute.xlu0 %1718
      %1752 = vrot.lane.b32.xlu0 %v1213, 80
      %v1753 = vpop.permute.xlu0 %1752
      %1754 = vrot.lane.b32.xlu0 %v1216, 80
      %v1755 = vpop.permute.xlu0 %1754
      %1756 = vrot.lane.b32.xlu0 %v1219, 80
      %v1757 = vpop.permute.xlu0 %1756
      %1758 = vrot.lane.b32.xlu0 %v1222, 80
      %v1759 = vpop.permute.xlu0 %1758
      %1760 = vrot.lane.b32.xlu0 %v1225, 80
      %v1761 = vpop.permute.xlu0 %1760
      %1762 = vrot.lane.b32.xlu0 %v1228, 80
      %v1763 = vpop.permute.xlu0 %1762
      %1764 = vrot.lane.b32.xlu0 %v1231, 80
      %v1765 = vpop.permute.xlu0 %1764
      %1766 = vrot.lane.b32.xlu0 %v1234, 80
      %v1767 = vpop.permute.xlu0 %1766
      %1768 = vrot.lane.b32.xlu0 %v1237, 80
      %v1769 = vpop.permute.xlu0 %1768
      %1770 = vrot.lane.b32.xlu0 %v1240, 80
      %v1771 = vpop.permute.xlu0 %1770
      %1772 = vrot.lane.b32.xlu0 %v1243, 80
      %v1773 = vpop.permute.xlu0 %1772
      %1774 = vrot.lane.b32.xlu0 %v1246, 80
      %v1775 = vpop.permute.xlu0 %1774
      %1776 = vrot.lane.b32.xlu0 %v1249, 80
      %v1777 = vpop.permute.xlu0 %1776
      %1778 = vrot.lane.b32.xlu0 %v1252, 80
      %v1779 = vpop.permute.xlu0 %1778
      %1780 = vrot.lane.b32.xlu0 %v1255, 80
      %v1781 = vpop.permute.xlu0 %1780
      %1782 = vrot.lane.b32.xlu0 %v1258, 80
      %v1783 = vpop.permute.xlu0 %1782
      %1816 = vrot.lane.b32.xlu0 %v1284, 96
      %v1817 = vpop.permute.xlu0 %1816
      %1818 = vrot.lane.b32.xlu0 %v1287, 96
      %v1819 = vpop.permute.xlu0 %1818
      %1820 = vrot.lane.b32.xlu0 %v1290, 96
      %v1821 = vpop.permute.xlu0 %1820
      %1822 = vrot.lane.b32.xlu0 %v1293, 96
      %v1823 = vpop.permute.xlu0 %1822
      %1824 = vrot.lane.b32.xlu0 %v1296, 96
      %v1825 = vpop.permute.xlu0 %1824
      %1826 = vrot.lane.b32.xlu0 %v1299, 96
      %v1827 = vpop.permute.xlu0 %1826
      %1828 = vrot.lane.b32.xlu0 %v1302, 96
      %v1829 = vpop.permute.xlu0 %1828
      %1830 = vrot.lane.b32.xlu0 %v1305, 96
      %v1831 = vpop.permute.xlu0 %1830
      %1832 = vrot.lane.b32.xlu0 %v1308, 96
      %v1833 = vpop.permute.xlu0 %1832
      %1834 = vrot.lane.b32.xlu0 %v1311, 96
      %v1835 = vpop.permute.xlu0 %1834
      %1836 = vrot.lane.b32.xlu0 %v1314, 96
      %v1837 = vpop.permute.xlu0 %1836
      %1838 = vrot.lane.b32.xlu0 %v1317, 96
      %v1839 = vpop.permute.xlu0 %1838
      %1840 = vrot.lane.b32.xlu0 %v1320, 96
      %v1841 = vpop.permute.xlu0 %1840
      %1842 = vrot.lane.b32.xlu0 %v1323, 96
      %v1843 = vpop.permute.xlu0 %1842
      %1844 = vrot.lane.b32.xlu0 %v1326, 96
      %v1845 = vpop.permute.xlu0 %1844
      %1846 = vrot.lane.b32.xlu0 %v1329, 96
      %v1847 = vpop.permute.xlu0 %1846
      %1880 = vrot.lane.b32.xlu0 %v1359, 112
      %v1881 = vpop.permute.xlu0 %1880
      %1882 = vrot.lane.b32.xlu0 %v1362, 112
      %v1883 = vpop.permute.xlu0 %1882
      %1884 = vrot.lane.b32.xlu0 %v1365, 112
      %v1885 = vpop.permute.xlu0 %1884
      %1886 = vrot.lane.b32.xlu0 %v1368, 112
      %v1887 = vpop.permute.xlu0 %1886
      %1888 = vrot.lane.b32.xlu0 %v1371, 112
      %v1889 = vpop.permute.xlu0 %1888
      %1890 = vrot.lane.b32.xlu0 %v1374, 112
      %v1891 = vpop.permute.xlu0 %1890
      %1892 = vrot.lane.b32.xlu0 %v1377, 112
      %v1893 = vpop.permute.xlu0 %1892
      %1894 = vrot.lane.b32.xlu0 %v1380, 112
      %v1895 = vpop.permute.xlu0 %1894
      %1896 = vrot.lane.b32.xlu0 %v1383, 112
      %v1897 = vpop.permute.xlu0 %1896
      %1898 = vrot.lane.b32.xlu0 %v1386, 112
      %v1899 = vpop.permute.xlu0 %1898
      %1900 = vrot.lane.b32.xlu0 %v1389, 112
      %v1901 = vpop.permute.xlu0 %1900
      %1902 = vrot.lane.b32.xlu0 %v1392, 112
      %v1903 = vpop.permute.xlu0 %1902
      %1904 = vrot.lane.b32.xlu0 %v1395, 112
      %v1905 = vpop.permute.xlu0 %1904
      %1906 = vrot.lane.b32.xlu0 %v1398, 112
      %v1907 = vpop.permute.xlu0 %1906
      %1908 = vrot.lane.b32.xlu0 %v1401, 112
      %v1909 = vpop.permute.xlu0 %1908
      %1910 = vrot.lane.b32.xlu0 %v1404, 112
      %v1911 = vpop.permute.xlu0 %1910
      %v1928 = vsel %vm573, %v640, %v1497
      %v1929 = vsel %vm573, %v643, %v1499
      %v1930 = vsel %vm573, %v646, %v1501
      %v1931 = vsel %vm573, %v649, %v1503
      %v1932 = vsel %vm573, %v652, %v1505
      %v1933 = vsel %vm573, %v655, %v1507
      %v1934 = vsel %vm573, %v658, %v1509
      %v1935 = vsel %vm573, %v661, %v1511
      %v1936 = vsel %vm573, %v664, %v1513
      %v1937 = vsel %vm573, %v667, %v1515
      %v1938 = vsel %vm573, %v670, %v1517
      %v1939 = vsel %vm573, %v673, %v1519
      %v1940 = vsel %vm573, %v676, %v1521
      %v1941 = vsel %vm573, %v679, %v1523
      %v1942 = vsel %vm573, %v682, %v1525
      %v1943 = vsel %vm573, %v685, %v1527
      %vm1944 = vcmask 261120
      %v1945 = vsel %vm1944, %v1928, %v1561
      %v1946 = vsel %vm1944, %v1929, %v1563
      %v1947 = vsel %vm1944, %v1930, %v1565
      %v1948 = vsel %vm1944, %v1931, %v1567
      %v1949 = vsel %vm1944, %v1932, %v1569
      %v1950 = vsel %vm1944, %v1933, %v1571
      %v1951 = vsel %vm1944, %v1934, %v1573
      %v1952 = vsel %vm1944, %v1935, %v1575
      %v1953 = vsel %vm1944, %v1936, %v1577
      %v1954 = vsel %vm1944, %v1937, %v1579
      %v1955 = vsel %vm1944, %v1938, %v1581
      %v1956 = vsel %vm1944, %v1939, %v1583
      %v1957 = vsel %vm1944, %v1940, %v1585
      %v1958 = vsel %vm1944, %v1941, %v1587
      %v1959 = vsel %vm1944, %v1942, %v1589
      %v1960 = vsel %vm1944, %v1943, %v1591
      %vm1961 = vcmask 392192
      %v1962 = vsel %vm1961, %v1945, %v1625
      %v1963 = vsel %vm1961, %v1946, %v1627
      %v1964 = vsel %vm1961, %v1947, %v1629
      %v1965 = vsel %vm1961, %v1948, %v1631
      %v1966 = vsel %vm1961, %v1949, %v1633
      %v1967 = vsel %vm1961, %v1950, %v1635
      %v1968 = vsel %vm1961, %v1951, %v1637
      %v1969 = vsel %vm1961, %v1952, %v1639
      %v1970 = vsel %vm1961, %v1953, %v1641
      %v1971 = vsel %vm1961, %v1954, %v1643
      %v1972 = vsel %vm1961, %v1955, %v1645
      %v1973 = vsel %vm1961, %v1956, %v1647
      %v1974 = vsel %vm1961, %v1957, %v1649
      %v1975 = vsel %vm1961, %v1958, %v1651
      %v1976 = vsel %vm1961, %v1959, %v1653
      %v1977 = vsel %vm1961, %v1960, %v1655
      %vm1978 = vcmask 523264
      %v1979 = vsel %vm1978, %v1962, %v1689
      %v1980 = vsel %vm1978, %v1963, %v1691
      %v1981 = vsel %vm1978, %v1964, %v1693
      %v1982 = vsel %vm1978, %v1965, %v1695
      %v1983 = vsel %vm1978, %v1966, %v1697
      %v1984 = vsel %vm1978, %v1967, %v1699
      %v1985 = vsel %vm1978, %v1968, %v1701
      %v1986 = vsel %vm1978, %v1969, %v1703
      %v1987 = vsel %vm1978, %v1970, %v1705
      %v1988 = vsel %vm1978, %v1971, %v1707
      %v1989 = vsel %vm1978, %v1972, %v1709
      %v1990 = vsel %vm1978, %v1973, %v1711
      %v1991 = vsel %vm1978, %v1974, %v1713
      %v1992 = vsel %vm1978, %v1975, %v1715
      %v1993 = vsel %vm1978, %v1976, %v1717
      %v1994 = vsel %vm1978, %v1977, %v1719
      %vm1995 = vcmask 654336
      %v1996 = vsel %vm1995, %v1979, %v1753
      %v1997 = vsel %vm1995, %v1980, %v1755
      %v1998 = vsel %vm1995, %v1981, %v1757
      %v1999 = vsel %vm1995, %v1982, %v1759
      %v2000 = vsel %vm1995, %v1983, %v1761
      %v2001 = vsel %vm1995, %v1984, %v1763
      %v2002 = vsel %vm1995, %v1985, %v1765
      %v2003 = vsel %vm1995, %v1986, %v1767
      %v2004 = vsel %vm1995, %v1987, %v1769
      %v2005 = vsel %vm1995, %v1988, %v1771
      %v2006 = vsel %vm1995, %v1989, %v1773
      %v2007 = vsel %vm1995, %v1990, %v1775
      %v2008 = vsel %vm1995, %v1991, %v1777
      %v2009 = vsel %vm1995, %v1992, %v1779
      %v2010 = vsel %vm1995, %v1993, %v1781
      %v2011 = vsel %vm1995, %v1994, %v1783
      %vm2012 = vcmask 785408
      %v2013 = vsel %vm2012, %v1996, %v1817
      %v2014 = vsel %vm2012, %v1997, %v1819
      %v2015 = vsel %vm2012, %v1998, %v1821
      %v2016 = vsel %vm2012, %v1999, %v1823
      %v2017 = vsel %vm2012, %v2000, %v1825
      %v2018 = vsel %vm2012, %v2001, %v1827
      %v2019 = vsel %vm2012, %v2002, %v1829
      %v2020 = vsel %vm2012, %v2003, %v1831
      %v2021 = vsel %vm2012, %v2004, %v1833
      %v2022 = vsel %vm2012, %v2005, %v1835
      %v2023 = vsel %vm2012, %v2006, %v1837
      %v2024 = vsel %vm2012, %v2007, %v1839
      %v2025 = vsel %vm2012, %v2008, %v1841
      %v2026 = vsel %vm2012, %v2009, %v1843
      %v2027 = vsel %vm2012, %v2010, %v1845
      %v2028 = vsel %vm2012, %v2011, %v1847
      %vm2029 = vcmask 916480
      %v2030 = vsel %vm2029, %v2013, %v1881
      %v2031 = vsel %vm2029, %v2014, %v1883
      %v2032 = vsel %vm2029, %v2015, %v1885
      %v2033 = vsel %vm2029, %v2016, %v1887
      %v2034 = vsel %vm2029, %v2017, %v1889
      %v2035 = vsel %vm2029, %v2018, %v1891
      %v2036 = vsel %vm2029, %v2019, %v1893
      %v2037 = vsel %vm2029, %v2020, %v1895
      %v2038 = vsel %vm2029, %v2021, %v1897
      %v2039 = vsel %vm2029, %v2022, %v1899
      %v2040 = vsel %vm2029, %v2023, %v1901
      %v2041 = vsel %vm2029, %v2024, %v1903
      %v2042 = vsel %vm2029, %v2025, %v1905
      %v2043 = vsel %vm2029, %v2026, %v1907
      %v2044 = vsel %vm2029, %v2027, %v1909
      %v2045 = vsel %vm2029, %v2028, %v1911
      %v2046 = vld [vmem:[%s5] sm:$0x3]
      %v2048 = vperm.slane %v2046, 0
      %v2049 = vperm.slane %v2046, 1
      %v2052 = vadd.f32 %v2030, %v2048
      %v2053 = vadd.f32 %v1433, %v2049
      %v2054 = vadd.f32 %v2031, %v2048
      %v2055 = vadd.f32 %v1436, %v2049
      %v2056 = vadd.f32 %v2032, %v2048
      %v2057 = vadd.f32 %v1439, %v2049
      %v2058 = vadd.f32 %v2033, %v2048
      %v2059 = vadd.f32 %v1442, %v2049
      %v2060 = vadd.f32 %v2034, %v2048
      %v2061 = vadd.f32 %v1445, %v2049
      %v2062 = vadd.f32 %v2035, %v2048
      %v2063 = vadd.f32 %v1448, %v2049
      %v2064 = vadd.f32 %v2036, %v2048
      %v2065 = vadd.f32 %v1451, %v2049
      %v2066 = vadd.f32 %v2037, %v2048
      %v2067 = vadd.f32 %v1454, %v2049
      %v2068 = vadd.f32 %v2038, %v2048
      %v2069 = vadd.f32 %v1457, %v2049
      %v2070 = vadd.f32 %v2039, %v2048
      %v2071 = vadd.f32 %v1460, %v2049
      %v2072 = vadd.f32 %v2040, %v2048
      %v2073 = vadd.f32 %v1463, %v2049
      %v2074 = vadd.f32 %v2041, %v2048
      %v2075 = vadd.f32 %v1466, %v2049
      %v2076 = vadd.f32 %v2042, %v2048
      %v2077 = vadd.f32 %v1469, %v2049
      %v2078 = vadd.f32 %v2043, %v2048
      %v2079 = vadd.f32 %v1472, %v2049
      %v2080 = vadd.f32 %v2044, %v2048
      %v2081 = vadd.f32 %v1475, %v2049
      %v2082 = vadd.f32 %v2045, %v2048
      %v2083 = vadd.f32 %v1478, %v2049
      %2100 = vrot.lane.b32.xlu0 %v640, 112
      %v2101 = vpop.permute.xlu0 %2100
      %2102 = vrot.lane.b32.xlu0 %v643, 112
      %v2103 = vpop.permute.xlu0 %2102
      %2104 = vrot.lane.b32.xlu0 %v646, 112
      %v2105 = vpop.permute.xlu0 %2104
      %2106 = vrot.lane.b32.xlu0 %v649, 112
      %v2107 = vpop.permute.xlu0 %2106
      %2108 = vrot.lane.b32.xlu0 %v652, 112
      %v2109 = vpop.permute.xlu0 %2108
      %2110 = vrot.lane.b32.xlu0 %v655, 112
      %v2111 = vpop.permute.xlu0 %2110
      %2112 = vrot.lane.b32.xlu0 %v658, 112
      %v2113 = vpop.permute.xlu0 %2112
      %2114 = vrot.lane.b32.xlu0 %v661, 112
      %v2115 = vpop.permute.xlu0 %2114
      %2116 = vrot.lane.b32.xlu0 %v664, 112
      %v2117 = vpop.permute.xlu0 %2116
      %2118 = vrot.lane.b32.xlu0 %v667, 112
      %v2119 = vpop.permute.xlu0 %2118
      %2120 = vrot.lane.b32.xlu0 %v670, 112
      %v2121 = vpop.permute.xlu0 %2120
      %2122 = vrot.lane.b32.xlu0 %v673, 112
      %v2123 = vpop.permute.xlu0 %2122
      %2124 = vrot.lane.b32.xlu0 %v676, 112
      %v2125 = vpop.permute.xlu0 %2124
      %2126 = vrot.lane.b32.xlu0 %v679, 112
      %v2127 = vpop.permute.xlu0 %2126
      %2128 = vrot.lane.b32.xlu0 %v682, 112
      %v2129 = vpop.permute.xlu0 %2128
      %2130 = vrot.lane.b32.xlu0 %v685, 112
      %v2131 = vpop.permute.xlu0 %2130
      %2148 = vrot.lane.b32.xlu0 %v924, 16
      %v2149 = vpop.permute.xlu0 %2148
      %2150 = vrot.lane.b32.xlu0 %v927, 16
      %v2151 = vpop.permute.xlu0 %2150
      %2152 = vrot.lane.b32.xlu0 %v930, 16
      %v2153 = vpop.permute.xlu0 %2152
      %2154 = vrot.lane.b32.xlu0 %v933, 16
      %v2155 = vpop.permute.xlu0 %2154
      %2156 = vrot.lane.b32.xlu0 %v936, 16
      %v2157 = vpop.permute.xlu0 %2156
      %2158 = vrot.lane.b32.xlu0 %v939, 16
      %v2159 = vpop.permute.xlu0 %2158
      %2160 = vrot.lane.b32.xlu0 %v942, 16
      %v2161 = vpop.permute.xlu0 %2160
      %2162 = vrot.lane.b32.xlu0 %v945, 16
      %v2163 = vpop.permute.xlu0 %2162
      %2164 = vrot.lane.b32.xlu0 %v948, 16
      %v2165 = vpop.permute.xlu0 %2164
      %2166 = vrot.lane.b32.xlu0 %v951, 16
      %v2167 = vpop.permute.xlu0 %2166
      %2168 = vrot.lane.b32.xlu0 %v954, 16
      %v2169 = vpop.permute.xlu0 %2168
      %2170 = vrot.lane.b32.xlu0 %v957, 16
      %v2171 = vpop.permute.xlu0 %2170
      %2172 = vrot.lane.b32.xlu0 %v960, 16
      %v2173 = vpop.permute.xlu0 %2172
      %2174 = vrot.lane.b32.xlu0 %v963, 16
      %v2175 = vpop.permute.xlu0 %2174
      %2176 = vrot.lane.b32.xlu0 %v966, 16
      %v2177 = vpop.permute.xlu0 %2176
      %2178 = vrot.lane.b32.xlu0 %v969, 16
      %v2179 = vpop.permute.xlu0 %2178
      %2196 = vrot.lane.b32.xlu0 %v995, 32
      %v2197 = vpop.permute.xlu0 %2196
      %2198 = vrot.lane.b32.xlu0 %v998, 32
      %v2199 = vpop.permute.xlu0 %2198
      %2200 = vrot.lane.b32.xlu0 %v1001, 32
      %v2201 = vpop.permute.xlu0 %2200
      %2202 = vrot.lane.b32.xlu0 %v1004, 32
      %v2203 = vpop.permute.xlu0 %2202
      %2204 = vrot.lane.b32.xlu0 %v1007, 32
      %v2205 = vpop.permute.xlu0 %2204
      %2206 = vrot.lane.b32.xlu0 %v1010, 32
      %v2207 = vpop.permute.xlu0 %2206
      %2208 = vrot.lane.b32.xlu0 %v1013, 32
      %v2209 = vpop.permute.xlu0 %2208
      %2210 = vrot.lane.b32.xlu0 %v1016, 32
      %v2211 = vpop.permute.xlu0 %2210
      %2212 = vrot.lane.b32.xlu0 %v1019, 32
      %v2213 = vpop.permute.xlu0 %2212
      %2214 = vrot.lane.b32.xlu0 %v1022, 32
      %v2215 = vpop.permute.xlu0 %2214
      %2216 = vrot.lane.b32.xlu0 %v1025, 32
      %v2217 = vpop.permute.xlu0 %2216
      %2218 = vrot.lane.b32.xlu0 %v1028, 32
      %v2219 = vpop.permute.xlu0 %2218
      %2220 = vrot.lane.b32.xlu0 %v1031, 32
      %v2221 = vpop.permute.xlu0 %2220
      %2222 = vrot.lane.b32.xlu0 %v1034, 32
      %v2223 = vpop.permute.xlu0 %2222
      %2224 = vrot.lane.b32.xlu0 %v1037, 32
      %v2225 = vpop.permute.xlu0 %2224
      %2226 = vrot.lane.b32.xlu0 %v1040, 32
      %v2227 = vpop.permute.xlu0 %2226
      %2244 = vrot.lane.b32.xlu0 %v1070, 48
      %v2245 = vpop.permute.xlu0 %2244
      %2246 = vrot.lane.b32.xlu0 %v1073, 48
      %v2247 = vpop.permute.xlu0 %2246
      %2248 = vrot.lane.b32.xlu0 %v1076, 48
      %v2249 = vpop.permute.xlu0 %2248
      %2250 = vrot.lane.b32.xlu0 %v1079, 48
      %v2251 = vpop.permute.xlu0 %2250
      %2252 = vrot.lane.b32.xlu0 %v1082, 48
      %v2253 = vpop.permute.xlu0 %2252
      %2254 = vrot.lane.b32.xlu0 %v1085, 48
      %v2255 = vpop.permute.xlu0 %2254
      %2256 = vrot.lane.b32.xlu0 %v1088, 48
      %v2257 = vpop.permute.xlu0 %2256
      %2258 = vrot.lane.b32.xlu0 %v1091, 48
      %v2259 = vpop.permute.xlu0 %2258
      %2260 = vrot.lane.b32.xlu0 %v1094, 48
      %v2261 = vpop.permute.xlu0 %2260
      %2262 = vrot.lane.b32.xlu0 %v1097, 48
      %v2263 = vpop.permute.xlu0 %2262
      %2264 = vrot.lane.b32.xlu0 %v1100, 48
      %v2265 = vpop.permute.xlu0 %2264
      %2266 = vrot.lane.b32.xlu0 %v1103, 48
      %v2267 = vpop.permute.xlu0 %2266
      %2268 = vrot.lane.b32.xlu0 %v1106, 48
      %v2269 = vpop.permute.xlu0 %2268
      %2270 = vrot.lane.b32.xlu0 %v1109, 48
      %v2271 = vpop.permute.xlu0 %2270
      %2272 = vrot.lane.b32.xlu0 %v1112, 48
      %v2273 = vpop.permute.xlu0 %2272
      %2274 = vrot.lane.b32.xlu0 %v1115, 48
      %v2275 = vpop.permute.xlu0 %2274
      %2292 = vrot.lane.b32.xlu0 %v1213, 64
      %v2293 = vpop.permute.xlu0 %2292
      %2294 = vrot.lane.b32.xlu0 %v1216, 64
      %v2295 = vpop.permute.xlu0 %2294
      %2296 = vrot.lane.b32.xlu0 %v1219, 64
      %v2297 = vpop.permute.xlu0 %2296
      %2298 = vrot.lane.b32.xlu0 %v1222, 64
      %v2299 = vpop.permute.xlu0 %2298
      %2300 = vrot.lane.b32.xlu0 %v1225, 64
      %v2301 = vpop.permute.xlu0 %2300
      %2302 = vrot.lane.b32.xlu0 %v1228, 64
      %v2303 = vpop.permute.xlu0 %2302
      %2304 = vrot.lane.b32.xlu0 %v1231, 64
      %v2305 = vpop.permute.xlu0 %2304
      %2306 = vrot.lane.b32.xlu0 %v1234, 64
      %v2307 = vpop.permute.xlu0 %2306
      %2308 = vrot.lane.b32.xlu0 %v1237, 64
      %v2309 = vpop.permute.xlu0 %2308
      %2310 = vrot.lane.b32.xlu0 %v1240, 64
      %v2311 = vpop.permute.xlu0 %2310
      %2312 = vrot.lane.b32.xlu0 %v1243, 64
      %v2313 = vpop.permute.xlu0 %2312
      %2314 = vrot.lane.b32.xlu0 %v1246, 64
      %v2315 = vpop.permute.xlu0 %2314
      %2316 = vrot.lane.b32.xlu0 %v1249, 64
      %v2317 = vpop.permute.xlu0 %2316
      %2318 = vrot.lane.b32.xlu0 %v1252, 64
      %v2319 = vpop.permute.xlu0 %2318
      %2320 = vrot.lane.b32.xlu0 %v1255, 64
      %v2321 = vpop.permute.xlu0 %2320
      %2322 = vrot.lane.b32.xlu0 %v1258, 64
      %v2323 = vpop.permute.xlu0 %2322
      %2340 = vrot.lane.b32.xlu0 %v1284, 80
      %v2341 = vpop.permute.xlu0 %2340
      %2342 = vrot.lane.b32.xlu0 %v1287, 80
      %v2343 = vpop.permute.xlu0 %2342
      %2344 = vrot.lane.b32.xlu0 %v1290, 80
      %v2345 = vpop.permute.xlu0 %2344
      %2346 = vrot.lane.b32.xlu0 %v1293, 80
      %v2347 = vpop.permute.xlu0 %2346
      %2348 = vrot.lane.b32.xlu0 %v1296, 80
      %v2349 = vpop.permute.xlu0 %2348
      %2350 = vrot.lane.b32.xlu0 %v1299, 80
      %v2351 = vpop.permute.xlu0 %2350
      %2352 = vrot.lane.b32.xlu0 %v1302, 80
      %v2353 = vpop.permute.xlu0 %2352
      %2354 = vrot.lane.b32.xlu0 %v1305, 80
      %v2355 = vpop.permute.xlu0 %2354
      %2356 = vrot.lane.b32.xlu0 %v1308, 80
      %v2357 = vpop.permute.xlu0 %2356
      %2358 = vrot.lane.b32.xlu0 %v1311, 80
      %v2359 = vpop.permute.xlu0 %2358
      %2360 = vrot.lane.b32.xlu0 %v1314, 80
      %v2361 = vpop.permute.xlu0 %2360
      %2362 = vrot.lane.b32.xlu0 %v1317, 80
      %v2363 = vpop.permute.xlu0 %2362
      %2364 = vrot.lane.b32.xlu0 %v1320, 80
      %v2365 = vpop.permute.xlu0 %2364
      %2366 = vrot.lane.b32.xlu0 %v1323, 80
      %v2367 = vpop.permute.xlu0 %2366
      %2368 = vrot.lane.b32.xlu0 %v1326, 80
      %v2369 = vpop.permute.xlu0 %2368
      %2370 = vrot.lane.b32.xlu0 %v1329, 80
      %v2371 = vpop.permute.xlu0 %2370
      %2388 = vrot.lane.b32.xlu0 %v1359, 96
      %v2389 = vpop.permute.xlu0 %2388
      %2390 = vrot.lane.b32.xlu0 %v1362, 96
      %v2391 = vpop.permute.xlu0 %2390
      %2392 = vrot.lane.b32.xlu0 %v1365, 96
      %v2393 = vpop.permute.xlu0 %2392
      %2394 = vrot.lane.b32.xlu0 %v1368, 96
      %v2395 = vpop.permute.xlu0 %2394
      %2396 = vrot.lane.b32.xlu0 %v1371, 96
      %v2397 = vpop.permute.xlu0 %2396
      %2398 = vrot.lane.b32.xlu0 %v1374, 96
      %v2399 = vpop.permute.xlu0 %2398
      %2400 = vrot.lane.b32.xlu0 %v1377, 96
      %v2401 = vpop.permute.xlu0 %2400
      %2402 = vrot.lane.b32.xlu0 %v1380, 96
      %v2403 = vpop.permute.xlu0 %2402
      %2404 = vrot.lane.b32.xlu0 %v1383, 96
      %v2405 = vpop.permute.xlu0 %2404
      %2406 = vrot.lane.b32.xlu0 %v1386, 96
      %v2407 = vpop.permute.xlu0 %2406
      %2408 = vrot.lane.b32.xlu0 %v1389, 96
      %v2409 = vpop.permute.xlu0 %2408
      %2410 = vrot.lane.b32.xlu0 %v1392, 96
      %v2411 = vpop.permute.xlu0 %2410
      %2412 = vrot.lane.b32.xlu0 %v1395, 96
      %v2413 = vpop.permute.xlu0 %2412
      %2414 = vrot.lane.b32.xlu0 %v1398, 96
      %v2415 = vpop.permute.xlu0 %2414
      %2416 = vrot.lane.b32.xlu0 %v1401, 96
      %v2417 = vpop.permute.xlu0 %2416
      %2418 = vrot.lane.b32.xlu0 %v1404, 96
      %v2419 = vpop.permute.xlu0 %2418
      %2452 = vrot.lane.b32.xlu0 %v1433, 112
      %v2453 = vpop.permute.xlu0 %2452
      %2454 = vrot.lane.b32.xlu0 %v1436, 112
      %v2455 = vpop.permute.xlu0 %2454
      %2456 = vrot.lane.b32.xlu0 %v1439, 112
      %v2457 = vpop.permute.xlu0 %2456
      %2458 = vrot.lane.b32.xlu0 %v1442, 112
      %v2459 = vpop.permute.xlu0 %2458
      %2460 = vrot.lane.b32.xlu0 %v1445, 112
      %v2461 = vpop.permute.xlu0 %2460
      %2462 = vrot.lane.b32.xlu0 %v1448, 112
      %v2463 = vpop.permute.xlu0 %2462
      %2464 = vrot.lane.b32.xlu0 %v1451, 112
      %v2465 = vpop.permute.xlu0 %2464
      %2466 = vrot.lane.b32.xlu0 %v1454, 112
      %v2467 = vpop.permute.xlu0 %2466
      %2468 = vrot.lane.b32.xlu0 %v1457, 112
      %v2469 = vpop.permute.xlu0 %2468
      %2470 = vrot.lane.b32.xlu0 %v1460, 112
      %v2471 = vpop.permute.xlu0 %2470
      %2472 = vrot.lane.b32.xlu0 %v1463, 112
      %v2473 = vpop.permute.xlu0 %2472
      %2474 = vrot.lane.b32.xlu0 %v1466, 112
      %v2475 = vpop.permute.xlu0 %2474
      %2476 = vrot.lane.b32.xlu0 %v1469, 112
      %v2477 = vpop.permute.xlu0 %2476
      %2478 = vrot.lane.b32.xlu0 %v1472, 112
      %v2479 = vpop.permute.xlu0 %2478
      %2480 = vrot.lane.b32.xlu0 %v1475, 112
      %v2481 = vpop.permute.xlu0 %2480
      %2482 = vrot.lane.b32.xlu0 %v1478, 112
      %v2483 = vpop.permute.xlu0 %2482
      %v2500 = vsel %vm573, %v2101, %v786
      %v2501 = vsel %vm573, %v2103, %v789
      %v2502 = vsel %vm573, %v2105, %v792
      %v2503 = vsel %vm573, %v2107, %v795
      %v2504 = vsel %vm573, %v2109, %v798
      %v2505 = vsel %vm573, %v2111, %v801
      %v2506 = vsel %vm573, %v2113, %v804
      %v2507 = vsel %vm573, %v2115, %v807
      %v2508 = vsel %vm573, %v2117, %v810
      %v2509 = vsel %vm573, %v2119, %v813
      %v2510 = vsel %vm573, %v2121, %v816
      %v2511 = vsel %vm573, %v2123, %v819
      %v2512 = vsel %vm573, %v2125, %v822
      %v2513 = vsel %vm573, %v2127, %v825
      %v2514 = vsel %vm573, %v2129, %v828
      %v2515 = vsel %vm573, %v2131, %v831
      %v2516 = vsel %vm1944, %v2500, %v2149
      %v2517 = vsel %vm1944, %v2501, %v2151
      %v2518 = vsel %vm1944, %v2502, %v2153
      %v2519 = vsel %vm1944, %v2503, %v2155
      %v2520 = vsel %vm1944, %v2504, %v2157
      %v2521 = vsel %vm1944, %v2505, %v2159
      %v2522 = vsel %vm1944, %v2506, %v2161
      %v2523 = vsel %vm1944, %v2507, %v2163
      %v2524 = vsel %vm1944, %v2508, %v2165
      %v2525 = vsel %vm1944, %v2509, %v2167
      %v2526 = vsel %vm1944, %v2510, %v2169
      %v2527 = vsel %vm1944, %v2511, %v2171
      %v2528 = vsel %vm1944, %v2512, %v2173
      %v2529 = vsel %vm1944, %v2513, %v2175
      %v2530 = vsel %vm1944, %v2514, %v2177
      %v2531 = vsel %vm1944, %v2515, %v2179
      %v2532 = vsel %vm1961, %v2516, %v2197
      %v2533 = vsel %vm1961, %v2517, %v2199
      %v2534 = vsel %vm1961, %v2518, %v2201
      %v2535 = vsel %vm1961, %v2519, %v2203
      %v2536 = vsel %vm1961, %v2520, %v2205
      %v2537 = vsel %vm1961, %v2521, %v2207
      %v2538 = vsel %vm1961, %v2522, %v2209
      %v2539 = vsel %vm1961, %v2523, %v2211
      %v2540 = vsel %vm1961, %v2524, %v2213
      %v2541 = vsel %vm1961, %v2525, %v2215
      %v2542 = vsel %vm1961, %v2526, %v2217
      %v2543 = vsel %vm1961, %v2527, %v2219
      %v2544 = vsel %vm1961, %v2528, %v2221
      %v2545 = vsel %vm1961, %v2529, %v2223
      %v2546 = vsel %vm1961, %v2530, %v2225
      %v2547 = vsel %vm1961, %v2531, %v2227
      %v2548 = vsel %vm1978, %v2532, %v2245
      %v2549 = vsel %vm1978, %v2533, %v2247
      %v2550 = vsel %vm1978, %v2534, %v2249
      %v2551 = vsel %vm1978, %v2535, %v2251
      %v2552 = vsel %vm1978, %v2536, %v2253
      %v2553 = vsel %vm1978, %v2537, %v2255
      %v2554 = vsel %vm1978, %v2538, %v2257
      %v2555 = vsel %vm1978, %v2539, %v2259
      %v2556 = vsel %vm1978, %v2540, %v2261
      %v2557 = vsel %vm1978, %v2541, %v2263
      %v2558 = vsel %vm1978, %v2542, %v2265
      %v2559 = vsel %vm1978, %v2543, %v2267
      %v2560 = vsel %vm1978, %v2544, %v2269
      %v2561 = vsel %vm1978, %v2545, %v2271
      %v2562 = vsel %vm1978, %v2546, %v2273
      %v2563 = vsel %vm1978, %v2547, %v2275
      %v2564 = vsel %vm1995, %v2548, %v2293
      %v2565 = vsel %vm1995, %v2549, %v2295
      %v2566 = vsel %vm1995, %v2550, %v2297
      %v2567 = vsel %vm1995, %v2551, %v2299
      %v2568 = vsel %vm1995, %v2552, %v2301
      %v2569 = vsel %vm1995, %v2553, %v2303
      %v2570 = vsel %vm1995, %v2554, %v2305
      %v2571 = vsel %vm1995, %v2555, %v2307
      %v2572 = vsel %vm1995, %v2556, %v2309
      %v2573 = vsel %vm1995, %v2557, %v2311
      %v2574 = vsel %vm1995, %v2558, %v2313
      %v2575 = vsel %vm1995, %v2559, %v2315
      %v2576 = vsel %vm1995, %v2560, %v2317
      %v2577 = vsel %vm1995, %v2561, %v2319
      %v2578 = vsel %vm1995, %v2562, %v2321
      %v2579 = vsel %vm1995, %v2563, %v2323
      %v2580 = vsel %vm2012, %v2564, %v2341
      %v2581 = vsel %vm2012, %v2565, %v2343
      %v2582 = vsel %vm2012, %v2566, %v2345
      %v2583 = vsel %vm2012, %v2567, %v2347
      %v2584 = vsel %vm2012, %v2568, %v2349
      %v2585 = vsel %vm2012, %v2569, %v2351
      %v2586 = vsel %vm2012, %v2570, %v2353
      %v2587 = vsel %vm2012, %v2571, %v2355
      %v2588 = vsel %vm2012, %v2572, %v2357
      %v2589 = vsel %vm2012, %v2573, %v2359
      %v2590 = vsel %vm2012, %v2574, %v2361
      %v2591 = vsel %vm2012, %v2575, %v2363
      %v2592 = vsel %vm2012, %v2576, %v2365
      %v2593 = vsel %vm2012, %v2577, %v2367
      %v2594 = vsel %vm2012, %v2578, %v2369
      %v2595 = vsel %vm2012, %v2579, %v2371
      %v2596 = vsel %vm2029, %v2580, %v2389
      %v2597 = vsel %vm2029, %v2581, %v2391
      %v2598 = vsel %vm2029, %v2582, %v2393
      %v2599 = vsel %vm2029, %v2583, %v2395
      %v2600 = vsel %vm2029, %v2584, %v2397
      %v2601 = vsel %vm2029, %v2585, %v2399
      %v2602 = vsel %vm2029, %v2586, %v2401
      %v2603 = vsel %vm2029, %v2587, %v2403
      %v2604 = vsel %vm2029, %v2588, %v2405
      %v2605 = vsel %vm2029, %v2589, %v2407
      %v2606 = vsel %vm2029, %v2590, %v2409
      %v2607 = vsel %vm2029, %v2591, %v2411
      %v2608 = vsel %vm2029, %v2592, %v2413
      %v2609 = vsel %vm2029, %v2593, %v2415
      %v2610 = vsel %vm2029, %v2594, %v2417
      %v2611 = vsel %vm2029, %v2595, %v2419
      %v2612 = vld [vmem:[%s6] sm:$0x3]
      %v2614 = vperm.slane %v2612, 0
      %v2615 = vperm.slane %v2612, 1
      %v2618 = vadd.f32 %v2596, %v2614
      %v2619 = vadd.f32 %v2453, %v2615
      %v2620 = vadd.f32 %v2597, %v2614
      %v2621 = vadd.f32 %v2455, %v2615
      %v2622 = vadd.f32 %v2598, %v2614
      %v2623 = vadd.f32 %v2457, %v2615
      %v2624 = vadd.f32 %v2599, %v2614
      %v2625 = vadd.f32 %v2459, %v2615
      %v2626 = vadd.f32 %v2600, %v2614
      %v2627 = vadd.f32 %v2461, %v2615
      %v2628 = vadd.f32 %v2601, %v2614
      %v2629 = vadd.f32 %v2463, %v2615
      %v2630 = vadd.f32 %v2602, %v2614
      %v2631 = vadd.f32 %v2465, %v2615
      %v2632 = vadd.f32 %v2603, %v2614
      %v2633 = vadd.f32 %v2467, %v2615
      %v2634 = vadd.f32 %v2604, %v2614
      %v2635 = vadd.f32 %v2469, %v2615
      %v2636 = vadd.f32 %v2605, %v2614
      %v2637 = vadd.f32 %v2471, %v2615
      %v2638 = vadd.f32 %v2606, %v2614
      %v2639 = vadd.f32 %v2473, %v2615
      %v2640 = vadd.f32 %v2607, %v2614
      %v2641 = vadd.f32 %v2475, %v2615
      %v2642 = vadd.f32 %v2608, %v2614
      %v2643 = vadd.f32 %v2477, %v2615
      %v2644 = vadd.f32 %v2609, %v2614
      %v2645 = vadd.f32 %v2479, %v2615
      %v2646 = vadd.f32 %v2610, %v2614
      %v2647 = vadd.f32 %v2481, %v2615
      %v2648 = vadd.f32 %v2611, %v2614
      %v2649 = vadd.f32 %v2483, %v2615
      %v2650 = vld [vmem:[%s7] sm:$0xff]
      %v2651 = vld [vmem:[%s7 + $0x8] sm:$0xff]
      %v2652 = vld [vmem:[%s7 + $0x10] sm:$0xff]
      %v2653 = vld [vmem:[%s7 + $0x18] sm:$0xff]
      %v2654 = vld [vmem:[%s7 + $0x20] sm:$0xff]
      %v2655 = vld [vmem:[%s7 + $0x28] sm:$0xff]
      %v2656 = vld [vmem:[%s7 + $0x30] sm:$0xff]
      %v2657 = vld [vmem:[%s7 + $0x38] sm:$0xff]
      %v2658 = vld [vmem:[%s7 + $0x40] sm:$0xff]
      %v2659 = vld [vmem:[%s7 + $0x48] sm:$0xff]
      %v2660 = vld [vmem:[%s7 + $0x50] sm:$0xff]
      %v2661 = vld [vmem:[%s7 + $0x58] sm:$0xff]
      %v2662 = vld [vmem:[%s7 + $0x60] sm:$0xff]
      %v2663 = vld [vmem:[%s7 + $0x68] sm:$0xff]
      %v2664 = vld [vmem:[%s7 + $0x70] sm:$0xff]
      %v2665 = vld [vmem:[%s7 + $0x78] sm:$0xff]
      %v2666 = vld [vmem:[%s7 + $0x80] sm:$0xff]
      %v2667 = vld [vmem:[%s7 + $0x88] sm:$0xff]
      %v2668 = vld [vmem:[%s7 + $0x90] sm:$0xff]
      %v2669 = vld [vmem:[%s7 + $0x98] sm:$0xff]
      %v2671 = vsel %vm1944, %v1139, 0
      %v2674 = vsel %vm1944, %v1142, 0
      %v2677 = vsel %vm1944, %v1145, 0
      %v2680 = vsel %vm1944, %v1148, 0
      %v2683 = vsel %vm1944, %v1151, 0
      %v2686 = vsel %vm1944, %v1154, 0
      %v2689 = vsel %vm1944, %v1157, 0
      %v2692 = vsel %vm1944, %v1160, 0
      %v2695 = vsel %vm1944, %v1163, 0
      %v2698 = vsel %vm1944, %v1166, 0
      %v2701 = vsel %vm1944, %v1169, 0
      %v2704 = vsel %vm1944, %v1172, 0
      %v2707 = vsel %vm1944, %v1175, 0
      %v2710 = vsel %vm1944, %v1178, 0
      %v2713 = vsel %vm1944, %v1181, 0
      %v2716 = vsel %vm1944, %v1184, 0
      %2718 = vmatpush.msra.mxu0 0.0
      %2719 = vmatpush.msra.mxu0 0.0
      %2720 = vmatpush.msra.mxu0 0.0
      %2721 = vmatpush.msra.mxu0 0.0
      %2722 = vmatpush.msra.mxu0 0.0
      %2723 = vmatpush.msra.mxu0 0.0
      %2724 = vmatpush.msra.mxu0 0.0
      %2725 = vmatpush.msra.mxu0 0.0
      %2726 = vmatpush.msra.mxu0 0.0
      %2727 = vmatpush.msra.mxu0 0.0
      %2728 = vmatpush.msra.mxu0 0.0
      %2729 = vmatpush.msra.mxu0 0.0
      %2730 = vmatpush.msra.mxu0 %v2665
      %2731 = vmatpush.msra.mxu0 %v2660
      %2732 = vmatpush.msra.mxu0 %v2655
      %2733 = vmatpush.msra.mxu0 %v2650
      %2734 = vmatmul.f32.gmra.mxu0 %v2671
      %v2735 = vpop.f32.mrf.mxu0
      %v2736 = vadd.f32 0.0, %v2735
      %2737 = vmatmul.f32.gmra.mxu0 %v2674
      %v2738 = vpop.f32.mrf.mxu0
      %v2739 = vadd.f32 0.0, %v2738
      %2740 = vmatmul.f32.gmra.mxu0 %v2677
      %v2741 = vpop.f32.mrf.mxu0
      %v2742 = vadd.f32 0.0, %v2741
      %2743 = vmatmul.f32.gmra.mxu0 %v2680
      %v2744 = vpop.f32.mrf.mxu0
      %v2745 = vadd.f32 0.0, %v2744
      %2746 = vmatmul.f32.gmra.mxu0 %v2683
      %v2747 = vpop.f32.mrf.mxu0
      %v2748 = vadd.f32 0.0, %v2747
      %2749 = vmatmul.f32.gmra.mxu0 %v2686
      %v2750 = vpop.f32.mrf.mxu0
      %v2751 = vadd.f32 0.0, %v2750
      %2752 = vmatmul.f32.gmra.mxu0 %v2689
      %v2753 = vpop.f32.mrf.mxu0
      %v2754 = vadd.f32 0.0, %v2753
      %2755 = vmatmul.f32.gmra.mxu0 %v2692
      %v2756 = vpop.f32.mrf.mxu0
      %v2757 = vadd.f32 0.0, %v2756
      %2758 = vmatmul.f32.gmra.mxu0 %v2695
      %v2759 = vpop.f32.mrf.mxu0
      %v2760 = vadd.f32 0.0, %v2759
      %2761 = vmatmul.f32.gmra.mxu0 %v2698
      %v2762 = vpop.f32.mrf.mxu0
      %v2763 = vadd.f32 0.0, %v2762
      %2764 = vmatmul.f32.gmra.mxu0 %v2701
      %v2765 = vpop.f32.mrf.mxu0
      %v2766 = vadd.f32 0.0, %v2765
      %2767 = vmatmul.f32.gmra.mxu0 %v2704
      %v2768 = vpop.f32.mrf.mxu0
      %v2769 = vadd.f32 0.0, %v2768
      %2770 = vmatmul.f32.gmra.mxu0 %v2707
      %v2771 = vpop.f32.mrf.mxu0
      %v2772 = vadd.f32 0.0, %v2771
      %2773 = vmatmul.f32.gmra.mxu0 %v2710
      %v2774 = vpop.f32.mrf.mxu0
      %v2775 = vadd.f32 0.0, %v2774
      %2776 = vmatmul.f32.gmra.mxu0 %v2713
      %v2777 = vpop.f32.mrf.mxu0
      %v2778 = vadd.f32 0.0, %v2777
      %2779 = vmatmul.f32.gmra.mxu0 %v2716
      %v2780 = vpop.f32.mrf.mxu0
      %v2781 = vadd.f32 0.0, %v2780
      %2782 = vdwg.mxu0
      %2783 = vmatpush.msra.mxu0 0.0
      %2784 = vmatpush.msra.mxu0 0.0
      %2785 = vmatpush.msra.mxu0 0.0
      %2786 = vmatpush.msra.mxu0 0.0
      %2787 = vmatpush.msra.mxu0 0.0
      %2788 = vmatpush.msra.mxu0 0.0
      %2789 = vmatpush.msra.mxu0 0.0
      %2790 = vmatpush.msra.mxu0 0.0
      %2791 = vmatpush.msra.mxu0 0.0
      %2792 = vmatpush.msra.mxu0 0.0
      %2793 = vmatpush.msra.mxu0 0.0
      %2794 = vmatpush.msra.mxu0 0.0
      %2795 = vmatpush.msra.mxu0 %v2666
      %2796 = vmatpush.msra.mxu0 %v2661
      %2797 = vmatpush.msra.mxu0 %v2656
      %2798 = vmatpush.msra.mxu0 %v2651
      %2799 = vmatmul.f32.gmra.mxu0 %v2671
      %v2800 = vpop.f32.mrf.mxu0
      %v2801 = vadd.f32 0.0, %v2800
      %2802 = vmatmul.f32.gmra.mxu0 %v2674
      %v2803 = vpop.f32.mrf.mxu0
      %v2804 = vadd.f32 0.0, %v2803
      %2805 = vmatmul.f32.gmra.mxu0 %v2677
      %v2806 = vpop.f32.mrf.mxu0
      %v2807 = vadd.f32 0.0, %v2806
      %2808 = vmatmul.f32.gmra.mxu0 %v2680
      %v2809 = vpop.f32.mrf.mxu0
      %v2810 = vadd.f32 0.0, %v2809
      %2811 = vmatmul.f32.gmra.mxu0 %v2683
      %v2812 = vpop.f32.mrf.mxu0
      %v2813 = vadd.f32 0.0, %v2812
      %2814 = vmatmul.f32.gmra.mxu0 %v2686
      %v2815 = vpop.f32.mrf.mxu0
      %v2816 = vadd.f32 0.0, %v2815
      %2817 = vmatmul.f32.gmra.mxu0 %v2689
      %v2818 = vpop.f32.mrf.mxu0
      %v2819 = vadd.f32 0.0, %v2818
      %2820 = vmatmul.f32.gmra.mxu0 %v2692
      %v2821 = vpop.f32.mrf.mxu0
      %v2822 = vadd.f32 0.0, %v2821
      %2823 = vmatmul.f32.gmra.mxu0 %v2695
      %v2824 = vpop.f32.mrf.mxu0
      %v2825 = vadd.f32 0.0, %v2824
      %2826 = vmatmul.f32.gmra.mxu0 %v2698
      %v2827 = vpop.f32.mrf.mxu0
      %v2828 = vadd.f32 0.0, %v2827
      %2829 = vmatmul.f32.gmra.mxu0 %v2701
      %v2830 = vpop.f32.mrf.mxu0
      %v2831 = vadd.f32 0.0, %v2830
      %2832 = vmatmul.f32.gmra.mxu0 %v2704
      %v2833 = vpop.f32.mrf.mxu0
      %v2834 = vadd.f32 0.0, %v2833
      %2835 = vmatmul.f32.gmra.mxu0 %v2707
      %v2836 = vpop.f32.mrf.mxu0
      %v2837 = vadd.f32 0.0, %v2836
      %2838 = vmatmul.f32.gmra.mxu0 %v2710
      %v2839 = vpop.f32.mrf.mxu0
      %v2840 = vadd.f32 0.0, %v2839
      %2841 = vmatmul.f32.gmra.mxu0 %v2713
      %v2842 = vpop.f32.mrf.mxu0
      %v2843 = vadd.f32 0.0, %v2842
      %2844 = vmatmul.f32.gmra.mxu0 %v2716
      %v2845 = vpop.f32.mrf.mxu0
      %v2846 = vadd.f32 0.0, %v2845
      %2847 = vdwg.mxu0
      %2848 = vmatpush.msra.mxu0 0.0
      %2849 = vmatpush.msra.mxu0 0.0
      %2850 = vmatpush.msra.mxu0 0.0
      %2851 = vmatpush.msra.mxu0 0.0
      %2852 = vmatpush.msra.mxu0 0.0
      %2853 = vmatpush.msra.mxu0 0.0
      %2854 = vmatpush.msra.mxu0 0.0
      %2855 = vmatpush.msra.mxu0 0.0
      %2856 = vmatpush.msra.mxu0 0.0
      %2857 = vmatpush.msra.mxu0 0.0
      %2858 = vmatpush.msra.mxu0 0.0
      %2859 = vmatpush.msra.mxu0 0.0
      %2860 = vmatpush.msra.mxu0 %v2667
      %2861 = vmatpush.msra.mxu0 %v2662
      %2862 = vmatpush.msra.mxu0 %v2657
      %2863 = vmatpush.msra.mxu0 %v2652
      %2864 = vmatmul.f32.gmra.mxu0 %v2671
      %v2865 = vpop.f32.mrf.mxu0
      %v2866 = vadd.f32 0.0, %v2865
      %2867 = vmatmul.f32.gmra.mxu0 %v2674
      %v2868 = vpop.f32.mrf.mxu0
      %v2869 = vadd.f32 0.0, %v2868
      %2870 = vmatmul.f32.gmra.mxu0 %v2677
      %v2871 = vpop.f32.mrf.mxu0
      %v2872 = vadd.f32 0.0, %v2871
      %2873 = vmatmul.f32.gmra.mxu0 %v2680
      %v2874 = vpop.f32.mrf.mxu0
      %v2875 = vadd.f32 0.0, %v2874
      %2876 = vmatmul.f32.gmra.mxu0 %v2683
      %v2877 = vpop.f32.mrf.mxu0
      %v2878 = vadd.f32 0.0, %v2877
      %2879 = vmatmul.f32.gmra.mxu0 %v2686
      %v2880 = vpop.f32.mrf.mxu0
      %v2881 = vadd.f32 0.0, %v2880
      %2882 = vmatmul.f32.gmra.mxu0 %v2689
      %v2883 = vpop.f32.mrf.mxu0
      %v2884 = vadd.f32 0.0, %v2883
      %2885 = vmatmul.f32.gmra.mxu0 %v2692
      %v2886 = vpop.f32.mrf.mxu0
      %v2887 = vadd.f32 0.0, %v2886
      %2888 = vmatmul.f32.gmra.mxu0 %v2695
      %v2889 = vpop.f32.mrf.mxu0
      %v2890 = vadd.f32 0.0, %v2889
      %2891 = vmatmul.f32.gmra.mxu0 %v2698
      %v2892 = vpop.f32.mrf.mxu0
      %v2893 = vadd.f32 0.0, %v2892
      %2894 = vmatmul.f32.gmra.mxu0 %v2701
      %v2895 = vpop.f32.mrf.mxu0
      %v2896 = vadd.f32 0.0, %v2895
      %2897 = vmatmul.f32.gmra.mxu0 %v2704
      %v2898 = vpop.f32.mrf.mxu0
      %v2899 = vadd.f32 0.0, %v2898
      %2900 = vmatmul.f32.gmra.mxu0 %v2707
      %v2901 = vpop.f32.mrf.mxu0
      %v2902 = vadd.f32 0.0, %v2901
      %2903 = vmatmul.f32.gmra.mxu0 %v2710
      %v2904 = vpop.f32.mrf.mxu0
      %v2905 = vadd.f32 0.0, %v2904
      %2906 = vmatmul.f32.gmra.mxu0 %v2713
      %v2907 = vpop.f32.mrf.mxu0
      %v2908 = vadd.f32 0.0, %v2907
      %2909 = vmatmul.f32.gmra.mxu0 %v2716
      %v2910 = vpop.f32.mrf.mxu0
      %v2911 = vadd.f32 0.0, %v2910
      %2912 = vdwg.mxu0
      %2913 = vmatpush.msra.mxu0 0.0
      %2914 = vmatpush.msra.mxu0 0.0
      %2915 = vmatpush.msra.mxu0 0.0
      %2916 = vmatpush.msra.mxu0 0.0
      %2917 = vmatpush.msra.mxu0 0.0
      %2918 = vmatpush.msra.mxu0 0.0
      %2919 = vmatpush.msra.mxu0 0.0
      %2920 = vmatpush.msra.mxu0 0.0
      %2921 = vmatpush.msra.mxu0 0.0
      %2922 = vmatpush.msra.mxu0 0.0
      %2923 = vmatpush.msra.mxu0 0.0
      %2924 = vmatpush.msra.mxu0 0.0
      %2925 = vmatpush.msra.mxu0 %v2668
      %2926 = vmatpush.msra.mxu0 %v2663
      %2927 = vmatpush.msra.mxu0 %v2658
      %2928 = vmatpush.msra.mxu0 %v2653
      %2929 = vmatmul.f32.gmra.mxu0 %v2671
      %v2930 = vpop.f32.mrf.mxu0
      %v2931 = vadd.f32 0.0, %v2930
      %2932 = vmatmul.f32.gmra.mxu0 %v2674
      %v2933 = vpop.f32.mrf.mxu0
      %v2934 = vadd.f32 0.0, %v2933
      %2935 = vmatmul.f32.gmra.mxu0 %v2677
      %v2936 = vpop.f32.mrf.mxu0
      %v2937 = vadd.f32 0.0, %v2936
      %2938 = vmatmul.f32.gmra.mxu0 %v2680
      %v2939 = vpop.f32.mrf.mxu0
      %v2940 = vadd.f32 0.0, %v2939
      %2941 = vmatmul.f32.gmra.mxu0 %v2683
      %v2942 = vpop.f32.mrf.mxu0
      %v2943 = vadd.f32 0.0, %v2942
      %2944 = vmatmul.f32.gmra.mxu0 %v2686
      %v2945 = vpop.f32.mrf.mxu0
      %v2946 = vadd.f32 0.0, %v2945
      %2947 = vmatmul.f32.gmra.mxu0 %v2689
      %v2948 = vpop.f32.mrf.mxu0
      %v2949 = vadd.f32 0.0, %v2948
      %2950 = vmatmul.f32.gmra.mxu0 %v2692
      %v2951 = vpop.f32.mrf.mxu0
      %v2952 = vadd.f32 0.0, %v2951
      %2953 = vmatmul.f32.gmra.mxu0 %v2695
      %v2954 = vpop.f32.mrf.mxu0
      %v2955 = vadd.f32 0.0, %v2954
      %2956 = vmatmul.f32.gmra.mxu0 %v2698
      %v2957 = vpop.f32.mrf.mxu0
      %v2958 = vadd.f32 0.0, %v2957
      %2959 = vmatmul.f32.gmra.mxu0 %v2701
      %v2960 = vpop.f32.mrf.mxu0
      %v2961 = vadd.f32 0.0, %v2960
      %2962 = vmatmul.f32.gmra.mxu0 %v2704
      %v2963 = vpop.f32.mrf.mxu0
      %v2964 = vadd.f32 0.0, %v2963
      %2965 = vmatmul.f32.gmra.mxu0 %v2707
      %v2966 = vpop.f32.mrf.mxu0
      %v2967 = vadd.f32 0.0, %v2966
      %2968 = vmatmul.f32.gmra.mxu0 %v2710
      %v2969 = vpop.f32.mrf.mxu0
      %v2970 = vadd.f32 0.0, %v2969
      %2971 = vmatmul.f32.gmra.mxu0 %v2713
      %v2972 = vpop.f32.mrf.mxu0
      %v2973 = vadd.f32 0.0, %v2972
      %2974 = vmatmul.f32.gmra.mxu0 %v2716
      %v2975 = vpop.f32.mrf.mxu0
      %v2976 = vadd.f32 0.0, %v2975
      %2977 = vdwg.mxu0
      %2978 = vmatpush.msra.mxu0 0.0
      %2979 = vmatpush.msra.mxu0 0.0
      %2980 = vmatpush.msra.mxu0 0.0
      %2981 = vmatpush.msra.mxu0 0.0
      %2982 = vmatpush.msra.mxu0 0.0
      %2983 = vmatpush.msra.mxu0 0.0
      %2984 = vmatpush.msra.mxu0 0.0
      %2985 = vmatpush.msra.mxu0 0.0
      %2986 = vmatpush.msra.mxu0 0.0
      %2987 = vmatpush.msra.mxu0 0.0
      %2988 = vmatpush.msra.mxu0 0.0
      %2989 = vmatpush.msra.mxu0 0.0
      %2990 = vmatpush.msra.mxu0 %v2669
      %2991 = vmatpush.msra.mxu0 %v2664
      %2992 = vmatpush.msra.mxu0 %v2659
      %2993 = vmatpush.msra.mxu0 %v2654
      %2994 = vmatmul.f32.gmra.mxu0 %v2671
      %v2995 = vpop.f32.mrf.mxu0
      %v2996 = vadd.f32 0.0, %v2995
      %2997 = vmatmul.f32.gmra.mxu0 %v2674
      %v2998 = vpop.f32.mrf.mxu0
      %v2999 = vadd.f32 0.0, %v2998
      %3000 = vmatmul.f32.gmra.mxu0 %v2677
      %v3001 = vpop.f32.mrf.mxu0
      %v3002 = vadd.f32 0.0, %v3001
      %3003 = vmatmul.f32.gmra.mxu0 %v2680
      %v3004 = vpop.f32.mrf.mxu0
      %v3005 = vadd.f32 0.0, %v3004
      %3006 = vmatmul.f32.gmra.mxu0 %v2683
      %v3007 = vpop.f32.mrf.mxu0
      %v3008 = vadd.f32 0.0, %v3007
      %3009 = vmatmul.f32.gmra.mxu0 %v2686
      %v3010 = vpop.f32.mrf.mxu0
      %v3011 = vadd.f32 0.0, %v3010
      %3012 = vmatmul.f32.gmra.mxu0 %v2689
      %v3013 = vpop.f32.mrf.mxu0
      %v3014 = vadd.f32 0.0, %v3013
      %3015 = vmatmul.f32.gmra.mxu0 %v2692
      %v3016 = vpop.f32.mrf.mxu0
      %v3017 = vadd.f32 0.0, %v3016
      %3018 = vmatmul.f32.gmra.mxu0 %v2695
      %v3019 = vpop.f32.mrf.mxu0
      %v3020 = vadd.f32 0.0, %v3019
      %3021 = vmatmul.f32.gmra.mxu0 %v2698
      %v3022 = vpop.f32.mrf.mxu0
      %v3023 = vadd.f32 0.0, %v3022
      %3024 = vmatmul.f32.gmra.mxu0 %v2701
      %v3025 = vpop.f32.mrf.mxu0
      %v3026 = vadd.f32 0.0, %v3025
      %3027 = vmatmul.f32.gmra.mxu0 %v2704
      %v3028 = vpop.f32.mrf.mxu0
      %v3029 = vadd.f32 0.0, %v3028
      %3030 = vmatmul.f32.gmra.mxu0 %v2707
      %v3031 = vpop.f32.mrf.mxu0
      %v3032 = vadd.f32 0.0, %v3031
      %3033 = vmatmul.f32.gmra.mxu0 %v2710
      %v3034 = vpop.f32.mrf.mxu0
      %v3035 = vadd.f32 0.0, %v3034
      %3036 = vmatmul.f32.gmra.mxu0 %v2713
      %v3037 = vpop.f32.mrf.mxu0
      %v3038 = vadd.f32 0.0, %v3037
      %3039 = vmatmul.f32.gmra.mxu0 %v2716
      %v3040 = vpop.f32.mrf.mxu0
      %v3041 = vadd.f32 0.0, %v3040
      %3042 = vdwg.mxu0
      %3075 = vrot.lane.b32.xlu0 %v2052, 16
      %v3076 = vpop.permute.xlu0 %3075
      %3077 = vrot.lane.b32.xlu0 %v2053, 16
      %v3078 = vpop.permute.xlu0 %3077
      %3079 = vrot.lane.b32.xlu0 %v2054, 16
      %v3080 = vpop.permute.xlu0 %3079
      %3081 = vrot.lane.b32.xlu0 %v2055, 16
      %v3082 = vpop.permute.xlu0 %3081
      %3083 = vrot.lane.b32.xlu0 %v2056, 16
      %v3084 = vpop.permute.xlu0 %3083
      %3085 = vrot.lane.b32.xlu0 %v2057, 16
      %v3086 = vpop.permute.xlu0 %3085
      %3087 = vrot.lane.b32.xlu0 %v2058, 16
      %v3088 = vpop.permute.xlu0 %3087
      %3089 = vrot.lane.b32.xlu0 %v2059, 16
      %v3090 = vpop.permute.xlu0 %3089
      %3091 = vrot.lane.b32.xlu0 %v2060, 16
      %v3092 = vpop.permute.xlu0 %3091
      %3093 = vrot.lane.b32.xlu0 %v2061, 16
      %v3094 = vpop.permute.xlu0 %3093
      %3095 = vrot.lane.b32.xlu0 %v2062, 16
      %v3096 = vpop.permute.xlu0 %3095
      %3097 = vrot.lane.b32.xlu0 %v2063, 16
      %v3098 = vpop.permute.xlu0 %3097
      %3099 = vrot.lane.b32.xlu0 %v2064, 16
      %v3100 = vpop.permute.xlu0 %3099
      %3101 = vrot.lane.b32.xlu0 %v2065, 16
      %v3102 = vpop.permute.xlu0 %3101
      %3103 = vrot.lane.b32.xlu0 %v2066, 16
      %v3104 = vpop.permute.xlu0 %3103
      %3105 = vrot.lane.b32.xlu0 %v2067, 16
      %v3106 = vpop.permute.xlu0 %3105
      %3107 = vrot.lane.b32.xlu0 %v2068, 16
      %v3108 = vpop.permute.xlu0 %3107
      %3109 = vrot.lane.b32.xlu0 %v2069, 16
      %v3110 = vpop.permute.xlu0 %3109
      %3111 = vrot.lane.b32.xlu0 %v2070, 16
      %v3112 = vpop.permute.xlu0 %3111
      %3113 = vrot.lane.b32.xlu0 %v2071, 16
      %v3114 = vpop.permute.xlu0 %3113
      %3115 = vrot.lane.b32.xlu0 %v2072, 16
      %v3116 = vpop.permute.xlu0 %3115
      %3117 = vrot.lane.b32.xlu0 %v2073, 16
      %v3118 = vpop.permute.xlu0 %3117
      %3119 = vrot.lane.b32.xlu0 %v2074, 16
      %v3120 = vpop.permute.xlu0 %3119
      %3121 = vrot.lane.b32.xlu0 %v2075, 16
      %v3122 = vpop.permute.xlu0 %3121
      %3123 = vrot.lane.b32.xlu0 %v2076, 16
      %v3124 = vpop.permute.xlu0 %3123
      %3125 = vrot.lane.b32.xlu0 %v2077, 16
      %v3126 = vpop.permute.xlu0 %3125
      %3127 = vrot.lane.b32.xlu0 %v2078, 16
      %v3128 = vpop.permute.xlu0 %3127
      %3129 = vrot.lane.b32.xlu0 %v2079, 16
      %v3130 = vpop.permute.xlu0 %3129
      %3131 = vrot.lane.b32.xlu0 %v2080, 16
      %v3132 = vpop.permute.xlu0 %3131
      %3133 = vrot.lane.b32.xlu0 %v2081, 16
      %v3134 = vpop.permute.xlu0 %3133
      %3135 = vrot.lane.b32.xlu0 %v2082, 16
      %v3136 = vpop.permute.xlu0 %3135
      %3137 = vrot.lane.b32.xlu0 %v2083, 16
      %v3138 = vpop.permute.xlu0 %3137
      %v3139 = vsel %vm573, %v3076, %v3078
      %v3140 = vsel %vm573, %v3080, %v3082
      %v3141 = vsel %vm573, %v3084, %v3086
      %v3142 = vsel %vm573, %v3088, %v3090
      %v3143 = vsel %vm573, %v3092, %v3094
      %v3144 = vsel %vm573, %v3096, %v3098
      %v3145 = vsel %vm573, %v3100, %v3102
      %v3146 = vsel %vm573, %v3104, %v3106
      %v3147 = vsel %vm573, %v3108, %v3110
      %v3148 = vsel %vm573, %v3112, %v3114
      %v3149 = vsel %vm573, %v3116, %v3118
      %v3150 = vsel %vm573, %v3120, %v3122
      %v3151 = vsel %vm573, %v3124, %v3126
      %v3152 = vsel %vm573, %v3128, %v3130
      %v3153 = vsel %vm573, %v3132, %v3134
      %v3154 = vsel %vm573, %v3136, %v3138
      %3187 = vrot.lane.b32.xlu0 %v2052, 32
      %v3188 = vpop.permute.xlu0 %3187
      %3189 = vrot.lane.b32.xlu0 %v2053, 32
      %v3190 = vpop.permute.xlu0 %3189
      %3191 = vrot.lane.b32.xlu0 %v2054, 32
      %v3192 = vpop.permute.xlu0 %3191
      %3193 = vrot.lane.b32.xlu0 %v2055, 32
      %v3194 = vpop.permute.xlu0 %3193
      %3195 = vrot.lane.b32.xlu0 %v2056, 32
      %v3196 = vpop.permute.xlu0 %3195
      %3197 = vrot.lane.b32.xlu0 %v2057, 32
      %v3198 = vpop.permute.xlu0 %3197
      %3199 = vrot.lane.b32.xlu0 %v2058, 32
      %v3200 = vpop.permute.xlu0 %3199
      %3201 = vrot.lane.b32.xlu0 %v2059, 32
      %v3202 = vpop.permute.xlu0 %3201
      %3203 = vrot.lane.b32.xlu0 %v2060, 32
      %v3204 = vpop.permute.xlu0 %3203
      %3205 = vrot.lane.b32.xlu0 %v2061, 32
      %v3206 = vpop.permute.xlu0 %3205
      %3207 = vrot.lane.b32.xlu0 %v2062, 32
      %v3208 = vpop.permute.xlu0 %3207
      %3209 = vrot.lane.b32.xlu0 %v2063, 32
      %v3210 = vpop.permute.xlu0 %3209
      %3211 = vrot.lane.b32.xlu0 %v2064, 32
      %v3212 = vpop.permute.xlu0 %3211
      %3213 = vrot.lane.b32.xlu0 %v2065, 32
      %v3214 = vpop.permute.xlu0 %3213
      %3215 = vrot.lane.b32.xlu0 %v2066, 32
      %v3216 = vpop.permute.xlu0 %3215
      %3217 = vrot.lane.b32.xlu0 %v2067, 32
      %v3218 = vpop.permute.xlu0 %3217
      %3219 = vrot.lane.b32.xlu0 %v2068, 32
      %v3220 = vpop.permute.xlu0 %3219
      %3221 = vrot.lane.b32.xlu0 %v2069, 32
      %v3222 = vpop.permute.xlu0 %3221
      %3223 = vrot.lane.b32.xlu0 %v2070, 32
      %v3224 = vpop.permute.xlu0 %3223
      %3225 = vrot.lane.b32.xlu0 %v2071, 32
      %v3226 = vpop.permute.xlu0 %3225
      %3227 = vrot.lane.b32.xlu0 %v2072, 32
      %v3228 = vpop.permute.xlu0 %3227
      %3229 = vrot.lane.b32.xlu0 %v2073, 32
      %v3230 = vpop.permute.xlu0 %3229
      %3231 = vrot.lane.b32.xlu0 %v2074, 32
      %v3232 = vpop.permute.xlu0 %3231
      %3233 = vrot.lane.b32.xlu0 %v2075, 32
      %v3234 = vpop.permute.xlu0 %3233
      %3235 = vrot.lane.b32.xlu0 %v2076, 32
      %v3236 = vpop.permute.xlu0 %3235
      %3237 = vrot.lane.b32.xlu0 %v2077, 32
      %v3238 = vpop.permute.xlu0 %3237
      %3239 = vrot.lane.b32.xlu0 %v2078, 32
      %v3240 = vpop.permute.xlu0 %3239
      %3241 = vrot.lane.b32.xlu0 %v2079, 32
      %v3242 = vpop.permute.xlu0 %3241
      %3243 = vrot.lane.b32.xlu0 %v2080, 32
      %v3244 = vpop.permute.xlu0 %3243
      %3245 = vrot.lane.b32.xlu0 %v2081, 32
      %v3246 = vpop.permute.xlu0 %3245
      %3247 = vrot.lane.b32.xlu0 %v2082, 32
      %v3248 = vpop.permute.xlu0 %3247
      %3249 = vrot.lane.b32.xlu0 %v2083, 32
      %v3250 = vpop.permute.xlu0 %3249
      %v3251 = vsel %vm1944, %v3188, %v3190
      %v3252 = vsel %vm1944, %v3192, %v3194
      %v3253 = vsel %vm1944, %v3196, %v3198
      %v3254 = vsel %vm1944, %v3200, %v3202
      %v3255 = vsel %vm1944, %v3204, %v3206
      %v3256 = vsel %vm1944, %v3208, %v3210
      %v3257 = vsel %vm1944, %v3212, %v3214
      %v3258 = vsel %vm1944, %v3216, %v3218
      %v3259 = vsel %vm1944, %v3220, %v3222
      %v3260 = vsel %vm1944, %v3224, %v3226
      %v3261 = vsel %vm1944, %v3228, %v3230
      %v3262 = vsel %vm1944, %v3232, %v3234
      %v3263 = vsel %vm1944, %v3236, %v3238
      %v3264 = vsel %vm1944, %v3240, %v3242
      %v3265 = vsel %vm1944, %v3244, %v3246
      %v3266 = vsel %vm1944, %v3248, %v3250
      %3299 = vrot.lane.b32.xlu0 %v2052, 48
      %v3300 = vpop.permute.xlu0 %3299
      %3301 = vrot.lane.b32.xlu0 %v2053, 48
      %v3302 = vpop.permute.xlu0 %3301
      %3303 = vrot.lane.b32.xlu0 %v2054, 48
      %v3304 = vpop.permute.xlu0 %3303
      %3305 = vrot.lane.b32.xlu0 %v2055, 48
      %v3306 = vpop.permute.xlu0 %3305
      %3307 = vrot.lane.b32.xlu0 %v2056, 48
      %v3308 = vpop.permute.xlu0 %3307
      %3309 = vrot.lane.b32.xlu0 %v2057, 48
      %v3310 = vpop.permute.xlu0 %3309
      %3311 = vrot.lane.b32.xlu0 %v2058, 48
      %v3312 = vpop.permute.xlu0 %3311
      %3313 = vrot.lane.b32.xlu0 %v2059, 48
      %v3314 = vpop.permute.xlu0 %3313
      %3315 = vrot.lane.b32.xlu0 %v2060, 48
      %v3316 = vpop.permute.xlu0 %3315
      %3317 = vrot.lane.b32.xlu0 %v2061, 48
      %v3318 = vpop.permute.xlu0 %3317
      %3319 = vrot.lane.b32.xlu0 %v2062, 48
      %v3320 = vpop.permute.xlu0 %3319
      %3321 = vrot.lane.b32.xlu0 %v2063, 48
      %v3322 = vpop.permute.xlu0 %3321
      %3323 = vrot.lane.b32.xlu0 %v2064, 48
      %v3324 = vpop.permute.xlu0 %3323
      %3325 = vrot.lane.b32.xlu0 %v2065, 48
      %v3326 = vpop.permute.xlu0 %3325
      %3327 = vrot.lane.b32.xlu0 %v2066, 48
      %v3328 = vpop.permute.xlu0 %3327
      %3329 = vrot.lane.b32.xlu0 %v2067, 48
      %v3330 = vpop.permute.xlu0 %3329
      %3331 = vrot.lane.b32.xlu0 %v2068, 48
      %v3332 = vpop.permute.xlu0 %3331
      %3333 = vrot.lane.b32.xlu0 %v2069, 48
      %v3334 = vpop.permute.xlu0 %3333
      %3335 = vrot.lane.b32.xlu0 %v2070, 48
      %v3336 = vpop.permute.xlu0 %3335
      %3337 = vrot.lane.b32.xlu0 %v2071, 48
      %v3338 = vpop.permute.xlu0 %3337
      %3339 = vrot.lane.b32.xlu0 %v2072, 48
      %v3340 = vpop.permute.xlu0 %3339
      %3341 = vrot.lane.b32.xlu0 %v2073, 48
      %v3342 = vpop.permute.xlu0 %3341
      %3343 = vrot.lane.b32.xlu0 %v2074, 48
      %v3344 = vpop.permute.xlu0 %3343
      %3345 = vrot.lane.b32.xlu0 %v2075, 48
      %v3346 = vpop.permute.xlu0 %3345
      %3347 = vrot.lane.b32.xlu0 %v2076, 48
      %v3348 = vpop.permute.xlu0 %3347
      %3349 = vrot.lane.b32.xlu0 %v2077, 48
      %v3350 = vpop.permute.xlu0 %3349
      %3351 = vrot.lane.b32.xlu0 %v2078, 48
      %v3352 = vpop.permute.xlu0 %3351
      %3353 = vrot.lane.b32.xlu0 %v2079, 48
      %v3354 = vpop.permute.xlu0 %3353
      %3355 = vrot.lane.b32.xlu0 %v2080, 48
      %v3356 = vpop.permute.xlu0 %3355
      %3357 = vrot.lane.b32.xlu0 %v2081, 48
      %v3358 = vpop.permute.xlu0 %3357
      %3359 = vrot.lane.b32.xlu0 %v2082, 48
      %v3360 = vpop.permute.xlu0 %3359
      %3361 = vrot.lane.b32.xlu0 %v2083, 48
      %v3362 = vpop.permute.xlu0 %3361
      %v3363 = vsel %vm1961, %v3300, %v3302
      %v3364 = vsel %vm1961, %v3304, %v3306
      %v3365 = vsel %vm1961, %v3308, %v3310
      %v3366 = vsel %vm1961, %v3312, %v3314
      %v3367 = vsel %vm1961, %v3316, %v3318
      %v3368 = vsel %vm1961, %v3320, %v3322
      %v3369 = vsel %vm1961, %v3324, %v3326
      %v3370 = vsel %vm1961, %v3328, %v3330
      %v3371 = vsel %vm1961, %v3332, %v3334
      %v3372 = vsel %vm1961, %v3336, %v3338
      %v3373 = vsel %vm1961, %v3340, %v3342
      %v3374 = vsel %vm1961, %v3344, %v3346
      %v3375 = vsel %vm1961, %v3348, %v3350
      %v3376 = vsel %vm1961, %v3352, %v3354
      %v3377 = vsel %vm1961, %v3356, %v3358
      %v3378 = vsel %vm1961, %v3360, %v3362
      %v3411 = vsel %vm573, %v2053, %v3076
      %v3412 = vsel %vm573, %v2055, %v3080
      %v3413 = vsel %vm573, %v2057, %v3084
      %v3414 = vsel %vm573, %v2059, %v3088
      %v3415 = vsel %vm573, %v2061, %v3092
      %v3416 = vsel %vm573, %v2063, %v3096
      %v3417 = vsel %vm573, %v2065, %v3100
      %v3418 = vsel %vm573, %v2067, %v3104
      %v3419 = vsel %vm573, %v2069, %v3108
      %v3420 = vsel %vm573, %v2071, %v3112
      %v3421 = vsel %vm573, %v2073, %v3116
      %v3422 = vsel %vm573, %v2075, %v3120
      %v3423 = vsel %vm573, %v2077, %v3124
      %v3424 = vsel %vm573, %v2079, %v3128
      %v3425 = vsel %vm573, %v2081, %v3132
      %v3426 = vsel %vm573, %v2083, %v3136
      %v3427 = vsel %vm1944, %v3139, %v3188
      %v3428 = vsel %vm1944, %v3140, %v3192
      %v3429 = vsel %vm1944, %v3141, %v3196
      %v3430 = vsel %vm1944, %v3142, %v3200
      %v3431 = vsel %vm1944, %v3143, %v3204
      %v3432 = vsel %vm1944, %v3144, %v3208
      %v3433 = vsel %vm1944, %v3145, %v3212
      %v3434 = vsel %vm1944, %v3146, %v3216
      %v3435 = vsel %vm1944, %v3147, %v3220
      %v3436 = vsel %vm1944, %v3148, %v3224
      %v3437 = vsel %vm1944, %v3149, %v3228
      %v3438 = vsel %vm1944, %v3150, %v3232
      %v3439 = vsel %vm1944, %v3151, %v3236
      %v3440 = vsel %vm1944, %v3152, %v3240
      %v3441 = vsel %vm1944, %v3153, %v3244
      %v3442 = vsel %vm1944, %v3154, %v3248
      %v3443 = vsel %vm1961, %v3251, %v3300
      %v3444 = vsel %vm1961, %v3252, %v3304
      %v3445 = vsel %vm1961, %v3253, %v3308
      %v3446 = vsel %vm1961, %v3254, %v3312
      %v3447 = vsel %vm1961, %v3255, %v3316
      %v3448 = vsel %vm1961, %v3256, %v3320
      %v3449 = vsel %vm1961, %v3257, %v3324
      %v3450 = vsel %vm1961, %v3258, %v3328
      %v3451 = vsel %vm1961, %v3259, %v3332
      %v3452 = vsel %vm1961, %v3260, %v3336
      %v3453 = vsel %vm1961, %v3261, %v3340
      %v3454 = vsel %vm1961, %v3262, %v3344
      %v3455 = vsel %vm1961, %v3263, %v3348
      %v3456 = vsel %vm1961, %v3264, %v3352
      %v3457 = vsel %vm1961, %v3265, %v3356
      %v3458 = vsel %vm1961, %v3266, %v3360
      %v3459 = vmul.f32 %v2736, %v2052
      %v3460 = vmul.f32 %v2801, %v3411
      %v3461 = vmul.f32 %v2866, %v3427
      %v3462 = vmul.f32 %v2931, %v3443
      %v3463 = vmul.f32 %v2996, %v3363
      %v3464 = vmul.f32 %v2739, %v2054
      %v3465 = vmul.f32 %v2804, %v3412
      %v3466 = vmul.f32 %v2869, %v3428
      %v3467 = vmul.f32 %v2934, %v3444
      %v3468 = vmul.f32 %v2999, %v3364
      %v3469 = vmul.f32 %v2742, %v2056
      %v3470 = vmul.f32 %v2807, %v3413
      %v3471 = vmul.f32 %v2872, %v3429
      %v3472 = vmul.f32 %v2937, %v3445
      %v3473 = vmul.f32 %v3002, %v3365
      %v3474 = vmul.f32 %v2745, %v2058
      %v3475 = vmul.f32 %v2810, %v3414
      %v3476 = vmul.f32 %v2875, %v3430
      %v3477 = vmul.f32 %v2940, %v3446
      %v3478 = vmul.f32 %v3005, %v3366
      %v3479 = vmul.f32 %v2748, %v2060
      %v3480 = vmul.f32 %v2813, %v3415
      %v3481 = vmul.f32 %v2878, %v3431
      %v3482 = vmul.f32 %v2943, %v3447
      %v3483 = vmul.f32 %v3008, %v3367
      %v3484 = vmul.f32 %v2751, %v2062
      %v3485 = vmul.f32 %v2816, %v3416
      %v3486 = vmul.f32 %v2881, %v3432
      %v3487 = vmul.f32 %v2946, %v3448
      %v3488 = vmul.f32 %v3011, %v3368
      %v3489 = vmul.f32 %v2754, %v2064
      %v3490 = vmul.f32 %v2819, %v3417
      %v3491 = vmul.f32 %v2884, %v3433
      %v3492 = vmul.f32 %v2949, %v3449
      %v3493 = vmul.f32 %v3014, %v3369
      %v3494 = vmul.f32 %v2757, %v2066
      %v3495 = vmul.f32 %v2822, %v3418
      %v3496 = vmul.f32 %v2887, %v3434
      %v3497 = vmul.f32 %v2952, %v3450
      %v3498 = vmul.f32 %v3017, %v3370
      %v3499 = vmul.f32 %v2760, %v2068
      %v3500 = vmul.f32 %v2825, %v3419
      %v3501 = vmul.f32 %v2890, %v3435
      %v3502 = vmul.f32 %v2955, %v3451
      %v3503 = vmul.f32 %v3020, %v3371
      %v3504 = vmul.f32 %v2763, %v2070
      %v3505 = vmul.f32 %v2828, %v3420
      %v3506 = vmul.f32 %v2893, %v3436
      %v3507 = vmul.f32 %v2958, %v3452
      %v3508 = vmul.f32 %v3023, %v3372
      %v3509 = vmul.f32 %v2766, %v2072
      %v3510 = vmul.f32 %v2831, %v3421
      %v3511 = vmul.f32 %v2896, %v3437
      %v3512 = vmul.f32 %v2961, %v3453
      %v3513 = vmul.f32 %v3026, %v3373
      %v3514 = vmul.f32 %v2769, %v2074
      %v3515 = vmul.f32 %v2834, %v3422
      %v3516 = vmul.f32 %v2899, %v3438
      %v3517 = vmul.f32 %v2964, %v3454
      %v3518 = vmul.f32 %v3029, %v3374
      %v3519 = vmul.f32 %v2772, %v2076
      %v3520 = vmul.f32 %v2837, %v3423
      %v3521 = vmul.f32 %v2902, %v3439
      %v3522 = vmul.f32 %v2967, %v3455
      %v3523 = vmul.f32 %v3032, %v3375
      %v3524 = vmul.f32 %v2775, %v2078
      %v3525 = vmul.f32 %v2840, %v3424
      %v3526 = vmul.f32 %v2905, %v3440
      %v3527 = vmul.f32 %v2970, %v3456
      %v3528 = vmul.f32 %v3035, %v3376
      %v3529 = vmul.f32 %v2778, %v2080
      %v3530 = vmul.f32 %v2843, %v3425
      %v3531 = vmul.f32 %v2908, %v3441
      %v3532 = vmul.f32 %v2973, %v3457
      %v3533 = vmul.f32 %v3038, %v3377
      %v3534 = vmul.f32 %v2781, %v2082
      %v3535 = vmul.f32 %v2846, %v3426
      %v3536 = vmul.f32 %v2911, %v3442
      %v3537 = vmul.f32 %v2976, %v3458
      %v3538 = vmul.f32 %v3041, %v3378
      %v3539 = vld [vmem:[%s8] sm:$0xff]
      %v3540 = vld [vmem:[%s8 + $0x8] sm:$0xff]
      %v3541 = vld [vmem:[%s8 + $0x10] sm:$0xff]
      %v3542 = vld [vmem:[%s8 + $0x18] sm:$0xff]
      %v3543 = vld [vmem:[%s8 + $0x20] sm:$0xff]
      %v3544 = vld [vmem:[%s8 + $0x28] sm:$0xff]
      %v3545 = vld [vmem:[%s8 + $0x30] sm:$0xff]
      %v3546 = vld [vmem:[%s8 + $0x38] sm:$0xff]
      %v3547 = vld [vmem:[%s8 + $0x40] sm:$0xff]
      %v3548 = vld [vmem:[%s8 + $0x48] sm:$0xff]
      %v3549 = vld [vmem:[%s8 + $0x50] sm:$0xff]
      %v3550 = vld [vmem:[%s8 + $0x58] sm:$0xff]
      %v3551 = vld [vmem:[%s8 + $0x60] sm:$0xff]
      %v3552 = vld [vmem:[%s8 + $0x68] sm:$0xff]
      %v3553 = vld [vmem:[%s8 + $0x70] sm:$0xff]
      %v3554 = vld [vmem:[%s8 + $0x78] sm:$0xff]
      %v3555 = vld [vmem:[%s8 + $0x80] sm:$0xff]
      %v3556 = vld [vmem:[%s8 + $0x88] sm:$0xff]
      %v3557 = vld [vmem:[%s8 + $0x90] sm:$0xff]
      %v3558 = vld [vmem:[%s8 + $0x98] sm:$0xff]
      %v3559 = vld [vmem:[%s8 + $0xa0] sm:$0xff]
      %v3560 = vld [vmem:[%s8 + $0xa8] sm:$0xff]
      %v3561 = vld [vmem:[%s8 + $0xb0] sm:$0xff]
      %v3562 = vld [vmem:[%s8 + $0xb8] sm:$0xff]
      %v3563 = vld [vmem:[%s8 + $0xc0] sm:$0xff]
      %v3564 = vld [vmem:[%s8 + $0xc8] sm:$0xff]
      %v3565 = vld [vmem:[%s8 + $0xd0] sm:$0xff]
      %v3566 = vld [vmem:[%s8 + $0xd8] sm:$0xff]
      %v3567 = vld [vmem:[%s8 + $0xe0] sm:$0xff]
      %v3568 = vld [vmem:[%s8 + $0xe8] sm:$0xff]
      %v3569 = vld [vmem:[%s8 + $0xf0] sm:$0xff]
      %v3570 = vld [vmem:[%s8 + $0xf8] sm:$0xff]
      %v3571 = vld [vmem:[%s8 + $0x100] sm:$0xff]
      %v3572 = vld [vmem:[%s8 + $0x108] sm:$0xff]
      %v3573 = vld [vmem:[%s8 + $0x110] sm:$0xff]
      %v3574 = vld [vmem:[%s8 + $0x118] sm:$0xff]
      %v3575 = vld [vmem:[%s8 + $0x120] sm:$0xff]
      %v3576 = vld [vmem:[%s8 + $0x128] sm:$0xff]
      %v3577 = vld [vmem:[%s8 + $0x130] sm:$0xff]
      %v3578 = vld [vmem:[%s8 + $0x138] sm:$0xff]
      %v3579 = vld [vmem:[%s8 + $0x140] sm:$0xff]
      %v3580 = vld [vmem:[%s8 + $0x148] sm:$0xff]
      %v3581 = vld [vmem:[%s8 + $0x150] sm:$0xff]
      %v3582 = vld [vmem:[%s8 + $0x158] sm:$0xff]
      %v3583 = vld [vmem:[%s8 + $0x160] sm:$0xff]
      %v3584 = vld [vmem:[%s8 + $0x168] sm:$0xff]
      %v3585 = vld [vmem:[%s8 + $0x170] sm:$0xff]
      %v3586 = vld [vmem:[%s8 + $0x178] sm:$0xff]
      %v3587 = vld [vmem:[%s8 + $0x180] sm:$0xff]
      %v3588 = vld [vmem:[%s8 + $0x188] sm:$0xff]
      %v3589 = vld [vmem:[%s8 + $0x190] sm:$0xff]
      %v3590 = vld [vmem:[%s8 + $0x198] sm:$0xff]
      %v3591 = vld [vmem:[%s8 + $0x1a0] sm:$0xff]
      %v3592 = vld [vmem:[%s8 + $0x1a8] sm:$0xff]
      %v3593 = vld [vmem:[%s8 + $0x1b0] sm:$0xff]
      %v3594 = vld [vmem:[%s8 + $0x1b8] sm:$0xff]
      %v3595 = vld [vmem:[%s8 + $0x1c0] sm:$0xff]
      %v3596 = vld [vmem:[%s8 + $0x1c8] sm:$0xff]
      %v3597 = vld [vmem:[%s8 + $0x1d0] sm:$0xff]
      %v3598 = vld [vmem:[%s8 + $0x1d8] sm:$0xff]
      %v3599 = vld [vmem:[%s8 + $0x1e0] sm:$0xff]
      %v3600 = vld [vmem:[%s8 + $0x1e8] sm:$0xff]
      %v3601 = vld [vmem:[%s8 + $0x1f0] sm:$0xff]
      %v3602 = vld [vmem:[%s8 + $0x1f8] sm:$0xff]
      %v3603 = vld [vmem:[%s8 + $0x200] sm:$0xff]
      %v3604 = vld [vmem:[%s8 + $0x208] sm:$0xff]
      %v3605 = vld [vmem:[%s8 + $0x210] sm:$0xff]
      %v3606 = vld [vmem:[%s8 + $0x218] sm:$0xff]
      %v3607 = vld [vmem:[%s8 + $0x220] sm:$0xff]
      %v3608 = vld [vmem:[%s8 + $0x228] sm:$0xff]
      %v3609 = vld [vmem:[%s8 + $0x230] sm:$0xff]
      %v3610 = vld [vmem:[%s8 + $0x238] sm:$0xff]
      %v3612 = vsel %vm1978, %v3463, 0
      %v3615 = vsel %vm1978, %v3468, 0
      %v3618 = vsel %vm1978, %v3473, 0
      %v3621 = vsel %vm1978, %v3478, 0
      %v3624 = vsel %vm1978, %v3483, 0
      %v3627 = vsel %vm1978, %v3488, 0
      %v3630 = vsel %vm1978, %v3493, 0
      %v3633 = vsel %vm1978, %v3498, 0
      %v3636 = vsel %vm1978, %v3503, 0
      %v3639 = vsel %vm1978, %v3508, 0
      %v3642 = vsel %vm1978, %v3513, 0
      %v3645 = vsel %vm1978, %v3518, 0
      %v3648 = vsel %vm1978, %v3523, 0
      %v3651 = vsel %vm1978, %v3528, 0
      %v3654 = vsel %vm1978, %v3533, 0
      %v3657 = vsel %vm1978, %v3538, 0
      %3659 = vmatpush.msra.mxu0 %v3554
      %3660 = vmatpush.msra.mxu0 %v3553
      %3661 = vmatpush.msra.mxu0 %v3552
      %3662 = vmatpush.msra.mxu0 %v3551
      %3663 = vmatpush.msra.mxu0 %v3550
      %3664 = vmatpush.msra.mxu0 %v3549
      %3665 = vmatpush.msra.mxu0 %v3548
      %3666 = vmatpush.msra.mxu0 %v3547
      %3667 = vmatpush.msra.mxu0 %v3546
      %3668 = vmatpush.msra.mxu0 %v3545
      %3669 = vmatpush.msra.mxu0 %v3544
      %3670 = vmatpush.msra.mxu0 %v3543
      %3671 = vmatpush.msra.mxu0 %v3542
      %3672 = vmatpush.msra.mxu0 %v3541
      %3673 = vmatpush.msra.mxu0 %v3540
      %3674 = vmatpush.msra.mxu0 %v3539
      %3675 = vmatmul.f32.gmra.mxu0 %v3459
      %v3676 = vpop.f32.mrf.mxu0
      %v3677 = vadd.f32 0.0, %v3676
      %3678 = vmatmul.f32.gmra.mxu0 %v3464
      %v3679 = vpop.f32.mrf.mxu0
      %v3680 = vadd.f32 0.0, %v3679
      %3681 = vmatmul.f32.gmra.mxu0 %v3469
      %v3682 = vpop.f32.mrf.mxu0
      %v3683 = vadd.f32 0.0, %v3682
      %3684 = vmatmul.f32.gmra.mxu0 %v3474
      %v3685 = vpop.f32.mrf.mxu0
      %v3686 = vadd.f32 0.0, %v3685
      %3687 = vmatmul.f32.gmra.mxu0 %v3479
      %v3688 = vpop.f32.mrf.mxu0
      %v3689 = vadd.f32 0.0, %v3688
      %3690 = vmatmul.f32.gmra.mxu0 %v3484
      %v3691 = vpop.f32.mrf.mxu0
      %v3692 = vadd.f32 0.0, %v3691
      %3693 = vmatmul.f32.gmra.mxu0 %v3489
      %v3694 = vpop.f32.mrf.mxu0
      %v3695 = vadd.f32 0.0, %v3694
      %3696 = vmatmul.f32.gmra.mxu0 %v3494
      %v3697 = vpop.f32.mrf.mxu0
      %v3698 = vadd.f32 0.0, %v3697
      %3699 = vmatmul.f32.gmra.mxu0 %v3499
      %v3700 = vpop.f32.mrf.mxu0
      %v3701 = vadd.f32 0.0, %v3700
      %3702 = vmatmul.f32.gmra.mxu0 %v3504
      %v3703 = vpop.f32.mrf.mxu0
      %v3704 = vadd.f32 0.0, %v3703
      %3705 = vmatmul.f32.gmra.mxu0 %v3509
      %v3706 = vpop.f32.mrf.mxu0
      %v3707 = vadd.f32 0.0, %v3706
      %3708 = vmatmul.f32.gmra.mxu0 %v3514
      %v3709 = vpop.f32.mrf.mxu0
      %v3710 = vadd.f32 0.0, %v3709
      %3711 = vmatmul.f32.gmra.mxu0 %v3519
      %v3712 = vpop.f32.mrf.mxu0
      %v3713 = vadd.f32 0.0, %v3712
      %3714 = vmatmul.f32.gmra.mxu0 %v3524
      %v3715 = vpop.f32.mrf.mxu0
      %v3716 = vadd.f32 0.0, %v3715
      %3717 = vmatmul.f32.gmra.mxu0 %v3529
      %v3718 = vpop.f32.mrf.mxu0
      %v3719 = vadd.f32 0.0, %v3718
      %3720 = vmatmul.f32.gmra.mxu0 %v3534
      %v3721 = vpop.f32.mrf.mxu0
      %v3722 = vadd.f32 0.0, %v3721
      %3723 = vdwg.mxu0
      %3724 = vmatpush.msra.mxu0 %v3570
      %3725 = vmatpush.msra.mxu0 %v3569
      %3726 = vmatpush.msra.mxu0 %v3568
      %3727 = vmatpush.msra.mxu0 %v3567
      %3728 = vmatpush.msra.mxu0 %v3566
      %3729 = vmatpush.msra.mxu0 %v3565
      %3730 = vmatpush.msra.mxu0 %v3564
      %3731 = vmatpush.msra.mxu0 %v3563
      %3732 = vmatpush.msra.mxu0 %v3562
      %3733 = vmatpush.msra.mxu0 %v3561
      %3734 = vmatpush.msra.mxu0 %v3560
      %3735 = vmatpush.msra.mxu0 %v3559
      %3736 = vmatpush.msra.mxu0 %v3558
      %3737 = vmatpush.msra.mxu0 %v3557
      %3738 = vmatpush.msra.mxu0 %v3556
      %3739 = vmatpush.msra.mxu0 %v3555
      %3740 = vmatmul.f32.gmra.mxu0 %v3460
      %v3741 = vpop.f32.mrf.mxu0
      %v3742 = vadd.f32 %v3677, %v3741
      %3743 = vmatmul.f32.gmra.mxu0 %v3465
      %v3744 = vpop.f32.mrf.mxu0
      %v3745 = vadd.f32 %v3680, %v3744
      %3746 = vmatmul.f32.gmra.mxu0 %v3470
      %v3747 = vpop.f32.mrf.mxu0
      %v3748 = vadd.f32 %v3683, %v3747
      %3749 = vmatmul.f32.gmra.mxu0 %v3475
      %v3750 = vpop.f32.mrf.mxu0
      %v3751 = vadd.f32 %v3686, %v3750
      %3752 = vmatmul.f32.gmra.mxu0 %v3480
      %v3753 = vpop.f32.mrf.mxu0
      %v3754 = vadd.f32 %v3689, %v3753
      %3755 = vmatmul.f32.gmra.mxu0 %v3485
      %v3756 = vpop.f32.mrf.mxu0
      %v3757 = vadd.f32 %v3692, %v3756
      %3758 = vmatmul.f32.gmra.mxu0 %v3490
      %v3759 = vpop.f32.mrf.mxu0
      %v3760 = vadd.f32 %v3695, %v3759
      %3761 = vmatmul.f32.gmra.mxu0 %v3495
      %v3762 = vpop.f32.mrf.mxu0
      %v3763 = vadd.f32 %v3698, %v3762
      %3764 = vmatmul.f32.gmra.mxu0 %v3500
      %v3765 = vpop.f32.mrf.mxu0
      %v3766 = vadd.f32 %v3701, %v3765
      %3767 = vmatmul.f32.gmra.mxu0 %v3505
      %v3768 = vpop.f32.mrf.mxu0
      %v3769 = vadd.f32 %v3704, %v3768
      %3770 = vmatmul.f32.gmra.mxu0 %v3510
      %v3771 = vpop.f32.mrf.mxu0
      %v3772 = vadd.f32 %v3707, %v3771
      %3773 = vmatmul.f32.gmra.mxu0 %v3515
      %v3774 = vpop.f32.mrf.mxu0
      %v3775 = vadd.f32 %v3710, %v3774
      %3776 = vmatmul.f32.gmra.mxu0 %v3520
      %v3777 = vpop.f32.mrf.mxu0
      %v3778 = vadd.f32 %v3713, %v3777
      %3779 = vmatmul.f32.gmra.mxu0 %v3525
      %v3780 = vpop.f32.mrf.mxu0
      %v3781 = vadd.f32 %v3716, %v3780
      %3782 = vmatmul.f32.gmra.mxu0 %v3530
      %v3783 = vpop.f32.mrf.mxu0
      %v3784 = vadd.f32 %v3719, %v3783
      %3785 = vmatmul.f32.gmra.mxu0 %v3535
      %v3786 = vpop.f32.mrf.mxu0
      %v3787 = vadd.f32 %v3722, %v3786
      %3788 = vdwg.mxu0
      %3789 = vmatpush.msra.mxu0 %v3586
      %3790 = vmatpush.msra.mxu0 %v3585
      %3791 = vmatpush.msra.mxu0 %v3584
      %3792 = vmatpush.msra.mxu0 %v3583
      %3793 = vmatpush.msra.mxu0 %v3582
      %3794 = vmatpush.msra.mxu0 %v3581
      %3795 = vmatpush.msra.mxu0 %v3580
      %3796 = vmatpush.msra.mxu0 %v3579
      %3797 = vmatpush.msra.mxu0 %v3578
      %3798 = vmatpush.msra.mxu0 %v3577
      %3799 = vmatpush.msra.mxu0 %v3576
      %3800 = vmatpush.msra.mxu0 %v3575
      %3801 = vmatpush.msra.mxu0 %v3574
      %3802 = vmatpush.msra.mxu0 %v3573
      %3803 = vmatpush.msra.mxu0 %v3572
      %3804 = vmatpush.msra.mxu0 %v3571
      %3805 = vmatmul.f32.gmra.mxu0 %v3461
      %v3806 = vpop.f32.mrf.mxu0
      %v3807 = vadd.f32 %v3742, %v3806
      %3808 = vmatmul.f32.gmra.mxu0 %v3466
      %v3809 = vpop.f32.mrf.mxu0
      %v3810 = vadd.f32 %v3745, %v3809
      %3811 = vmatmul.f32.gmra.mxu0 %v3471
      %v3812 = vpop.f32.mrf.mxu0
      %v3813 = vadd.f32 %v3748, %v3812
      %3814 = vmatmul.f32.gmra.mxu0 %v3476
      %v3815 = vpop.f32.mrf.mxu0
      %v3816 = vadd.f32 %v3751, %v3815
      %3817 = vmatmul.f32.gmra.mxu0 %v3481
      %v3818 = vpop.f32.mrf.mxu0
      %v3819 = vadd.f32 %v3754, %v3818
      %3820 = vmatmul.f32.gmra.mxu0 %v3486
      %v3821 = vpop.f32.mrf.mxu0
      %v3822 = vadd.f32 %v3757, %v3821
      %3823 = vmatmul.f32.gmra.mxu0 %v3491
      %v3824 = vpop.f32.mrf.mxu0
      %v3825 = vadd.f32 %v3760, %v3824
      %3826 = vmatmul.f32.gmra.mxu0 %v3496
      %v3827 = vpop.f32.mrf.mxu0
      %v3828 = vadd.f32 %v3763, %v3827
      %3829 = vmatmul.f32.gmra.mxu0 %v3501
      %v3830 = vpop.f32.mrf.mxu0
      %v3831 = vadd.f32 %v3766, %v3830
      %3832 = vmatmul.f32.gmra.mxu0 %v3506
      %v3833 = vpop.f32.mrf.mxu0
      %v3834 = vadd.f32 %v3769, %v3833
      %3835 = vmatmul.f32.gmra.mxu0 %v3511
      %v3836 = vpop.f32.mrf.mxu0
      %v3837 = vadd.f32 %v3772, %v3836
      %3838 = vmatmul.f32.gmra.mxu0 %v3516
      %v3839 = vpop.f32.mrf.mxu0
      %v3840 = vadd.f32 %v3775, %v3839
      %3841 = vmatmul.f32.gmra.mxu0 %v3521
      %v3842 = vpop.f32.mrf.mxu0
      %v3843 = vadd.f32 %v3778, %v3842
      %3844 = vmatmul.f32.gmra.mxu0 %v3526
      %v3845 = vpop.f32.mrf.mxu0
      %v3846 = vadd.f32 %v3781, %v3845
      %3847 = vmatmul.f32.gmra.mxu0 %v3531
      %v3848 = vpop.f32.mrf.mxu0
      %v3849 = vadd.f32 %v3784, %v3848
      %3850 = vmatmul.f32.gmra.mxu0 %v3536
      %v3851 = vpop.f32.mrf.mxu0
      %v3852 = vadd.f32 %v3787, %v3851
      %3853 = vdwg.mxu0
      %3854 = vmatpush.msra.mxu0 %v3602
      %3855 = vmatpush.msra.mxu0 %v3601
      %3856 = vmatpush.msra.mxu0 %v3600
      %3857 = vmatpush.msra.mxu0 %v3599
      %3858 = vmatpush.msra.mxu0 %v3598
      %3859 = vmatpush.msra.mxu0 %v3597
      %3860 = vmatpush.msra.mxu0 %v3596
      %3861 = vmatpush.msra.mxu0 %v3595
      %3862 = vmatpush.msra.mxu0 %v3594
      %3863 = vmatpush.msra.mxu0 %v3593
      %3864 = vmatpush.msra.mxu0 %v3592
      %3865 = vmatpush.msra.mxu0 %v3591
      %3866 = vmatpush.msra.mxu0 %v3590
      %3867 = vmatpush.msra.mxu0 %v3589
      %3868 = vmatpush.msra.mxu0 %v3588
      %3869 = vmatpush.msra.mxu0 %v3587
      %3870 = vmatmul.f32.gmra.mxu0 %v3462
      %v3871 = vpop.f32.mrf.mxu0
      %v3872 = vadd.f32 %v3807, %v3871
      %3873 = vmatmul.f32.gmra.mxu0 %v3467
      %v3874 = vpop.f32.mrf.mxu0
      %v3875 = vadd.f32 %v3810, %v3874
      %3876 = vmatmul.f32.gmra.mxu0 %v3472
      %v3877 = vpop.f32.mrf.mxu0
      %v3878 = vadd.f32 %v3813, %v3877
      %3879 = vmatmul.f32.gmra.mxu0 %v3477
      %v3880 = vpop.f32.mrf.mxu0
      %v3881 = vadd.f32 %v3816, %v3880
      %3882 = vmatmul.f32.gmra.mxu0 %v3482
      %v3883 = vpop.f32.mrf.mxu0
      %v3884 = vadd.f32 %v3819, %v3883
      %3885 = vmatmul.f32.gmra.mxu0 %v3487
      %v3886 = vpop.f32.mrf.mxu0
      %v3887 = vadd.f32 %v3822, %v3886
      %3888 = vmatmul.f32.gmra.mxu0 %v3492
      %v3889 = vpop.f32.mrf.mxu0
      %v3890 = vadd.f32 %v3825, %v3889
      %3891 = vmatmul.f32.gmra.mxu0 %v3497
      %v3892 = vpop.f32.mrf.mxu0
      %v3893 = vadd.f32 %v3828, %v3892
      %3894 = vmatmul.f32.gmra.mxu0 %v3502
      %v3895 = vpop.f32.mrf.mxu0
      %v3896 = vadd.f32 %v3831, %v3895
      %3897 = vmatmul.f32.gmra.mxu0 %v3507
      %v3898 = vpop.f32.mrf.mxu0
      %v3899 = vadd.f32 %v3834, %v3898
      %3900 = vmatmul.f32.gmra.mxu0 %v3512
      %v3901 = vpop.f32.mrf.mxu0
      %v3902 = vadd.f32 %v3837, %v3901
      %3903 = vmatmul.f32.gmra.mxu0 %v3517
      %v3904 = vpop.f32.mrf.mxu0
      %v3905 = vadd.f32 %v3840, %v3904
      %3906 = vmatmul.f32.gmra.mxu0 %v3522
      %v3907 = vpop.f32.mrf.mxu0
      %v3908 = vadd.f32 %v3843, %v3907
      %3909 = vmatmul.f32.gmra.mxu0 %v3527
      %v3910 = vpop.f32.mrf.mxu0
      %v3911 = vadd.f32 %v3846, %v3910
      %3912 = vmatmul.f32.gmra.mxu0 %v3532
      %v3913 = vpop.f32.mrf.mxu0
      %v3914 = vadd.f32 %v3849, %v3913
      %3915 = vmatmul.f32.gmra.mxu0 %v3537
      %v3916 = vpop.f32.mrf.mxu0
      %v3917 = vadd.f32 %v3852, %v3916
      %3918 = vdwg.mxu0
      %3919 = vmatpush.msra.mxu0 0.0
      %3920 = vmatpush.msra.mxu0 0.0
      %3921 = vmatpush.msra.mxu0 0.0
      %3922 = vmatpush.msra.mxu0 0.0
      %3923 = vmatpush.msra.mxu0 0.0
      %3924 = vmatpush.msra.mxu0 0.0
      %3925 = vmatpush.msra.mxu0 0.0
      %3926 = vmatpush.msra.mxu0 0.0
      %3927 = vmatpush.msra.mxu0 %v3610
      %3928 = vmatpush.msra.mxu0 %v3609
      %3929 = vmatpush.msra.mxu0 %v3608
      %3930 = vmatpush.msra.mxu0 %v3607
      %3931 = vmatpush.msra.mxu0 %v3606
      %3932 = vmatpush.msra.mxu0 %v3605
      %3933 = vmatpush.msra.mxu0 %v3604
      %3934 = vmatpush.msra.mxu0 %v3603
      %3935 = vmatmul.f32.gmra.mxu0 %v3612
      %v3936 = vpop.f32.mrf.mxu0
      %v3937 = vadd.f32 %v3872, %v3936
      %3938 = vmatmul.f32.gmra.mxu0 %v3615
      %v3939 = vpop.f32.mrf.mxu0
      %v3940 = vadd.f32 %v3875, %v3939
      %3941 = vmatmul.f32.gmra.mxu0 %v3618
      %v3942 = vpop.f32.mrf.mxu0
      %v3943 = vadd.f32 %v3878, %v3942
      %3944 = vmatmul.f32.gmra.mxu0 %v3621
      %v3945 = vpop.f32.mrf.mxu0
      %v3946 = vadd.f32 %v3881, %v3945
      %3947 = vmatmul.f32.gmra.mxu0 %v3624
      %v3948 = vpop.f32.mrf.mxu0
      %v3949 = vadd.f32 %v3884, %v3948
      %3950 = vmatmul.f32.gmra.mxu0 %v3627
      %v3951 = vpop.f32.mrf.mxu0
      %v3952 = vadd.f32 %v3887, %v3951
      %3953 = vmatmul.f32.gmra.mxu0 %v3630
      %v3954 = vpop.f32.mrf.mxu0
      %v3955 = vadd.f32 %v3890, %v3954
      %3956 = vmatmul.f32.gmra.mxu0 %v3633
      %v3957 = vpop.f32.mrf.mxu0
      %v3958 = vadd.f32 %v3893, %v3957
      %3959 = vmatmul.f32.gmra.mxu0 %v3636
      %v3960 = vpop.f32.mrf.mxu0
      %v3961 = vadd.f32 %v3896, %v3960
      %3962 = vmatmul.f32.gmra.mxu0 %v3639
      %v3963 = vpop.f32.mrf.mxu0
      %v3964 = vadd.f32 %v3899, %v3963
      %3965 = vmatmul.f32.gmra.mxu0 %v3642
      %v3966 = vpop.f32.mrf.mxu0
      %v3967 = vadd.f32 %v3902, %v3966
      %3968 = vmatmul.f32.gmra.mxu0 %v3645
      %v3969 = vpop.f32.mrf.mxu0
      %v3970 = vadd.f32 %v3905, %v3969
      %3971 = vmatmul.f32.gmra.mxu0 %v3648
      %v3972 = vpop.f32.mrf.mxu0
      %v3973 = vadd.f32 %v3908, %v3972
      %3974 = vmatmul.f32.gmra.mxu0 %v3651
      %v3975 = vpop.f32.mrf.mxu0
      %v3976 = vadd.f32 %v3911, %v3975
      %3977 = vmatmul.f32.gmra.mxu0 %v3654
      %v3978 = vpop.f32.mrf.mxu0
      %v3979 = vadd.f32 %v3914, %v3978
      %3980 = vmatmul.f32.gmra.mxu0 %v3657
      %v3981 = vpop.f32.mrf.mxu0
      %v3982 = vadd.f32 %v3917, %v3981
      %3983 = vdwg.mxu0
      %vm3984 = vcmask 588800
      %v3985 = vsel %vm3984, %v3937, -inf
      %3986 = vmax.xlane.f32.xlu0 %v3985
      %v3987 = vpop.xlane.xlu0 %3986
      %v3988 = vsel %vm3984, %v3940, -inf
      %3989 = vmax.xlane.f32.xlu0 %v3988
      %v3990 = vpop.xlane.xlu0 %3989
      %v3991 = vsel %vm3984, %v3943, -inf
      %3992 = vmax.xlane.f32.xlu0 %v3991
      %v3993 = vpop.xlane.xlu0 %3992
      %v3994 = vsel %vm3984, %v3946, -inf
      %3995 = vmax.xlane.f32.xlu0 %v3994
      %v3996 = vpop.xlane.xlu0 %3995
      %v3997 = vsel %vm3984, %v3949, -inf
      %3998 = vmax.xlane.f32.xlu0 %v3997
      %v3999 = vpop.xlane.xlu0 %3998
      %v4000 = vsel %vm3984, %v3952, -inf
      %4001 = vmax.xlane.f32.xlu0 %v4000
      %v4002 = vpop.xlane.xlu0 %4001
      %v4003 = vsel %vm3984, %v3955, -inf
      %4004 = vmax.xlane.f32.xlu0 %v4003
      %v4005 = vpop.xlane.xlu0 %4004
      %v4006 = vsel %vm3984, %v3958, -inf
      %4007 = vmax.xlane.f32.xlu0 %v4006
      %v4008 = vpop.xlane.xlu0 %4007
      %v4009 = vsel %vm3984, %v3961, -inf
      %4010 = vmax.xlane.f32.xlu0 %v4009
      %v4011 = vpop.xlane.xlu0 %4010
      %v4012 = vsel %vm3984, %v3964, -inf
      %4013 = vmax.xlane.f32.xlu0 %v4012
      %v4014 = vpop.xlane.xlu0 %4013
      %v4015 = vsel %vm3984, %v3967, -inf
      %4016 = vmax.xlane.f32.xlu0 %v4015
      %v4017 = vpop.xlane.xlu0 %4016
      %v4018 = vsel %vm3984, %v3970, -inf
      %4019 = vmax.xlane.f32.xlu0 %v4018
      %v4020 = vpop.xlane.xlu0 %4019
      %v4021 = vsel %vm3984, %v3973, -inf
      %4022 = vmax.xlane.f32.xlu0 %v4021
      %v4023 = vpop.xlane.xlu0 %4022
      %v4024 = vsel %vm3984, %v3976, -inf
      %4025 = vmax.xlane.f32.xlu0 %v4024
      %v4026 = vpop.xlane.xlu0 %4025
      %v4027 = vsel %vm3984, %v3979, -inf
      %4028 = vmax.xlane.f32.xlu0 %v4027
      %v4029 = vpop.xlane.xlu0 %4028
      %v4030 = vsel %vm3984, %v3982, -inf
      %4031 = vmax.xlane.f32.xlu0 %v4030
      %v4032 = vpop.xlane.xlu0 %4031
      %v4033 = vsub.f32 %v3937, %v3987
      %v4034 = vsub.f32 %v3940, %v3990
      %v4035 = vsub.f32 %v3943, %v3993
      %v4036 = vsub.f32 %v3946, %v3996
      %v4037 = vsub.f32 %v3949, %v3999
      %v4038 = vsub.f32 %v3952, %v4002
      %v4039 = vsub.f32 %v3955, %v4005
      %v4040 = vsub.f32 %v3958, %v4008
      %v4041 = vsub.f32 %v3961, %v4011
      %v4042 = vsub.f32 %v3964, %v4014
      %v4043 = vsub.f32 %v3967, %v4017
      %v4044 = vsub.f32 %v3970, %v4020
      %v4045 = vsub.f32 %v3973, %v4023
      %v4046 = vsub.f32 %v3976, %v4026
      %v4047 = vsub.f32 %v3979, %v4029
      %v4048 = vsub.f32 %v3982, %v4032
      %v4049 = vmul.f32 %v4033, 1.442695
      %v4050 = vpow.pop %v4049
      %v4051 = vmul.f32 %v4034, 1.442695
      %v4052 = vpow.pop %v4051
      %v4053 = vmul.f32 %v4035, 1.442695
      %v4054 = vpow.pop %v4053
      %v4055 = vmul.f32 %v4036, 1.442695
      %v4056 = vpow.pop %v4055
      %v4057 = vmul.f32 %v4037, 1.442695
      %v4058 = vpow.pop %v4057
      %v4059 = vmul.f32 %v4038, 1.442695
      %v4060 = vpow.pop %v4059
      %v4061 = vmul.f32 %v4039, 1.442695
      %v4062 = vpow.pop %v4061
      %v4063 = vmul.f32 %v4040, 1.442695
      %v4064 = vpow.pop %v4063
      %v4065 = vmul.f32 %v4041, 1.442695
      %v4066 = vpow.pop %v4065
      %v4067 = vmul.f32 %v4042, 1.442695
      %v4068 = vpow.pop %v4067
      %v4069 = vmul.f32 %v4043, 1.442695
      %v4070 = vpow.pop %v4069
      %v4071 = vmul.f32 %v4044, 1.442695
      %v4072 = vpow.pop %v4071
      %v4073 = vmul.f32 %v4045, 1.442695
      %v4074 = vpow.pop %v4073
      %v4075 = vmul.f32 %v4046, 1.442695
      %v4076 = vpow.pop %v4075
      %v4077 = vmul.f32 %v4047, 1.442695
      %v4078 = vpow.pop %v4077
      %v4079 = vmul.f32 %v4048, 1.442695
      %v4080 = vpow.pop %v4079
      %v4081 = vld [vmem:[%s9] sm:$0xff]
      %v4082 = vld [vmem:[%s9 + $0x8] sm:$0xff]
      %v4083 = vld [vmem:[%s9 + $0x10] sm:$0xff]
      %v4084 = vld [vmem:[%s9 + $0x18] sm:$0xff]
      %v4085 = vld [vmem:[%s9 + $0x20] sm:$0xff]
      %v4086 = vld [vmem:[%s9 + $0x28] sm:$0xff]
      %v4087 = vld [vmem:[%s9 + $0x30] sm:$0xff]
      %v4088 = vld [vmem:[%s9 + $0x38] sm:$0xff]
      %v4089 = vld [vmem:[%s9 + $0x40] sm:$0xff]
      %v4091 = vsel %vm3984, %v4050, 0
      %v4094 = vsel %vm3984, %v4052, 0
      %v4097 = vsel %vm3984, %v4054, 0
      %v4100 = vsel %vm3984, %v4056, 0
      %v4103 = vsel %vm3984, %v4058, 0
      %v4106 = vsel %vm3984, %v4060, 0
      %v4109 = vsel %vm3984, %v4062, 0
      %v4112 = vsel %vm3984, %v4064, 0
      %v4115 = vsel %vm3984, %v4066, 0
      %v4118 = vsel %vm3984, %v4068, 0
      %v4121 = vsel %vm3984, %v4070, 0
      %v4124 = vsel %vm3984, %v4072, 0
      %v4127 = vsel %vm3984, %v4074, 0
      %v4130 = vsel %vm3984, %v4076, 0
      %v4133 = vsel %vm3984, %v4078, 0
      %v4136 = vsel %vm3984, %v4080, 0
      %4138 = vmatpush.msra.mxu0 0.0
      %4139 = vmatpush.msra.mxu0 0.0
      %4140 = vmatpush.msra.mxu0 0.0
      %4141 = vmatpush.msra.mxu0 0.0
      %4142 = vmatpush.msra.mxu0 0.0
      %4143 = vmatpush.msra.mxu0 0.0
      %4144 = vmatpush.msra.mxu0 0.0
      %4145 = vmatpush.msra.mxu0 %v4089
      %4146 = vmatpush.msra.mxu0 %v4088
      %4147 = vmatpush.msra.mxu0 %v4087
      %4148 = vmatpush.msra.mxu0 %v4086
      %4149 = vmatpush.msra.mxu0 %v4085
      %4150 = vmatpush.msra.mxu0 %v4084
      %4151 = vmatpush.msra.mxu0 %v4083
      %4152 = vmatpush.msra.mxu0 %v4082
      %4153 = vmatpush.msra.mxu0 %v4081
      %4154 = vmatmul.f32.gmra.mxu0 %v4091
      %v4155 = vpop.f32.mrf.mxu0
      %v4156 = vadd.f32 0.0, %v4155
      %4157 = vmatmul.f32.gmra.mxu0 %v4094
      %v4158 = vpop.f32.mrf.mxu0
      %v4159 = vadd.f32 0.0, %v4158
      %4160 = vmatmul.f32.gmra.mxu0 %v4097
      %v4161 = vpop.f32.mrf.mxu0
      %v4162 = vadd.f32 0.0, %v4161
      %4163 = vmatmul.f32.gmra.mxu0 %v4100
      %v4164 = vpop.f32.mrf.mxu0
      %v4165 = vadd.f32 0.0, %v4164
      %4166 = vmatmul.f32.gmra.mxu0 %v4103
      %v4167 = vpop.f32.mrf.mxu0
      %v4168 = vadd.f32 0.0, %v4167
      %4169 = vmatmul.f32.gmra.mxu0 %v4106
      %v4170 = vpop.f32.mrf.mxu0
      %v4171 = vadd.f32 0.0, %v4170
      %4172 = vmatmul.f32.gmra.mxu0 %v4109
      %v4173 = vpop.f32.mrf.mxu0
      %v4174 = vadd.f32 0.0, %v4173
      %4175 = vmatmul.f32.gmra.mxu0 %v4112
      %v4176 = vpop.f32.mrf.mxu0
      %v4177 = vadd.f32 0.0, %v4176
      %4178 = vmatmul.f32.gmra.mxu0 %v4115
      %v4179 = vpop.f32.mrf.mxu0
      %v4180 = vadd.f32 0.0, %v4179
      %4181 = vmatmul.f32.gmra.mxu0 %v4118
      %v4182 = vpop.f32.mrf.mxu0
      %v4183 = vadd.f32 0.0, %v4182
      %4184 = vmatmul.f32.gmra.mxu0 %v4121
      %v4185 = vpop.f32.mrf.mxu0
      %v4186 = vadd.f32 0.0, %v4185
      %4187 = vmatmul.f32.gmra.mxu0 %v4124
      %v4188 = vpop.f32.mrf.mxu0
      %v4189 = vadd.f32 0.0, %v4188
      %4190 = vmatmul.f32.gmra.mxu0 %v4127
      %v4191 = vpop.f32.mrf.mxu0
      %v4192 = vadd.f32 0.0, %v4191
      %4193 = vmatmul.f32.gmra.mxu0 %v4130
      %v4194 = vpop.f32.mrf.mxu0
      %v4195 = vadd.f32 0.0, %v4194
      %4196 = vmatmul.f32.gmra.mxu0 %v4133
      %v4197 = vpop.f32.mrf.mxu0
      %v4198 = vadd.f32 0.0, %v4197
      %4199 = vmatmul.f32.gmra.mxu0 %v4136
      %v4200 = vpop.f32.mrf.mxu0
      %v4201 = vadd.f32 0.0, %v4200
      %4202 = vdwg.mxu0
      %v4203 = vrcp.pop %v4156
      %v4204 = vrcp.pop %v4159
      %v4205 = vrcp.pop %v4162
      %v4206 = vrcp.pop %v4165
      %v4207 = vrcp.pop %v4168
      %v4208 = vrcp.pop %v4171
      %v4209 = vrcp.pop %v4174
      %v4210 = vrcp.pop %v4177
      %v4211 = vrcp.pop %v4180
      %v4212 = vrcp.pop %v4183
      %v4213 = vrcp.pop %v4186
      %v4214 = vrcp.pop %v4189
      %v4215 = vrcp.pop %v4192
      %v4216 = vrcp.pop %v4195
      %v4217 = vrcp.pop %v4198
      %v4218 = vrcp.pop %v4201
      %v4219 = vmul.f32 %v4156, %v4203
      %v4220 = vmul.f32 %v4159, %v4204
      %v4221 = vmul.f32 %v4162, %v4205
      %v4222 = vmul.f32 %v4165, %v4206
      %v4223 = vmul.f32 %v4168, %v4207
      %v4224 = vmul.f32 %v4171, %v4208
      %v4225 = vmul.f32 %v4174, %v4209
      %v4226 = vmul.f32 %v4177, %v4210
      %v4227 = vmul.f32 %v4180, %v4211
      %v4228 = vmul.f32 %v4183, %v4212
      %v4229 = vmul.f32 %v4186, %v4213
      %v4230 = vmul.f32 %v4189, %v4214
      %v4231 = vmul.f32 %v4192, %v4215
      %v4232 = vmul.f32 %v4195, %v4216
      %v4233 = vmul.f32 %v4198, %v4217
      %v4234 = vmul.f32 %v4201, %v4218
      %v4235 = vsub.f32 2.0, %v4219
      %v4236 = vsub.f32 2.0, %v4220
      %v4237 = vsub.f32 2.0, %v4221
      %v4238 = vsub.f32 2.0, %v4222
      %v4239 = vsub.f32 2.0, %v4223
      %v4240 = vsub.f32 2.0, %v4224
      %v4241 = vsub.f32 2.0, %v4225
      %v4242 = vsub.f32 2.0, %v4226
      %v4243 = vsub.f32 2.0, %v4227
      %v4244 = vsub.f32 2.0, %v4228
      %v4245 = vsub.f32 2.0, %v4229
      %v4246 = vsub.f32 2.0, %v4230
      %v4247 = vsub.f32 2.0, %v4231
      %v4248 = vsub.f32 2.0, %v4232
      %v4249 = vsub.f32 2.0, %v4233
      %v4250 = vsub.f32 2.0, %v4234
      %v4251 = vmul.f32 %v4203, %v4235
      %v4252 = vmul.f32 %v4204, %v4236
      %v4253 = vmul.f32 %v4205, %v4237
      %v4254 = vmul.f32 %v4206, %v4238
      %v4255 = vmul.f32 %v4207, %v4239
      %v4256 = vmul.f32 %v4208, %v4240
      %v4257 = vmul.f32 %v4209, %v4241
      %v4258 = vmul.f32 %v4210, %v4242
      %v4259 = vmul.f32 %v4211, %v4243
      %v4260 = vmul.f32 %v4212, %v4244
      %v4261 = vmul.f32 %v4213, %v4245
      %v4262 = vmul.f32 %v4214, %v4246
      %v4263 = vmul.f32 %v4215, %v4247
      %v4264 = vmul.f32 %v4216, %v4248
      %v4265 = vmul.f32 %v4217, %v4249
      %v4266 = vmul.f32 %v4218, %v4250
      %v4267 = vld [vmem:[%s10] sm:$0xf]
      %vm4268 = vcmask 31744
      %v4270 = vsel %vm4268, %v4251, 0
      %v4273 = vsel %vm4268, %v4252, 0
      %v4276 = vsel %vm4268, %v4253, 0
      %v4279 = vsel %vm4268, %v4254, 0
      %v4282 = vsel %vm4268, %v4255, 0
      %v4285 = vsel %vm4268, %v4256, 0
      %v4288 = vsel %vm4268, %v4257, 0
      %v4291 = vsel %vm4268, %v4258, 0
      %v4294 = vsel %vm4268, %v4259, 0
      %v4297 = vsel %vm4268, %v4260, 0
      %v4300 = vsel %vm4268, %v4261, 0
      %v4303 = vsel %vm4268, %v4262, 0
      %v4306 = vsel %vm4268, %v4263, 0
      %v4309 = vsel %vm4268, %v4264, 0
      %v4312 = vsel %vm4268, %v4265, 0
      %v4315 = vsel %vm4268, %v4266, 0
      %vm4317 = vcmask 1043456
      %v4319 = vsel %vm4317, %v4267, 0
      %4321 = vmatpush.msra.mxu0 0.0
      %4322 = vmatpush.msra.mxu0 0.0
      %4323 = vmatpush.msra.mxu0 0.0
      %4324 = vmatpush.msra.mxu0 0.0
      %4325 = vmatpush.msra.mxu0 0.0
      %4326 = vmatpush.msra.mxu0 0.0
      %4327 = vmatpush.msra.mxu0 0.0
      %4328 = vmatpush.msra.mxu0 0.0
      %4329 = vmatpush.msra.mxu0 0.0
      %4330 = vmatpush.msra.mxu0 0.0
      %4331 = vmatpush.msra.mxu0 0.0
      %4332 = vmatpush.msra.mxu0 0.0
      %4333 = vmatpush.msra.mxu0 0.0
      %4334 = vmatpush.msra.mxu0 0.0
      %4335 = vmatpush.msra.mxu0 0.0
      %4336 = vmatpush.msra.mxu0 %v4319
      %4337 = vmatmul.f32.gmra.mxu0 %v4270
      %v4338 = vpop.f32.mrf.mxu0
      %v4339 = vadd.f32 0.0, %v4338
      %4340 = vmatmul.f32.gmra.mxu0 %v4273
      %v4341 = vpop.f32.mrf.mxu0
      %v4342 = vadd.f32 0.0, %v4341
      %4343 = vmatmul.f32.gmra.mxu0 %v4276
      %v4344 = vpop.f32.mrf.mxu0
      %v4345 = vadd.f32 0.0, %v4344
      %4346 = vmatmul.f32.gmra.mxu0 %v4279
      %v4347 = vpop.f32.mrf.mxu0
      %v4348 = vadd.f32 0.0, %v4347
      %4349 = vmatmul.f32.gmra.mxu0 %v4282
      %v4350 = vpop.f32.mrf.mxu0
      %v4351 = vadd.f32 0.0, %v4350
      %4352 = vmatmul.f32.gmra.mxu0 %v4285
      %v4353 = vpop.f32.mrf.mxu0
      %v4354 = vadd.f32 0.0, %v4353
      %4355 = vmatmul.f32.gmra.mxu0 %v4288
      %v4356 = vpop.f32.mrf.mxu0
      %v4357 = vadd.f32 0.0, %v4356
      %4358 = vmatmul.f32.gmra.mxu0 %v4291
      %v4359 = vpop.f32.mrf.mxu0
      %v4360 = vadd.f32 0.0, %v4359
      %4361 = vmatmul.f32.gmra.mxu0 %v4294
      %v4362 = vpop.f32.mrf.mxu0
      %v4363 = vadd.f32 0.0, %v4362
      %4364 = vmatmul.f32.gmra.mxu0 %v4297
      %v4365 = vpop.f32.mrf.mxu0
      %v4366 = vadd.f32 0.0, %v4365
      %4367 = vmatmul.f32.gmra.mxu0 %v4300
      %v4368 = vpop.f32.mrf.mxu0
      %v4369 = vadd.f32 0.0, %v4368
      %4370 = vmatmul.f32.gmra.mxu0 %v4303
      %v4371 = vpop.f32.mrf.mxu0
      %v4372 = vadd.f32 0.0, %v4371
      %4373 = vmatmul.f32.gmra.mxu0 %v4306
      %v4374 = vpop.f32.mrf.mxu0
      %v4375 = vadd.f32 0.0, %v4374
      %4376 = vmatmul.f32.gmra.mxu0 %v4309
      %v4377 = vpop.f32.mrf.mxu0
      %v4378 = vadd.f32 0.0, %v4377
      %4379 = vmatmul.f32.gmra.mxu0 %v4312
      %v4380 = vpop.f32.mrf.mxu0
      %v4381 = vadd.f32 0.0, %v4380
      %4382 = vmatmul.f32.gmra.mxu0 %v4315
      %v4383 = vpop.f32.mrf.mxu0
      %v4384 = vadd.f32 0.0, %v4383
      %4385 = vdwg.mxu0
      %v4386 = vmul.f32 %v4050, %v4339
      %v4387 = vmul.f32 %v4052, %v4342
      %v4388 = vmul.f32 %v4054, %v4345
      %v4389 = vmul.f32 %v4056, %v4348
      %v4390 = vmul.f32 %v4058, %v4351
      %v4391 = vmul.f32 %v4060, %v4354
      %v4392 = vmul.f32 %v4062, %v4357
      %v4393 = vmul.f32 %v4064, %v4360
      %v4394 = vmul.f32 %v4066, %v4363
      %v4395 = vmul.f32 %v4068, %v4366
      %v4396 = vmul.f32 %v4070, %v4369
      %v4397 = vmul.f32 %v4072, %v4372
      %v4398 = vmul.f32 %v4074, %v4375
      %v4399 = vmul.f32 %v4076, %v4378
      %v4400 = vmul.f32 %v4078, %v4381
      %v4401 = vmul.f32 %v4080, %v4384
      %v4402 = vld [vmem:[%s11] sm:$0xff]
      %v4403 = vld [vmem:[%s11 + $0x8] sm:$0xff]
      %v4404 = vld [vmem:[%s11 + $0x10] sm:$0xff]
      %v4405 = vld [vmem:[%s11 + $0x18] sm:$0xff]
      %v4406 = vld [vmem:[%s11 + $0x20] sm:$0xff]
      %v4407 = vld [vmem:[%s11 + $0x28] sm:$0xff]
      %v4408 = vld [vmem:[%s11 + $0x30] sm:$0xff]
      %v4409 = vld [vmem:[%s11 + $0x38] sm:$0xff]
      %v4410 = vld [vmem:[%s11 + $0x40] sm:$0xff]
      %v4412 = vsel %vm3984, %v4386, 0
      %v4415 = vsel %vm3984, %v4387, 0
      %v4418 = vsel %vm3984, %v4388, 0
      %v4421 = vsel %vm3984, %v4389, 0
      %v4424 = vsel %vm3984, %v4390, 0
      %v4427 = vsel %vm3984, %v4391, 0
      %v4430 = vsel %vm3984, %v4392, 0
      %v4433 = vsel %vm3984, %v4393, 0
      %v4436 = vsel %vm3984, %v4394, 0
      %v4439 = vsel %vm3984, %v4395, 0
      %v4442 = vsel %vm3984, %v4396, 0
      %v4445 = vsel %vm3984, %v4397, 0
      %v4448 = vsel %vm3984, %v4398, 0
      %v4451 = vsel %vm3984, %v4399, 0
      %v4454 = vsel %vm3984, %v4400, 0
      %v4457 = vsel %vm3984, %v4401, 0
      %4459 = vmatpush.msra.mxu0 0.0
      %4460 = vmatpush.msra.mxu0 0.0
      %4461 = vmatpush.msra.mxu0 0.0
      %4462 = vmatpush.msra.mxu0 0.0
      %4463 = vmatpush.msra.mxu0 0.0
      %4464 = vmatpush.msra.mxu0 0.0
      %4465 = vmatpush.msra.mxu0 0.0
      %4466 = vmatpush.msra.mxu0 %v4410
      %4467 = vmatpush.msra.mxu0 %v4409
      %4468 = vmatpush.msra.mxu0 %v4408
      %4469 = vmatpush.msra.mxu0 %v4407
      %4470 = vmatpush.msra.mxu0 %v4406
      %4471 = vmatpush.msra.mxu0 %v4405
      %4472 = vmatpush.msra.mxu0 %v4404
      %4473 = vmatpush.msra.mxu0 %v4403
      %4474 = vmatpush.msra.mxu0 %v4402
      %4475 = vmatmul.f32.gmra.mxu0 %v4412
      %v4476 = vpop.f32.mrf.mxu0
      %v4477 = vadd.f32 0.0, %v4476
      %4478 = vmatmul.f32.gmra.mxu0 %v4415
      %v4479 = vpop.f32.mrf.mxu0
      %v4480 = vadd.f32 0.0, %v4479
      %4481 = vmatmul.f32.gmra.mxu0 %v4418
      %v4482 = vpop.f32.mrf.mxu0
      %v4483 = vadd.f32 0.0, %v4482
      %4484 = vmatmul.f32.gmra.mxu0 %v4421
      %v4485 = vpop.f32.mrf.mxu0
      %v4486 = vadd.f32 0.0, %v4485
      %4487 = vmatmul.f32.gmra.mxu0 %v4424
      %v4488 = vpop.f32.mrf.mxu0
      %v4489 = vadd.f32 0.0, %v4488
      %4490 = vmatmul.f32.gmra.mxu0 %v4427
      %v4491 = vpop.f32.mrf.mxu0
      %v4492 = vadd.f32 0.0, %v4491
      %4493 = vmatmul.f32.gmra.mxu0 %v4430
      %v4494 = vpop.f32.mrf.mxu0
      %v4495 = vadd.f32 0.0, %v4494
      %4496 = vmatmul.f32.gmra.mxu0 %v4433
      %v4497 = vpop.f32.mrf.mxu0
      %v4498 = vadd.f32 0.0, %v4497
      %4499 = vmatmul.f32.gmra.mxu0 %v4436
      %v4500 = vpop.f32.mrf.mxu0
      %v4501 = vadd.f32 0.0, %v4500
      %4502 = vmatmul.f32.gmra.mxu0 %v4439
      %v4503 = vpop.f32.mrf.mxu0
      %v4504 = vadd.f32 0.0, %v4503
      %4505 = vmatmul.f32.gmra.mxu0 %v4442
      %v4506 = vpop.f32.mrf.mxu0
      %v4507 = vadd.f32 0.0, %v4506
      %4508 = vmatmul.f32.gmra.mxu0 %v4445
      %v4509 = vpop.f32.mrf.mxu0
      %v4510 = vadd.f32 0.0, %v4509
      %4511 = vmatmul.f32.gmra.mxu0 %v4448
      %v4512 = vpop.f32.mrf.mxu0
      %v4513 = vadd.f32 0.0, %v4512
      %4514 = vmatmul.f32.gmra.mxu0 %v4451
      %v4515 = vpop.f32.mrf.mxu0
      %v4516 = vadd.f32 0.0, %v4515
      %4517 = vmatmul.f32.gmra.mxu0 %v4454
      %v4518 = vpop.f32.mrf.mxu0
      %v4519 = vadd.f32 0.0, %v4518
      %4520 = vmatmul.f32.gmra.mxu0 %v4457
      %v4521 = vpop.f32.mrf.mxu0
      %v4522 = vadd.f32 0.0, %v4521
      %4523 = vdwg.mxu0
      %v4524 = vld [vmem:[%s12] sm:$0xff]
      %v4525 = vld [vmem:[%s12 + $0x8] sm:$0xff]
      %v4526 = vld [vmem:[%s12 + $0x10] sm:$0xff]
      %v4527 = vld [vmem:[%s12 + $0x18] sm:$0xff]
      %v4528 = vld [vmem:[%s12 + $0x20] sm:$0xff]
      %v4529 = vld [vmem:[%s12 + $0x28] sm:$0xff]
      %v4530 = vld [vmem:[%s12 + $0x30] sm:$0xff]
      %v4531 = vld [vmem:[%s12 + $0x38] sm:$0xff]
      %v4532 = vld [vmem:[%s12 + $0x40] sm:$0xff]
      %v4533 = vld [vmem:[%s12 + $0x48] sm:$0xff]
      %v4534 = vld [vmem:[%s12 + $0x50] sm:$0xff]
      %v4535 = vld [vmem:[%s12 + $0x58] sm:$0xff]
      %v4536 = vld [vmem:[%s12 + $0x60] sm:$0xf]
      %v4537 = vld [vmem:[%s12 + $0x68] sm:$0xf]
      %v4538 = vld [vmem:[%s12 + $0x70] sm:$0xf]
      %vm4539 = vcmask 293888
      %v4541 = vsel %vm4539, %v4477, 0
      %v4544 = vsel %vm4539, %v4480, 0
      %v4547 = vsel %vm4539, %v4483, 0
      %v4550 = vsel %vm4539, %v4486, 0
      %v4553 = vsel %vm4539, %v4489, 0
      %v4556 = vsel %vm4539, %v4492, 0
      %v4559 = vsel %vm4539, %v4495, 0
      %v4562 = vsel %vm4539, %v4498, 0
      %v4565 = vsel %vm4539, %v4501, 0
      %v4568 = vsel %vm4539, %v4504, 0
      %v4571 = vsel %vm4539, %v4507, 0
      %v4574 = vsel %vm4539, %v4510, 0
      %v4577 = vsel %vm4539, %v4513, 0
      %v4580 = vsel %vm4539, %v4516, 0
      %v4583 = vsel %vm4539, %v4519, 0
      %v4586 = vsel %vm4539, %v4522, 0
      %v4589 = vsel %vm4317, %v4536, 0
      %v4592 = vsel %vm4317, %v4537, 0
      %v4595 = vsel %vm4317, %v4538, 0
      %4597 = vmatpush.msra.mxu0 0.0
      %4598 = vmatpush.msra.mxu0 0.0
      %4599 = vmatpush.msra.mxu0 0.0
      %4600 = vmatpush.msra.mxu0 0.0
      %4601 = vmatpush.msra.mxu0 0.0
      %4602 = vmatpush.msra.mxu0 0.0
      %4603 = vmatpush.msra.mxu0 0.0
      %4604 = vmatpush.msra.mxu0 0.0
      %4605 = vmatpush.msra.mxu0 0.0
      %4606 = vmatpush.msra.mxu0 0.0
      %4607 = vmatpush.msra.mxu0 0.0
      %4608 = vmatpush.msra.mxu0 %v4589
      %4609 = vmatpush.msra.mxu0 %v4533
      %4610 = vmatpush.msra.mxu0 %v4530
      %4611 = vmatpush.msra.mxu0 %v4527
      %4612 = vmatpush.msra.mxu0 %v4524
      %4613 = vmatmul.f32.gmra.mxu0 %v4541
      %v4614 = vpop.f32.mrf.mxu0
      %v4615 = vadd.f32 0.0, %v4614
      %4616 = vmatmul.f32.gmra.mxu0 %v4544
      %v4617 = vpop.f32.mrf.mxu0
      %v4618 = vadd.f32 0.0, %v4617
      %4619 = vmatmul.f32.gmra.mxu0 %v4547
      %v4620 = vpop.f32.mrf.mxu0
      %v4621 = vadd.f32 0.0, %v4620
      %4622 = vmatmul.f32.gmra.mxu0 %v4550
      %v4623 = vpop.f32.mrf.mxu0
      %v4624 = vadd.f32 0.0, %v4623
      %4625 = vmatmul.f32.gmra.mxu0 %v4553
      %v4626 = vpop.f32.mrf.mxu0
      %v4627 = vadd.f32 0.0, %v4626
      %4628 = vmatmul.f32.gmra.mxu0 %v4556
      %v4629 = vpop.f32.mrf.mxu0
      %v4630 = vadd.f32 0.0, %v4629
      %4631 = vmatmul.f32.gmra.mxu0 %v4559
      %v4632 = vpop.f32.mrf.mxu0
      %v4633 = vadd.f32 0.0, %v4632
      %4634 = vmatmul.f32.gmra.mxu0 %v4562
      %v4635 = vpop.f32.mrf.mxu0
      %v4636 = vadd.f32 0.0, %v4635
      %4637 = vmatmul.f32.gmra.mxu0 %v4565
      %v4638 = vpop.f32.mrf.mxu0
      %v4639 = vadd.f32 0.0, %v4638
      %4640 = vmatmul.f32.gmra.mxu0 %v4568
      %v4641 = vpop.f32.mrf.mxu0
      %v4642 = vadd.f32 0.0, %v4641
      %4643 = vmatmul.f32.gmra.mxu0 %v4571
      %v4644 = vpop.f32.mrf.mxu0
      %v4645 = vadd.f32 0.0, %v4644
      %4646 = vmatmul.f32.gmra.mxu0 %v4574
      %v4647 = vpop.f32.mrf.mxu0
      %v4648 = vadd.f32 0.0, %v4647
      %4649 = vmatmul.f32.gmra.mxu0 %v4577
      %v4650 = vpop.f32.mrf.mxu0
      %v4651 = vadd.f32 0.0, %v4650
      %4652 = vmatmul.f32.gmra.mxu0 %v4580
      %v4653 = vpop.f32.mrf.mxu0
      %v4654 = vadd.f32 0.0, %v4653
      %4655 = vmatmul.f32.gmra.mxu0 %v4583
      %v4656 = vpop.f32.mrf.mxu0
      %v4657 = vadd.f32 0.0, %v4656
      %4658 = vmatmul.f32.gmra.mxu0 %v4586
      %v4659 = vpop.f32.mrf.mxu0
      %v4660 = vadd.f32 0.0, %v4659
      %4661 = vdwg.mxu0
      %4662 = vmatpush.msra.mxu0 0.0
      %4663 = vmatpush.msra.mxu0 0.0
      %4664 = vmatpush.msra.mxu0 0.0
      %4665 = vmatpush.msra.mxu0 0.0
      %4666 = vmatpush.msra.mxu0 0.0
      %4667 = vmatpush.msra.mxu0 0.0
      %4668 = vmatpush.msra.mxu0 0.0
      %4669 = vmatpush.msra.mxu0 0.0
      %4670 = vmatpush.msra.mxu0 0.0
      %4671 = vmatpush.msra.mxu0 0.0
      %4672 = vmatpush.msra.mxu0 0.0
      %4673 = vmatpush.msra.mxu0 %v4592
      %4674 = vmatpush.msra.mxu0 %v4534
      %4675 = vmatpush.msra.mxu0 %v4531
      %4676 = vmatpush.msra.mxu0 %v4528
      %4677 = vmatpush.msra.mxu0 %v4525
      %4678 = vmatmul.f32.gmra.mxu0 %v4541
      %v4679 = vpop.f32.mrf.mxu0
      %v4680 = vadd.f32 0.0, %v4679
      %4681 = vmatmul.f32.gmra.mxu0 %v4544
      %v4682 = vpop.f32.mrf.mxu0
      %v4683 = vadd.f32 0.0, %v4682
      %4684 = vmatmul.f32.gmra.mxu0 %v4547
      %v4685 = vpop.f32.mrf.mxu0
      %v4686 = vadd.f32 0.0, %v4685
      %4687 = vmatmul.f32.gmra.mxu0 %v4550
      %v4688 = vpop.f32.mrf.mxu0
      %v4689 = vadd.f32 0.0, %v4688
      %4690 = vmatmul.f32.gmra.mxu0 %v4553
      %v4691 = vpop.f32.mrf.mxu0
      %v4692 = vadd.f32 0.0, %v4691
      %4693 = vmatmul.f32.gmra.mxu0 %v4556
      %v4694 = vpop.f32.mrf.mxu0
      %v4695 = vadd.f32 0.0, %v4694
      %4696 = vmatmul.f32.gmra.mxu0 %v4559
      %v4697 = vpop.f32.mrf.mxu0
      %v4698 = vadd.f32 0.0, %v4697
      %4699 = vmatmul.f32.gmra.mxu0 %v4562
      %v4700 = vpop.f32.mrf.mxu0
      %v4701 = vadd.f32 0.0, %v4700
      %4702 = vmatmul.f32.gmra.mxu0 %v4565
      %v4703 = vpop.f32.mrf.mxu0
      %v4704 = vadd.f32 0.0, %v4703
      %4705 = vmatmul.f32.gmra.mxu0 %v4568
      %v4706 = vpop.f32.mrf.mxu0
      %v4707 = vadd.f32 0.0, %v4706
      %4708 = vmatmul.f32.gmra.mxu0 %v4571
      %v4709 = vpop.f32.mrf.mxu0
      %v4710 = vadd.f32 0.0, %v4709
      %4711 = vmatmul.f32.gmra.mxu0 %v4574
      %v4712 = vpop.f32.mrf.mxu0
      %v4713 = vadd.f32 0.0, %v4712
      %4714 = vmatmul.f32.gmra.mxu0 %v4577
      %v4715 = vpop.f32.mrf.mxu0
      %v4716 = vadd.f32 0.0, %v4715
      %4717 = vmatmul.f32.gmra.mxu0 %v4580
      %v4718 = vpop.f32.mrf.mxu0
      %v4719 = vadd.f32 0.0, %v4718
      %4720 = vmatmul.f32.gmra.mxu0 %v4583
      %v4721 = vpop.f32.mrf.mxu0
      %v4722 = vadd.f32 0.0, %v4721
      %4723 = vmatmul.f32.gmra.mxu0 %v4586
      %v4724 = vpop.f32.mrf.mxu0
      %v4725 = vadd.f32 0.0, %v4724
      %4726 = vdwg.mxu0
      %4727 = vmatpush.msra.mxu0 0.0
      %4728 = vmatpush.msra.mxu0 0.0
      %4729 = vmatpush.msra.mxu0 0.0
      %4730 = vmatpush.msra.mxu0 0.0
      %4731 = vmatpush.msra.mxu0 0.0
      %4732 = vmatpush.msra.mxu0 0.0
      %4733 = vmatpush.msra.mxu0 0.0
      %4734 = vmatpush.msra.mxu0 0.0
      %4735 = vmatpush.msra.mxu0 0.0
      %4736 = vmatpush.msra.mxu0 0.0
      %4737 = vmatpush.msra.mxu0 0.0
      %4738 = vmatpush.msra.mxu0 %v4595
      %4739 = vmatpush.msra.mxu0 %v4535
      %4740 = vmatpush.msra.mxu0 %v4532
      %4741 = vmatpush.msra.mxu0 %v4529
      %4742 = vmatpush.msra.mxu0 %v4526
      %4743 = vmatmul.f32.gmra.mxu0 %v4541
      %v4744 = vpop.f32.mrf.mxu0
      %v4745 = vadd.f32 0.0, %v4744
      %4746 = vmatmul.f32.gmra.mxu0 %v4544
      %v4747 = vpop.f32.mrf.mxu0
      %v4748 = vadd.f32 0.0, %v4747
      %4749 = vmatmul.f32.gmra.mxu0 %v4547
      %v4750 = vpop.f32.mrf.mxu0
      %v4751 = vadd.f32 0.0, %v4750
      %4752 = vmatmul.f32.gmra.mxu0 %v4550
      %v4753 = vpop.f32.mrf.mxu0
      %v4754 = vadd.f32 0.0, %v4753
      %4755 = vmatmul.f32.gmra.mxu0 %v4553
      %v4756 = vpop.f32.mrf.mxu0
      %v4757 = vadd.f32 0.0, %v4756
      %4758 = vmatmul.f32.gmra.mxu0 %v4556
      %v4759 = vpop.f32.mrf.mxu0
      %v4760 = vadd.f32 0.0, %v4759
      %4761 = vmatmul.f32.gmra.mxu0 %v4559
      %v4762 = vpop.f32.mrf.mxu0
      %v4763 = vadd.f32 0.0, %v4762
      %4764 = vmatmul.f32.gmra.mxu0 %v4562
      %v4765 = vpop.f32.mrf.mxu0
      %v4766 = vadd.f32 0.0, %v4765
      %4767 = vmatmul.f32.gmra.mxu0 %v4565
      %v4768 = vpop.f32.mrf.mxu0
      %v4769 = vadd.f32 0.0, %v4768
      %4770 = vmatmul.f32.gmra.mxu0 %v4568
      %v4771 = vpop.f32.mrf.mxu0
      %v4772 = vadd.f32 0.0, %v4771
      %4773 = vmatmul.f32.gmra.mxu0 %v4571
      %v4774 = vpop.f32.mrf.mxu0
      %v4775 = vadd.f32 0.0, %v4774
      %4776 = vmatmul.f32.gmra.mxu0 %v4574
      %v4777 = vpop.f32.mrf.mxu0
      %v4778 = vadd.f32 0.0, %v4777
      %4779 = vmatmul.f32.gmra.mxu0 %v4577
      %v4780 = vpop.f32.mrf.mxu0
      %v4781 = vadd.f32 0.0, %v4780
      %4782 = vmatmul.f32.gmra.mxu0 %v4580
      %v4783 = vpop.f32.mrf.mxu0
      %v4784 = vadd.f32 0.0, %v4783
      %4785 = vmatmul.f32.gmra.mxu0 %v4583
      %v4786 = vpop.f32.mrf.mxu0
      %v4787 = vadd.f32 0.0, %v4786
      %4788 = vmatmul.f32.gmra.mxu0 %v4586
      %v4789 = vpop.f32.mrf.mxu0
      %v4790 = vadd.f32 0.0, %v4789
      %4791 = vdwg.mxu0
      %4824 = vrot.lane.b32.xlu0 %v2618, 16
      %v4825 = vpop.permute.xlu0 %4824
      %4826 = vrot.lane.b32.xlu0 %v2619, 16
      %v4827 = vpop.permute.xlu0 %4826
      %4828 = vrot.lane.b32.xlu0 %v2620, 16
      %v4829 = vpop.permute.xlu0 %4828
      %4830 = vrot.lane.b32.xlu0 %v2621, 16
      %v4831 = vpop.permute.xlu0 %4830
      %4832 = vrot.lane.b32.xlu0 %v2622, 16
      %v4833 = vpop.permute.xlu0 %4832
      %4834 = vrot.lane.b32.xlu0 %v2623, 16
      %v4835 = vpop.permute.xlu0 %4834
      %4836 = vrot.lane.b32.xlu0 %v2624, 16
      %v4837 = vpop.permute.xlu0 %4836
      %4838 = vrot.lane.b32.xlu0 %v2625, 16
      %v4839 = vpop.permute.xlu0 %4838
      %4840 = vrot.lane.b32.xlu0 %v2626, 16
      %v4841 = vpop.permute.xlu0 %4840
      %4842 = vrot.lane.b32.xlu0 %v2627, 16
      %v4843 = vpop.permute.xlu0 %4842
      %4844 = vrot.lane.b32.xlu0 %v2628, 16
      %v4845 = vpop.permute.xlu0 %4844
      %4846 = vrot.lane.b32.xlu0 %v2629, 16
      %v4847 = vpop.permute.xlu0 %4846
      %4848 = vrot.lane.b32.xlu0 %v2630, 16
      %v4849 = vpop.permute.xlu0 %4848
      %4850 = vrot.lane.b32.xlu0 %v2631, 16
      %v4851 = vpop.permute.xlu0 %4850
      %4852 = vrot.lane.b32.xlu0 %v2632, 16
      %v4853 = vpop.permute.xlu0 %4852
      %4854 = vrot.lane.b32.xlu0 %v2633, 16
      %v4855 = vpop.permute.xlu0 %4854
      %4856 = vrot.lane.b32.xlu0 %v2634, 16
      %v4857 = vpop.permute.xlu0 %4856
      %4858 = vrot.lane.b32.xlu0 %v2635, 16
      %v4859 = vpop.permute.xlu0 %4858
      %4860 = vrot.lane.b32.xlu0 %v2636, 16
      %v4861 = vpop.permute.xlu0 %4860
      %4862 = vrot.lane.b32.xlu0 %v2637, 16
      %v4863 = vpop.permute.xlu0 %4862
      %4864 = vrot.lane.b32.xlu0 %v2638, 16
      %v4865 = vpop.permute.xlu0 %4864
      %4866 = vrot.lane.b32.xlu0 %v2639, 16
      %v4867 = vpop.permute.xlu0 %4866
      %4868 = vrot.lane.b32.xlu0 %v2640, 16
      %v4869 = vpop.permute.xlu0 %4868
      %4870 = vrot.lane.b32.xlu0 %v2641, 16
      %v4871 = vpop.permute.xlu0 %4870
      %4872 = vrot.lane.b32.xlu0 %v2642, 16
      %v4873 = vpop.permute.xlu0 %4872
      %4874 = vrot.lane.b32.xlu0 %v2643, 16
      %v4875 = vpop.permute.xlu0 %4874
      %4876 = vrot.lane.b32.xlu0 %v2644, 16
      %v4877 = vpop.permute.xlu0 %4876
      %4878 = vrot.lane.b32.xlu0 %v2645, 16
      %v4879 = vpop.permute.xlu0 %4878
      %4880 = vrot.lane.b32.xlu0 %v2646, 16
      %v4881 = vpop.permute.xlu0 %4880
      %4882 = vrot.lane.b32.xlu0 %v2647, 16
      %v4883 = vpop.permute.xlu0 %4882
      %4884 = vrot.lane.b32.xlu0 %v2648, 16
      %v4885 = vpop.permute.xlu0 %4884
      %4886 = vrot.lane.b32.xlu0 %v2649, 16
      %v4887 = vpop.permute.xlu0 %4886
      %v4888 = vsel %vm573, %v4825, %v4827
      %v4889 = vsel %vm573, %v4829, %v4831
      %v4890 = vsel %vm573, %v4833, %v4835
      %v4891 = vsel %vm573, %v4837, %v4839
      %v4892 = vsel %vm573, %v4841, %v4843
      %v4893 = vsel %vm573, %v4845, %v4847
      %v4894 = vsel %vm573, %v4849, %v4851
      %v4895 = vsel %vm573, %v4853, %v4855
      %v4896 = vsel %vm573, %v4857, %v4859
      %v4897 = vsel %vm573, %v4861, %v4863
      %v4898 = vsel %vm573, %v4865, %v4867
      %v4899 = vsel %vm573, %v4869, %v4871
      %v4900 = vsel %vm573, %v4873, %v4875
      %v4901 = vsel %vm573, %v4877, %v4879
      %v4902 = vsel %vm573, %v4881, %v4883
      %v4903 = vsel %vm573, %v4885, %v4887
      %v4936 = vsel %vm573, %v2619, %v4825
      %v4937 = vsel %vm573, %v2621, %v4829
      %v4938 = vsel %vm573, %v2623, %v4833
      %v4939 = vsel %vm573, %v2625, %v4837
      %v4940 = vsel %vm573, %v2627, %v4841
      %v4941 = vsel %vm573, %v2629, %v4845
      %v4942 = vsel %vm573, %v2631, %v4849
      %v4943 = vsel %vm573, %v2633, %v4853
      %v4944 = vsel %vm573, %v2635, %v4857
      %v4945 = vsel %vm573, %v2637, %v4861
      %v4946 = vsel %vm573, %v2639, %v4865
      %v4947 = vsel %vm573, %v2641, %v4869
      %v4948 = vsel %vm573, %v2643, %v4873
      %v4949 = vsel %vm573, %v2645, %v4877
      %v4950 = vsel %vm573, %v2647, %v4881
      %v4951 = vsel %vm573, %v2649, %v4885
      %v4952 = vmul.f32 %v4615, %v2618
      %v4953 = vmul.f32 %v4680, %v4936
      %v4954 = vmul.f32 %v4745, %v4888
      %v4955 = vmul.f32 %v4618, %v2620
      %v4956 = vmul.f32 %v4683, %v4937
      %v4957 = vmul.f32 %v4748, %v4889
      %v4958 = vmul.f32 %v4621, %v2622
      %v4959 = vmul.f32 %v4686, %v4938
      %v4960 = vmul.f32 %v4751, %v4890
      %v4961 = vmul.f32 %v4624, %v2624
      %v4962 = vmul.f32 %v4689, %v4939
      %v4963 = vmul.f32 %v4754, %v4891
      %v4964 = vmul.f32 %v4627, %v2626
      %v4965 = vmul.f32 %v4692, %v4940
      %v4966 = vmul.f32 %v4757, %v4892
      %v4967 = vmul.f32 %v4630, %v2628
      %v4968 = vmul.f32 %v4695, %v4941
      %v4969 = vmul.f32 %v4760, %v4893
      %v4970 = vmul.f32 %v4633, %v2630
      %v4971 = vmul.f32 %v4698, %v4942
      %v4972 = vmul.f32 %v4763, %v4894
      %v4973 = vmul.f32 %v4636, %v2632
      %v4974 = vmul.f32 %v4701, %v4943
      %v4975 = vmul.f32 %v4766, %v4895
      %v4976 = vmul.f32 %v4639, %v2634
      %v4977 = vmul.f32 %v4704, %v4944
      %v4978 = vmul.f32 %v4769, %v4896
      %v4979 = vmul.f32 %v4642, %v2636
      %v4980 = vmul.f32 %v4707, %v4945
      %v4981 = vmul.f32 %v4772, %v4897
      %v4982 = vmul.f32 %v4645, %v2638
      %v4983 = vmul.f32 %v4710, %v4946
      %v4984 = vmul.f32 %v4775, %v4898
      %v4985 = vmul.f32 %v4648, %v2640
      %v4986 = vmul.f32 %v4713, %v4947
      %v4987 = vmul.f32 %v4778, %v4899
      %v4988 = vmul.f32 %v4651, %v2642
      %v4989 = vmul.f32 %v4716, %v4948
      %v4990 = vmul.f32 %v4781, %v4900
      %v4991 = vmul.f32 %v4654, %v2644
      %v4992 = vmul.f32 %v4719, %v4949
      %v4993 = vmul.f32 %v4784, %v4901
      %v4994 = vmul.f32 %v4657, %v2646
      %v4995 = vmul.f32 %v4722, %v4950
      %v4996 = vmul.f32 %v4787, %v4902
      %v4997 = vmul.f32 %v4660, %v2648
      %v4998 = vmul.f32 %v4725, %v4951
      %v4999 = vmul.f32 %v4790, %v4903
      %v5000 = vld [vmem:[%s13] sm:$0xff]
      %v5001 = vld [vmem:[%s13 + $0x8] sm:$0xff]
      %v5002 = vld [vmem:[%s13 + $0x10] sm:$0xff]
      %v5003 = vld [vmem:[%s13 + $0x18] sm:$0xff]
      %v5004 = vld [vmem:[%s13 + $0x20] sm:$0xff]
      %v5005 = vld [vmem:[%s13 + $0x28] sm:$0xff]
      %v5006 = vld [vmem:[%s13 + $0x30] sm:$0xff]
      %v5007 = vld [vmem:[%s13 + $0x38] sm:$0xff]
      %v5008 = vld [vmem:[%s13 + $0x40] sm:$0xff]
      %v5009 = vld [vmem:[%s13 + $0x48] sm:$0xff]
      %v5010 = vld [vmem:[%s13 + $0x50] sm:$0xff]
      %v5011 = vld [vmem:[%s13 + $0x58] sm:$0xff]
      %v5012 = vld [vmem:[%s13 + $0x60] sm:$0xff]
      %v5013 = vld [vmem:[%s13 + $0x68] sm:$0xff]
      %v5014 = vld [vmem:[%s13 + $0x70] sm:$0xff]
      %v5015 = vld [vmem:[%s13 + $0x78] sm:$0xff]
      %v5016 = vld [vmem:[%s13 + $0x80] sm:$0xff]
      %v5017 = vld [vmem:[%s13 + $0x88] sm:$0xff]
      %v5018 = vld [vmem:[%s13 + $0x90] sm:$0xff]
      %v5019 = vld [vmem:[%s13 + $0x98] sm:$0xff]
      %v5020 = vld [vmem:[%s13 + $0xa0] sm:$0xff]
      %v5021 = vld [vmem:[%s13 + $0xa8] sm:$0xff]
      %v5022 = vld [vmem:[%s13 + $0xb0] sm:$0xff]
      %v5023 = vld [vmem:[%s13 + $0xb8] sm:$0xff]
      %v5024 = vld [vmem:[%s13 + $0xc0] sm:$0xff]
      %v5025 = vld [vmem:[%s13 + $0xc8] sm:$0xff]
      %v5026 = vld [vmem:[%s13 + $0xd0] sm:$0xff]
      %v5027 = vld [vmem:[%s13 + $0xd8] sm:$0xff]
      %v5028 = vld [vmem:[%s13 + $0xe0] sm:$0xff]
      %v5029 = vld [vmem:[%s13 + $0xe8] sm:$0xff]
      %v5030 = vld [vmem:[%s13 + $0xf0] sm:$0xff]
      %v5031 = vld [vmem:[%s13 + $0xf8] sm:$0xff]
      %v5032 = vld [vmem:[%s13 + $0x100] sm:$0xff]
      %v5033 = vld [vmem:[%s13 + $0x108] sm:$0xff]
      %v5034 = vld [vmem:[%s13 + $0x110] sm:$0xff]
      %v5035 = vld [vmem:[%s13 + $0x118] sm:$0xff]
      %v5037 = vsel %vm1944, %v4954, 0
      %v5040 = vsel %vm1944, %v4957, 0
      %v5043 = vsel %vm1944, %v4960, 0
      %v5046 = vsel %vm1944, %v4963, 0
      %v5049 = vsel %vm1944, %v4966, 0
      %v5052 = vsel %vm1944, %v4969, 0
      %v5055 = vsel %vm1944, %v4972, 0
      %v5058 = vsel %vm1944, %v4975, 0
      %v5061 = vsel %vm1944, %v4978, 0
      %v5064 = vsel %vm1944, %v4981, 0
      %v5067 = vsel %vm1944, %v4984, 0
      %v5070 = vsel %vm1944, %v4987, 0
      %v5073 = vsel %vm1944, %v4990, 0
      %v5076 = vsel %vm1944, %v4993, 0
      %v5079 = vsel %vm1944, %v4996, 0
      %v5082 = vsel %vm1944, %v4999, 0
      %5084 = vmatpush.msra.mxu0 %v5015
      %5085 = vmatpush.msra.mxu0 %v5014
      %5086 = vmatpush.msra.mxu0 %v5013
      %5087 = vmatpush.msra.mxu0 %v5012
      %5088 = vmatpush.msra.mxu0 %v5011
      %5089 = vmatpush.msra.mxu0 %v5010
      %5090 = vmatpush.msra.mxu0 %v5009
      %5091 = vmatpush.msra.mxu0 %v5008
      %5092 = vmatpush.msra.mxu0 %v5007
      %5093 = vmatpush.msra.mxu0 %v5006
      %5094 = vmatpush.msra.mxu0 %v5005
      %5095 = vmatpush.msra.mxu0 %v5004
      %5096 = vmatpush.msra.mxu0 %v5003
      %5097 = vmatpush.msra.mxu0 %v5002
      %5098 = vmatpush.msra.mxu0 %v5001
      %5099 = vmatpush.msra.mxu0 %v5000
      %5100 = vmatmul.f32.gmra.mxu0 %v4952
      %v5101 = vpop.f32.mrf.mxu0
      %v5102 = vadd.f32 0.0, %v5101
      %5103 = vmatmul.f32.gmra.mxu0 %v4955
      %v5104 = vpop.f32.mrf.mxu0
      %v5105 = vadd.f32 0.0, %v5104
      %5106 = vmatmul.f32.gmra.mxu0 %v4958
      %v5107 = vpop.f32.mrf.mxu0
      %v5108 = vadd.f32 0.0, %v5107
      %5109 = vmatmul.f32.gmra.mxu0 %v4961
      %v5110 = vpop.f32.mrf.mxu0
      %v5111 = vadd.f32 0.0, %v5110
      %5112 = vmatmul.f32.gmra.mxu0 %v4964
      %v5113 = vpop.f32.mrf.mxu0
      %v5114 = vadd.f32 0.0, %v5113
      %5115 = vmatmul.f32.gmra.mxu0 %v4967
      %v5116 = vpop.f32.mrf.mxu0
      %v5117 = vadd.f32 0.0, %v5116
      %5118 = vmatmul.f32.gmra.mxu0 %v4970
      %v5119 = vpop.f32.mrf.mxu0
      %v5120 = vadd.f32 0.0, %v5119
      %5121 = vmatmul.f32.gmra.mxu0 %v4973
      %v5122 = vpop.f32.mrf.mxu0
      %v5123 = vadd.f32 0.0, %v5122
      %5124 = vmatmul.f32.gmra.mxu0 %v4976
      %v5125 = vpop.f32.mrf.mxu0
      %v5126 = vadd.f32 0.0, %v5125
      %5127 = vmatmul.f32.gmra.mxu0 %v4979
      %v5128 = vpop.f32.mrf.mxu0
      %v5129 = vadd.f32 0.0, %v5128
      %5130 = vmatmul.f32.gmra.mxu0 %v4982
      %v5131 = vpop.f32.mrf.mxu0
      %v5132 = vadd.f32 0.0, %v5131
      %5133 = vmatmul.f32.gmra.mxu0 %v4985
      %v5134 = vpop.f32.mrf.mxu0
      %v5135 = vadd.f32 0.0, %v5134
      %5136 = vmatmul.f32.gmra.mxu0 %v4988
      %v5137 = vpop.f32.mrf.mxu0
      %v5138 = vadd.f32 0.0, %v5137
      %5139 = vmatmul.f32.gmra.mxu0 %v4991
      %v5140 = vpop.f32.mrf.mxu0
      %v5141 = vadd.f32 0.0, %v5140
      %5142 = vmatmul.f32.gmra.mxu0 %v4994
      %v5143 = vpop.f32.mrf.mxu0
      %v5144 = vadd.f32 0.0, %v5143
      %5145 = vmatmul.f32.gmra.mxu0 %v4997
      %v5146 = vpop.f32.mrf.mxu0
      %v5147 = vadd.f32 0.0, %v5146
      %5148 = vdwg.mxu0
      %5149 = vmatpush.msra.mxu0 %v5031
      %5150 = vmatpush.msra.mxu0 %v5030
      %5151 = vmatpush.msra.mxu0 %v5029
      %5152 = vmatpush.msra.mxu0 %v5028
      %5153 = vmatpush.msra.mxu0 %v5027
      %5154 = vmatpush.msra.mxu0 %v5026
      %5155 = vmatpush.msra.mxu0 %v5025
      %5156 = vmatpush.msra.mxu0 %v5024
      %5157 = vmatpush.msra.mxu0 %v5023
      %5158 = vmatpush.msra.mxu0 %v5022
      %5159 = vmatpush.msra.mxu0 %v5021
      %5160 = vmatpush.msra.mxu0 %v5020
      %5161 = vmatpush.msra.mxu0 %v5019
      %5162 = vmatpush.msra.mxu0 %v5018
      %5163 = vmatpush.msra.mxu0 %v5017
      %5164 = vmatpush.msra.mxu0 %v5016
      %5165 = vmatmul.f32.gmra.mxu0 %v4953
      %v5166 = vpop.f32.mrf.mxu0
      %v5167 = vadd.f32 %v5102, %v5166
      %5168 = vmatmul.f32.gmra.mxu0 %v4956
      %v5169 = vpop.f32.mrf.mxu0
      %v5170 = vadd.f32 %v5105, %v5169
      %5171 = vmatmul.f32.gmra.mxu0 %v4959
      %v5172 = vpop.f32.mrf.mxu0
      %v5173 = vadd.f32 %v5108, %v5172
      %5174 = vmatmul.f32.gmra.mxu0 %v4962
      %v5175 = vpop.f32.mrf.mxu0
      %v5176 = vadd.f32 %v5111, %v5175
      %5177 = vmatmul.f32.gmra.mxu0 %v4965
      %v5178 = vpop.f32.mrf.mxu0
      %v5179 = vadd.f32 %v5114, %v5178
      %5180 = vmatmul.f32.gmra.mxu0 %v4968
      %v5181 = vpop.f32.mrf.mxu0
      %v5182 = vadd.f32 %v5117, %v5181
      %5183 = vmatmul.f32.gmra.mxu0 %v4971
      %v5184 = vpop.f32.mrf.mxu0
      %v5185 = vadd.f32 %v5120, %v5184
      %5186 = vmatmul.f32.gmra.mxu0 %v4974
      %v5187 = vpop.f32.mrf.mxu0
      %v5188 = vadd.f32 %v5123, %v5187
      %5189 = vmatmul.f32.gmra.mxu0 %v4977
      %v5190 = vpop.f32.mrf.mxu0
      %v5191 = vadd.f32 %v5126, %v5190
      %5192 = vmatmul.f32.gmra.mxu0 %v4980
      %v5193 = vpop.f32.mrf.mxu0
      %v5194 = vadd.f32 %v5129, %v5193
      %5195 = vmatmul.f32.gmra.mxu0 %v4983
      %v5196 = vpop.f32.mrf.mxu0
      %v5197 = vadd.f32 %v5132, %v5196
      %5198 = vmatmul.f32.gmra.mxu0 %v4986
      %v5199 = vpop.f32.mrf.mxu0
      %v5200 = vadd.f32 %v5135, %v5199
      %5201 = vmatmul.f32.gmra.mxu0 %v4989
      %v5202 = vpop.f32.mrf.mxu0
      %v5203 = vadd.f32 %v5138, %v5202
      %5204 = vmatmul.f32.gmra.mxu0 %v4992
      %v5205 = vpop.f32.mrf.mxu0
      %v5206 = vadd.f32 %v5141, %v5205
      %5207 = vmatmul.f32.gmra.mxu0 %v4995
      %v5208 = vpop.f32.mrf.mxu0
      %v5209 = vadd.f32 %v5144, %v5208
      %5210 = vmatmul.f32.gmra.mxu0 %v4998
      %v5211 = vpop.f32.mrf.mxu0
      %v5212 = vadd.f32 %v5147, %v5211
      %5213 = vdwg.mxu0
      %5214 = vmatpush.msra.mxu0 0.0
      %5215 = vmatpush.msra.mxu0 0.0
      %5216 = vmatpush.msra.mxu0 0.0
      %5217 = vmatpush.msra.mxu0 0.0
      %5218 = vmatpush.msra.mxu0 0.0
      %5219 = vmatpush.msra.mxu0 0.0
      %5220 = vmatpush.msra.mxu0 0.0
      %5221 = vmatpush.msra.mxu0 0.0
      %5222 = vmatpush.msra.mxu0 0.0
      %5223 = vmatpush.msra.mxu0 0.0
      %5224 = vmatpush.msra.mxu0 0.0
      %5225 = vmatpush.msra.mxu0 0.0
      %5226 = vmatpush.msra.mxu0 %v5035
      %5227 = vmatpush.msra.mxu0 %v5034
      %5228 = vmatpush.msra.mxu0 %v5033
      %5229 = vmatpush.msra.mxu0 %v5032
      %5230 = vmatmul.f32.gmra.mxu0 %v5037
      %v5231 = vpop.f32.mrf.mxu0
      %v5232 = vadd.f32 %v5167, %v5231
      %5233 = vmatmul.f32.gmra.mxu0 %v5040
      %v5234 = vpop.f32.mrf.mxu0
      %v5235 = vadd.f32 %v5170, %v5234
      %5236 = vmatmul.f32.gmra.mxu0 %v5043
      %v5237 = vpop.f32.mrf.mxu0
      %v5238 = vadd.f32 %v5173, %v5237
      %5239 = vmatmul.f32.gmra.mxu0 %v5046
      %v5240 = vpop.f32.mrf.mxu0
      %v5241 = vadd.f32 %v5176, %v5240
      %5242 = vmatmul.f32.gmra.mxu0 %v5049
      %v5243 = vpop.f32.mrf.mxu0
      %v5244 = vadd.f32 %v5179, %v5243
      %5245 = vmatmul.f32.gmra.mxu0 %v5052
      %v5246 = vpop.f32.mrf.mxu0
      %v5247 = vadd.f32 %v5182, %v5246
      %5248 = vmatmul.f32.gmra.mxu0 %v5055
      %v5249 = vpop.f32.mrf.mxu0
      %v5250 = vadd.f32 %v5185, %v5249
      %5251 = vmatmul.f32.gmra.mxu0 %v5058
      %v5252 = vpop.f32.mrf.mxu0
      %v5253 = vadd.f32 %v5188, %v5252
      %5254 = vmatmul.f32.gmra.mxu0 %v5061
      %v5255 = vpop.f32.mrf.mxu0
      %v5256 = vadd.f32 %v5191, %v5255
      %5257 = vmatmul.f32.gmra.mxu0 %v5064
      %v5258 = vpop.f32.mrf.mxu0
      %v5259 = vadd.f32 %v5194, %v5258
      %5260 = vmatmul.f32.gmra.mxu0 %v5067
      %v5261 = vpop.f32.mrf.mxu0
      %v5262 = vadd.f32 %v5197, %v5261
      %5263 = vmatmul.f32.gmra.mxu0 %v5070
      %v5264 = vpop.f32.mrf.mxu0
      %v5265 = vadd.f32 %v5200, %v5264
      %5266 = vmatmul.f32.gmra.mxu0 %v5073
      %v5267 = vpop.f32.mrf.mxu0
      %v5268 = vadd.f32 %v5203, %v5267
      %5269 = vmatmul.f32.gmra.mxu0 %v5076
      %v5270 = vpop.f32.mrf.mxu0
      %v5271 = vadd.f32 %v5206, %v5270
      %5272 = vmatmul.f32.gmra.mxu0 %v5079
      %v5273 = vpop.f32.mrf.mxu0
      %v5274 = vadd.f32 %v5209, %v5273
      %5275 = vmatmul.f32.gmra.mxu0 %v5082
      %v5276 = vpop.f32.mrf.mxu0
      %v5277 = vadd.f32 %v5212, %v5276
      %5278 = vdwg.mxu0
      %5279 = vst.msk [vmem:[%s537] sm:$0xff] %vm573, %v5232
      %5280 = vst.msk [vmem:[%s537 + $0x8] sm:$0xff] %vm573, %v5235
      %5281 = vst.msk [vmem:[%s537 + $0x10] sm:$0xff] %vm573, %v5238
      %5282 = vst.msk [vmem:[%s537 + $0x18] sm:$0xff] %vm573, %v5241
      %5283 = vst.msk [vmem:[%s537 + $0x20] sm:$0xff] %vm573, %v5244
      %5284 = vst.msk [vmem:[%s537 + $0x28] sm:$0xff] %vm573, %v5247
      %5285 = vst.msk [vmem:[%s537 + $0x30] sm:$0xff] %vm573, %v5250
      %5286 = vst.msk [vmem:[%s537 + $0x38] sm:$0xff] %vm573, %v5253
      %5287 = vst.msk [vmem:[%s537 + $0x40] sm:$0xff] %vm573, %v5256
      %5288 = vst.msk [vmem:[%s537 + $0x48] sm:$0xff] %vm573, %v5259
      %5289 = vst.msk [vmem:[%s537 + $0x50] sm:$0xff] %vm573, %v5262
      %5290 = vst.msk [vmem:[%s537 + $0x58] sm:$0xff] %vm573, %v5265
      %5291 = vst.msk [vmem:[%s537 + $0x60] sm:$0xff] %vm573, %v5268
      %5292 = vst.msk [vmem:[%s537 + $0x68] sm:$0xff] %vm573, %v5271
      %5293 = vst.msk [vmem:[%s537 + $0x70] sm:$0xff] %vm573, %v5274
      %5294 = vst.msk [vmem:[%s537 + $0x78] sm:$0xff] %vm573, %v5277
      %s5295 = smul.u32 16, %s30
      %p5296 = scmp.lt.s32.totalorder %s29, 1
      %s5297 = scalar_select %p5296, %s29, 1
      %p5298 = scmp.lt.s32.totalorder %s5295, 31
      %s5299 = scalar_select %p5298, %s5295, 31
      %s5300 = smul.addr %s5297, 32
      %s5301 = sadd.s32 %s5299, %s5300
      %s5302 = smul.addr %s5301, 8
      %s5303 = scalar_lea.vmem %s14, %s5302
      // Predicated region
      $region77: #{tpu_custom_call.1} parent=75 // pred_check
        %p5304 = pneg %p369
      $region78: #{tpu_custom_call.1} parent=75 // pred_check_branch
        %5306 = sbr.rel (%p5304) target = $region80
      $region79: #{tpu_custom_call.1} parent=75 // pred_region
        %s5307 = smul.u32 16, %s30
      $region80: #{tpu_custom_call.1} parent=75 // pred_fallthru
        _
    $region76: #{tpu_custom_call.1} parent=5 // pred_fallthru
      _
    %p5308 = scmp.le.s32.totalorder 2, %s20
    // Predicated region
    $region81: #{tpu_custom_call.1} parent=5 // pred_check
      %p5309 = pneg %p5308
    $region82: #{tpu_custom_call.1} parent=5 // pred_check_branch
      %5311 = sbr.rel (%p5309) target = $region84
    $region83: #{tpu_custom_call.1} parent=5 // pred_region
      %s5312 = ssub.s32 %s20, 2
      // Predicated region
      $region85: #{tpu_custom_call.1} parent=83 // pred_check
        %p5313 = pneg %p375
      $region86: #{tpu_custom_call.1} parent=83 // pred_check_branch
        %5315 = sbr.rel (%p5313) target = $region88
      $region87: #{tpu_custom_call.1} parent=83 // pred_region
        %s5316 = smul.u32 16, %s32
        %p5317 = scmp.lt.s32.totalorder %s31, 1
        %s5318 = scalar_select %p5317, %s31, 1
        %p5319 = scmp.lt.s32.totalorder %s5316, 31
        %s5320 = scalar_select %p5319, %s5316, 31
        %s5321 = smul.addr %s5318, 32
        %s5322 = sadd.s32 %s5320, %s5321
        %s5323 = smul.addr %s5322, 8
        %s5324 = scalar_lea.vmem %s14, %s5323
      $region88: #{tpu_custom_call.1} parent=83 // pred_fallthru
        _
    $region84: #{tpu_custom_call.1} parent=5 // pred_fallthru
      _
  $region6: #{tpu_custom_call.1} parent=0 // loop_footer
    %s24 = sadd.s32 1, %s20
  $region7: #{tpu_custom_call.1} parent=0 // loop_footer_branch
    %19 = sbr.rel target = $region3
  $region8: #{tpu_custom_call.1} parent=0 // loop_exit
    _

</llo_original>
